<compile_context>
chip_gen: v7x
topology: tpu7x:2x2x1
jax: 0.10.0
libtpu: 0.0.40
codegen_flags: <defaults>
</compile_context>

<pallas_src>
import math
from functools import partial

import jax
import jax.numpy as jnp
from jax.experimental import pallas as pl
from jax.experimental.pallas import tpu as pltpu

LANE = 128


def _round_up(x, m):
    return ((x + m - 1) // m) * m


# -----------------------------------------------------------------------------
# Pallas kernel: grid over layers; whole (B*S) batch slab per step
# -----------------------------------------------------------------------------
def encoder_kernel(x_ref, bias_ref, nf_ref, nl_ref, timing_ref, wemb_ref,
                   ln1_g_ref, ln1_b_ref, wq_ref, wk_ref, wv_ref, wo_ref,
                   ln2_g_ref, ln2_b_ref, wc1_ref, bc1_ref, wc2_ref, bc2_ref,
                   lnf_g_ref, lnf_b_ref, out_ref, h_ref,
                   *, num_heads, h_real, dk_real):
    f32 = jnp.float32
    layer = pl.program_id(0)
    n_layers = pl.num_programs(0)

    R, Hp = h_ref.shape                      # R = B*S rows, Hp = padded hidden (128-mult)
    NH = num_heads
    dkp = wq_ref.shape[2] // NH              # padded per-head key depth (128-mult)
    dvp = wv_ref.shape[2] // NH              # padded per-head value depth (128-mult)
    Fp = bc1_ref.shape[2]                    # padded filter size (128-mult)
    scale = dk_real ** -0.5                  # query_scale = (total_key_depth // heads)**-0.5

    # 1.0 on real hidden lanes, 0.0 on padded lanes (for LayerNorm variance only).
    lane = jax.lax.broadcasted_iota(jnp.int32, (1, Hp), 1)
    feat_mask = (lane < h_real).astype(f32)

    def layer_norm(v, g, b):
        # custom LayerNorm: unbiased std (ddof=1), denominator (std + eps); exact recip
        # (approx reciprocal is kept only for the softmax denominator, per review).
        mean = jnp.sum(v, axis=-1, keepdims=True) * (1.0 / h_real)
        diff = (v - mean) * feat_mask                       # padded lanes -> 0
        var = jnp.sum(diff * diff, axis=-1, keepdims=True) * (1.0 / (h_real - 1))
        inv = 1.0 / (jnp.sqrt(var) + 1e-6)
        return g * diff * inv + b                           # g,b zero-padded -> 0 lanes stay 0

    nf = nf_ref[...]   # (R,1): 1.0 unless first position of its sequence (also batch edge)
    nl = nl_ref[...]   # (R,1): 1.0 unless last position of its sequence

    def conv3(v, w, b, cout):
        # fused 3-tap Conv1d (kernel_size=3, zero 'both' padding):
        # one (R, Cin) @ (Cin, 3*Cout) matmul, then shift-add the 128-aligned taps.
        a = jnp.dot(v, w, preferred_element_type=f32)       # (R, 3*cout)
        prev = pltpu.roll(a[:, :cout], 1, 0) * nf           # tap0 * x[t-1], zero at seq start
        nxt = pltpu.roll(a[:, 2 * cout:], R - 1, 0) * nl    # tap2 * x[t+1], zero at seq end
        return prev + a[:, cout:2 * cout] + nxt + b

    # ---- first grid step: embedding_proj (no bias) + timing signal (input_dropout = id)
    @pl.when(layer == 0)
    def _():
        h_ref[...] = (jnp.dot(x_ref[...], wemb_ref[...], preferred_element_type=f32)
                      + timing_ref[...])

    h = h_ref[...]
    bias = bias_ref[...]                                    # (R, R) additive mask: 0 / -1e18

    # ---------------- multi-head self-attention sub-layer ----------------
    xn = layer_norm(h, ln1_g_ref[0], ln1_b_ref[0])
    q = jnp.dot(xn, wq_ref[0], preferred_element_type=f32) * scale     # (R, NH*dkp)
    k = jnp.dot(xn, wk_ref[0], preferred_element_type=f32)             # (R, NH*dkp)
    v = jnp.dot(xn, wv_ref[0], preferred_element_type=f32)             # (R, NH*dvp)
    wo_l = wo_ref[0]                                                    # (NH*dvp, Hp)

    attn = jnp.zeros((R, Hp), f32)
    for hh in range(NH):                       # static loop; all slices 128-lane aligned
        qh = q[:, hh * dkp:(hh + 1) * dkp]
        kh = k[:, hh * dkp:(hh + 1) * dkp]
        vh = v[:, hh * dvp:(hh + 1) * dvp]
        logits = jnp.einsum('qd,kd->qk', qh, kh, preferred_element_type=f32) + bias
        m = jnp.max(logits, axis=-1, keepdims=True)
        e = jnp.exp(logits - m)
        p = e * pl.reciprocal(jnp.sum(e, axis=-1, keepdims=True), approx=True)
        ctx = jnp.dot(p, vh, preferred_element_type=f32)                # (R, dvp)
        # accumulate through this head's slice of the output projection (no concat)
        attn = attn + jnp.dot(ctx, wo_l[hh * dvp:(hh + 1) * dvp, :],
                              preferred_element_type=f32)
    h = h + attn                                                        # residual (dropout=id)

    # ---------------- position-wise FFN ('cc', padding='both') ----------------
    xn = layer_norm(h, ln2_g_ref[0], ln2_b_ref[0])
    f = jnp.maximum(conv3(xn, wc1_ref[0], bc1_ref[0], Fp), 0.0)
    f = jnp.maximum(conv3(f, wc2_ref[0], bc2_ref[0], Hp), 0.0)          # ReLU after last conv too
    h = h + f
    h_ref[...] = h

    @pl.when(layer == n_layers - 1)
    def _():
        out_ref[...] = layer_norm(h, lnf_g_ref[...], lnf_b_ref[...]).astype(out_ref.dtype)


# -----------------------------------------------------------------------------
# Wrapper: pad to lane-dense layouts, fold batch into rows, grid over layers
# -----------------------------------------------------------------------------
def encoder_forward(x, mask, p, num_heads):
    """x: (B, S, E) f32; mask: (B, 1, S) with 1.0 at padded key positions."""
    B, S, E = x.shape
    H = p['wemb'].shape[1]
    L = p['wq'].shape[0]
    DK, DV, F = p['wq'].shape[2], p['wv'].shape[2], p['bc1'].shape[2]
    NH = num_heads
    dk, dv = DK // NH, DV // NH

    Hp, Ep, Fp = _round_up(H, LANE), _round_up(E, LANE), _round_up(F, LANE)
    dkp, dvp = _round_up(dk, LANE), _round_up(dv, LANE)
    R = B * S                                # batch folded into the matmul M dimension
    assert R % 8 == 0, "B*S must be a multiple of 8 for sublane tiling"

    f32 = jnp.float32

    def pad2(a, r, c):                       # zero-pad last two dims to (r, c)
        return jnp.pad(a, [(0, 0)] * (a.ndim - 2)
                       + [(0, r - a.shape[-2]), (0, c - a.shape[-1])])

    def pad_heads_in(w, d, dp):              # (L, H, NH*d) -> (L, Hp, NH*dp), aligned heads
        w = w.reshape(L, H, NH, d)
        w = jnp.pad(w, [(0, 0), (0, Hp - H), (0, 0), (0, dp - d)])
        return w.reshape(L, Hp, NH * dp)

    def pad_heads_out(w, d, dp):             # (L, NH*d, H) -> (L, NH*dp, Hp)
        w = w.reshape(L, NH, d, H)
        w = jnp.pad(w, [(0, 0), (0, 0), (0, dp - d), (0, Hp - H)])
        return w.reshape(L, NH * dp, Hp)

    def pad_taps(w, cin, cinp, cout, coutp):  # (L, cin, 3*cout) -> (L, cinp, 3*coutp)
        w = w.reshape(L, cin, 3, cout)
        w = jnp.pad(w, [(0, 0), (0, cinp - cin), (0, 0), (0, coutp - cout)])
        return w.reshape(L, cinp, 3 * coutp)

    # ---- activations / masks, prepared once outside the kernel ----
    xf = pad2(x.reshape(R, E).astype(f32), R, Ep)
    timing = pad2(jnp.tile(p['timing'][:S], (B, 1)), R, Hp)             # (R, Hp)

    # additive attention bias over folded rows: key must be in the same batch element as
    # the query AND not a padded position (block-diagonal + key-padding mask, -1e18 fill)
    qb = jnp.arange(R, dtype=jnp.int32) // S
    key_pad = mask.reshape(R) > 0.5
    ok = (qb[:, None] == qb[None, :]) & (~key_pad)[None, :]
    bias = jnp.where(ok, f32(0.0), f32(-1e18))                          # (R, R)

    pos = jnp.arange(R, dtype=jnp.int32) % S
    nf = (pos != 0).astype(f32)[:, None]                                # (R, 1)
    nl = (pos != S - 1).astype(f32)[:, None]                            # (R, 1)

    # ---- parameters, zero-padded into lane-aligned kernel layouts ----
    # (for production sizes on v6e/v7x: cast these to bfloat16 here and keep the
    #  preferred_element_type=f32 accumulation in the kernel; kept f32 for tight checks)
    wemb = pad2(p['wemb'], Ep, Hp)
    wq = pad_heads_in(p['wq'], dk, dkp)
    wk = pad_heads_in(p['wk'], dk, dkp)
    wv = pad_heads_in(p['wv'], dv, dvp)
    wo = pad_heads_out(p['wo'], dv, dvp)
    wc1 = pad_taps(p['wc1'], H, Hp, F, Fp)
    wc2 = pad_taps(p['wc2'], F, Fp, H, Hp)
    ln1_g, ln1_b = pad2(p['ln1_g'], 1, Hp), pad2(p['ln1_b'], 1, Hp)
    ln2_g, ln2_b = pad2(p['ln2_g'], 1, Hp), pad2(p['ln2_b'], 1, Hp)
    bc1, bc2 = pad2(p['bc1'], 1, Fp), pad2(p['bc2'], 1, Hp)
    lnf_g, lnf_b = pad2(p['lnf_g'], 1, Hp), pad2(p['lnf_b'], 1, Hp)

    def const_spec(shape):                   # resident / re-fetched small blocks, index 0
        return pl.BlockSpec(shape, lambda l, _n=len(shape): (0,) * _n)

    def per_layer(shape):                    # streamed per-layer weight blocks
        return pl.BlockSpec((1,) + shape, lambda l, _n=len(shape): (l,) + (0,) * _n)

    in_specs = [
        const_spec((R, Ep)),                                 # x (folded batch rows)
        const_spec((R, R)),                                  # additive attention bias
        const_spec((R, 1)), const_spec((R, 1)),              # not-first / not-last masks
        const_spec((R, Hp)),                                 # timing signal (batch-tiled)
        const_spec((Ep, Hp)),                                # embedding projection
        per_layer((1, Hp)), per_layer((1, Hp)),              # ln1 gamma/beta
        per_layer((Hp, NH * dkp)), per_layer((Hp, NH * dkp)),  # wq, wk
        per_layer((Hp, NH * dvp)), per_layer((NH * dvp, Hp)),  # wv, wo
        per_layer((1, Hp)), per_layer((1, Hp)),              # ln2 gamma/beta
        per_layer((Hp, 3 * Fp)), per_layer((1, Fp)),         # conv1 weight / bias (taps aligned)
        per_layer((Fp, 3 * Hp)), per_layer((1, Hp)),         # conv2 weight / bias
        const_spec((1, Hp)), const_spec((1, Hp)),            # final LN gamma/beta
    ]

    out = pl.pallas_call(
        partial(encoder_kernel, num_heads=NH, h_real=H, dk_real=dk),
        out_shape=jax.ShapeDtypeStruct((R, Hp), f32),
        grid_spec=pltpu.PrefetchScalarGridSpec(
            num_scalar_prefetch=0,
            grid=(L,),                                       # layer axis: per-layer weight streaming
            in_specs=in_specs,
            out_specs=pl.BlockSpec((R, Hp), lambda l: (0, 0)),
            scratch_shapes=[pltpu.VMEM((R, Hp), f32)],       # residual stream carried across layers
        ),
        compiler_params=pltpu.CompilerParams(
            dimension_semantics=("arbitrary",),
            vmem_limit_bytes=32 * 1024 * 1024,
        ),
    )(xf, bias, nf, nl, timing, wemb,
      ln1_g, ln1_b, wq, wk, wv, wo, ln2_g, ln2_b,
      wc1, bc1, wc2, bc2, lnf_g, lnf_b)

    return out[:, :H].reshape(B, S, H)


# -----------------------------------------------------------------------------
# Parameter / signal construction (deterministic, synthetic, logical layouts)
# -----------------------------------------------------------------------------
def gen_timing_signal(length, channels, min_timescale=1.0, max_timescale=1.0e4):
    position = jnp.arange(length, dtype=jnp.float32)
    num_timescales = channels // 2
    log_inc = math.log(float(max_timescale) / float(min_timescale)) / max(num_timescales - 1, 1)
    inv_timescales = min_timescale * jnp.exp(
        jnp.arange(num_timescales, dtype=jnp.float32) * -log_inc)
    scaled = position[:, None] * inv_timescales[None, :]
    signal = jnp.concatenate([jnp.sin(scaled), jnp.cos(scaled)], axis=1)
    if channels % 2:
        signal = jnp.pad(signal, ((0, 0), (0, channels % 2)))
    return signal.astype(jnp.float32)          # (length, channels)


def init_params(key, E, H, L, NH, DK, DV, F, S, max_length=64):
    assert DK % NH == 0 and DV % NH == 0
    ks = jax.random.split(key, 10)
    sc = 0.1
    return {
        'timing': gen_timing_signal(max_length, H)[:S],                       # (S, H)
        'wemb':   sc * jax.random.normal(ks[0], (E, H), jnp.float32),         # Linear, no bias
        # fused-head attention weights: (H, NH*d) / (NH*d, H)
        'wq':     sc * jax.random.normal(ks[1], (L, H, DK), jnp.float32),
        'wk':     sc * jax.random.normal(ks[2], (L, H, DK), jnp.float32),
        'wv':     sc * jax.random.normal(ks[3], (L, H, DV), jnp.float32),
        'wo':     sc * jax.random.normal(ks[4], (L, DV, H), jnp.float32),
        'ln1_g':  jnp.ones((L, 1, H), jnp.float32),
        'ln1_b':  jnp.zeros((L, 1, H), jnp.float32),
        'ln2_g':  jnp.ones((L, 1, H), jnp.float32),
        'ln2_b':  jnp.zeros((L, 1, H), jnp.float32),
        # fused-tap conv weights: (Cin, 3*Cout), tap order [t-1, t, t+1]
        'wc1':    sc * jax.random.normal(ks[5], (L, H, 3 * F), jnp.float32),
        'bc1':    sc * jax.random.normal(ks[6], (L, 1, F), jnp.float32),
        'wc2':    sc * jax.random.normal(ks[7], (L, F, 3 * H), jnp.float32),
        'bc2':    sc * jax.random.normal(ks[8], (L, 1, H), jnp.float32),
        'lnf_g':  jnp.ones((1, H), jnp.float32),
        'lnf_b':  jnp.zeros((1, H), jnp.float32),
    }


# -----------------------------------------------------------------------------
# Pure-JAX reference (same math, no Pallas) for validation
# -----------------------------------------------------------------------------
def encoder_reference(x, mask, p, num_heads):
    B, S, _ = x.shape
    L = p['wq'].shape[0]
    NH = num_heads
    dk = p['wq'].shape[2] // NH
    dv = p['wv'].shape[2] // NH
    F = p['bc1'].shape[2]
    H = p['wemb'].shape[1]

    def ln(v, g, b):
        mean = v.mean(-1, keepdims=True)
        var = ((v - mean) ** 2).sum(-1, keepdims=True) / (v.shape[-1] - 1)
        return g * (v - mean) / (jnp.sqrt(var) + 1e-6) + b

    def conv3(v, w, b, cout):
        a = v @ w
        a0, a1, a2 = a[..., :cout], a[..., cout:2 * cout], a[..., 2 * cout:]
        prev = jnp.pad(a0, ((0, 0), (1, 0), (0, 0)))[:, :-1]     # a0[t-1]
        nxt = jnp.pad(a2, ((0, 0), (0, 1), (0, 0)))[:, 1:]       # a2[t+1]
        return prev + a1 + nxt + b

    h = x @ p['wemb'] + p['timing'][None]
    for l in range(L):
        xn = ln(h, p['ln1_g'][l], p['ln1_b'][l])
        q = (xn @ p['wq'][l]).reshape(B, S, NH, dk) * (dk ** -0.5)
        k = (xn @ p['wk'][l]).reshape(B, S, NH, dk)
        v = (xn @ p['wv'][l]).reshape(B, S, NH, dv)
        lg = jnp.einsum('bqhd,bkhd->bhqk', q, k)
        lg = jnp.where(mask[:, None] > 0.5, -1e18, lg)
        w = jax.nn.softmax(lg, axis=-1)
        ctx = jnp.einsum('bhqk,bkhd->bqhd', w, v).reshape(B, S, NH * dv)
        h = h + ctx @ p['wo'][l]
        xn = ln(h, p['ln2_g'][l], p['ln2_b'][l])
        f = jax.nn.relu(conv3(xn, p['wc1'][l], p['bc1'][l], F))
        f = jax.nn.relu(conv3(f, p['wc2'][l], p['bc2'][l], H))
        h = h + f
    return ln(h, p['lnf_g'], p['lnf_b'])


# -----------------------------------------------------------------------------
if __name__ == "__main__":
    # small shapes consistent with the module:
    # batch=2, seq=8, embedding=32, hidden=32, layers=2, heads=2, key/value depth=32, filter=64
    B, S, E = 2, 8, 32
    H, L, NH, DK, DV, F = 32, 2, 2, 32, 32, 64

    key = jax.random.PRNGKey(0)
    k_in, k_par = jax.random.split(key)
    x = jax.random.normal(k_in, (B, S, E), jnp.float32)

    # padding mask: 1.0 where the key position is padding (as in data.eq(pad).unsqueeze(1))
    lengths = jnp.array([8, 6], jnp.int32)
    mask = (jnp.arange(S)[None, :] >= lengths[:, None]).astype(jnp.float32)[:, None, :]  # (B,1,S)

    params = init_params(k_par, E, H, L, NH, DK, DV, F, S)

    # TODO(synk): the `universal=True` / args.act (ACT) branch of Encoder.forward is not
    # implemented; this kernel covers the default stacked-layers path, dropouts at inference.
    y = encoder_forward(x, mask, params, NH)
    y = jax.block_until_ready(y)

    y_ref = encoder_reference(x, mask, params, NH)
    assert y.shape == (B, S, H)
    assert bool(jnp.all(jnp.isfinite(y)))
    max_err = float(jnp.max(jnp.abs(y - y_ref)))
    # exact reciprocal in LayerNorm; approx reciprocal kept only for the softmax denom
    assert max_err < 2e-2, f"kernel/reference mismatch: {max_err}"

    print("KERNEL_OK")
</pallas_src>

<mosaic_0001>
module attributes {stable_mosaic.version = 11 : i64} {
  func.func @encoder_kernel(%arg0: i32, %arg1: memref<16x128xf32, #tpu.memory_space<vmem>>, %arg2: memref<16x16xf32, #tpu.memory_space<vmem>>, %arg3: memref<16x1xf32, #tpu.memory_space<vmem>>, %arg4: memref<16x1xf32, #tpu.memory_space<vmem>>, %arg5: memref<16x128xf32, #tpu.memory_space<vmem>>, %arg6: memref<128x128xf32, #tpu.memory_space<vmem>>, %arg7: memref<1x1x128xf32, #tpu.memory_space<vmem>>, %arg8: memref<1x1x128xf32, #tpu.memory_space<vmem>>, %arg9: memref<1x128x256xf32, #tpu.memory_space<vmem>>, %arg10: memref<1x128x256xf32, #tpu.memory_space<vmem>>, %arg11: memref<1x128x256xf32, #tpu.memory_space<vmem>>, %arg12: memref<1x256x128xf32, #tpu.memory_space<vmem>>, %arg13: memref<1x1x128xf32, #tpu.memory_space<vmem>>, %arg14: memref<1x1x128xf32, #tpu.memory_space<vmem>>, %arg15: memref<1x128x384xf32, #tpu.memory_space<vmem>>, %arg16: memref<1x1x128xf32, #tpu.memory_space<vmem>>, %arg17: memref<1x128x384xf32, #tpu.memory_space<vmem>>, %arg18: memref<1x1x128xf32, #tpu.memory_space<vmem>>, %arg19: memref<1x128xf32, #tpu.memory_space<vmem>>, %arg20: memref<1x128xf32, #tpu.memory_space<vmem>>, %arg21: memref<16x128xf32, #tpu.memory_space<vmem>>, %arg22: memref<16x128xf32, #tpu.memory_space<vmem>>) attributes {dimension_semantics = [#tpu.dimension_semantics<arbitrary>], iteration_bounds = array<i64: 2>, scalar_prefetch = 0 : i64, scratch_operands = 1 : i64, tpu.core_type = #tpu.core_type<tc>, window_params = [{pipeline_mode = #tpu.pipeline_mode<synchronous>, transform_indices = @transform_0, window_bounds = array<i64: 16, 128>}, {pipeline_mode = #tpu.pipeline_mode<synchronous>, transform_indices = @transform_1, window_bounds = array<i64: 16, 16>}, {pipeline_mode = #tpu.pipeline_mode<synchronous>, transform_indices = @transform_2, window_bounds = array<i64: 16, 1>}, {pipeline_mode = #tpu.pipeline_mode<synchronous>, transform_indices = @transform_3, window_bounds = array<i64: 16, 1>}, {pipeline_mode = #tpu.pipeline_mode<synchronous>, transform_indices = @transform_4, window_bounds = array<i64: 16, 128>}, {pipeline_mode = #tpu.pipeline_mode<synchronous>, transform_indices = @transform_5, window_bounds = array<i64: 128, 128>}, {transform_indices = @transform_6, window_bounds = array<i64: 1, 1, 128>}, {transform_indices = @transform_7, window_bounds = array<i64: 1, 1, 128>}, {transform_indices = @transform_8, window_bounds = array<i64: 1, 128, 256>}, {transform_indices = @transform_9, window_bounds = array<i64: 1, 128, 256>}, {transform_indices = @transform_10, window_bounds = array<i64: 1, 128, 256>}, {transform_indices = @transform_11, window_bounds = array<i64: 1, 256, 128>}, {transform_indices = @transform_12, window_bounds = array<i64: 1, 1, 128>}, {transform_indices = @transform_13, window_bounds = array<i64: 1, 1, 128>}, {transform_indices = @transform_14, window_bounds = array<i64: 1, 128, 384>}, {transform_indices = @transform_15, window_bounds = array<i64: 1, 1, 128>}, {transform_indices = @transform_16, window_bounds = array<i64: 1, 128, 384>}, {transform_indices = @transform_17, window_bounds = array<i64: 1, 1, 128>}, {pipeline_mode = #tpu.pipeline_mode<synchronous>, transform_indices = @transform_18, window_bounds = array<i64: 1, 128>}, {pipeline_mode = #tpu.pipeline_mode<synchronous>, transform_indices = @transform_19, window_bounds = array<i64: 1, 128>}, {pipeline_mode = #tpu.pipeline_mode<synchronous>, transform_indices = @transform_20, window_bounds = array<i64: 16, 128>}]} {
    %0 = tpu.iota {dimensions = array<i32: 1>} : vector<1x128xi32>
    %c32_i32 = arith.constant 32 : i32
    %1 = vector.broadcast %c32_i32 : i32 to vector<1x128xi32>
    %2 = arith.cmpi slt, %0, %1 : vector<1x128xi32>
    %3 = arith.extui %2 : vector<1x128xi1> to vector<1x128xi32>
    %4 = arith.sitofp %3 : vector<1x128xi32> to vector<1x128xf32>
    %c0 = arith.constant 0 : index
    %c0_0 = arith.constant 0 : index
    %5 = vector.load %arg3[%c0, %c0_0] : memref<16x1xf32, #tpu.memory_space<vmem>>, vector<16x1xf32>
    %c0_1 = arith.constant 0 : index
    %c0_2 = arith.constant 0 : index
    %6 = vector.load %arg4[%c0_1, %c0_2] : memref<16x1xf32, #tpu.memory_space<vmem>>, vector<16x1xf32>
    %c0_i32 = arith.constant 0 : i32
    %7 = arith.cmpi eq, %arg0, %c0_i32 : i32
    %8 = arith.extui %7 : i1 to i32
    %c0_i32_3 = arith.constant 0 : i32
    %9 = arith.cmpi ne, %8, %c0_i32_3 : i32
    scf.if %9 {
      %c0_80 = arith.constant 0 : index
      %c0_81 = arith.constant 0 : index
      %166 = vector.load %arg1[%c0_80, %c0_81] : memref<16x128xf32, #tpu.memory_space<vmem>>, vector<16x128xf32>
      %c0_82 = arith.constant 0 : index
      %c0_83 = arith.constant 0 : index
      %167 = vector.load %arg6[%c0_82, %c0_83] : memref<128x128xf32, #tpu.memory_space<vmem>>, vector<128x128xf32>
      %cst_84 = arith.constant dense<0.000000e+00> : vector<16x128xf32>
      %168 = tpu.matmul %166, %167, %cst_84 {dimension_numbers = #tpu.dot_dimension_numbers<[1], [0], [0], [1], [0, 0, 1, 1], [], []>} : vector<16x128xf32>, vector<128x128xf32>, vector<16x128xf32> -> vector<16x128xf32>
      %c0_85 = arith.constant 0 : index
      %c0_86 = arith.constant 0 : index
      %169 = vector.load %arg5[%c0_85, %c0_86] : memref<16x128xf32, #tpu.memory_space<vmem>>, vector<16x128xf32>
      %170 = arith.addf %168, %169 : vector<16x128xf32>
      %c0_87 = arith.constant 0 : index
      %c0_88 = arith.constant 0 : index
      %171 = vector.load %arg22[%c0_87, %c0_88] : memref<16x128xf32, #tpu.memory_space<vmem>>, vector<16x128xf32>
      tpu.vector_store %arg22[%c0_87, %c0_88], %170 {strides = array<i32>} : memref<16x128xf32, #tpu.memory_space<vmem>>, vector<16x128xf32>,
    } else {
    }
    %c0_4 = arith.constant 0 : index
    %c0_5 = arith.constant 0 : index
    %10 = vector.load %arg22[%c0_4, %c0_5] : memref<16x128xf32, #tpu.memory_space<vmem>>, vector<16x128xf32>
    %c0_6 = arith.constant 0 : index
    %c0_7 = arith.constant 0 : index
    %11 = vector.load %arg2[%c0_6, %c0_7] : memref<16x16xf32, #tpu.memory_space<vmem>>, vector<16x16xf32>
    %c0_8 = arith.constant 0 : index
    %c0_9 = arith.constant 0 : index
    %c0_10 = arith.constant 0 : index
    %12 = vector.load %arg7[%c0_8, %c0_9, %c0_10] : memref<1x1x128xf32, #tpu.memory_space<vmem>>, vector<1x1x128xf32>
    %13 = vector.shape_cast %12 : vector<1x1x128xf32> to vector<1x128xf32>
    %c0_11 = arith.constant 0 : index
    %c0_12 = arith.constant 0 : index
    %c0_13 = arith.constant 0 : index
    %14 = vector.load %arg8[%c0_11, %c0_12, %c0_13] : memref<1x1x128xf32, #tpu.memory_space<vmem>>, vector<1x1x128xf32>
    %15 = vector.shape_cast %14 : vector<1x1x128xf32> to vector<1x128xf32>
    %cst = arith.constant dense<0.000000e+00> : vector<16xf32>
    %16 = vector.multi_reduction <add>, %10, %cst [1] : vector<16x128xf32> to vector<16xf32>
    %17 = vector.shape_cast %16 : vector<16xf32> to vector<16x1xf32>
    %cst_14 = arith.constant 3.125000e-02 : f32
    %18 = vector.broadcast %cst_14 : f32 to vector<16x1xf32>
    %19 = arith.mulf %17, %18 : vector<16x1xf32>
    %20 = vector.broadcast %19 : vector<16x1xf32> to vector<16x128xf32>
    %21 = arith.subf %10, %20 : vector<16x128xf32>
    %22 = vector.broadcast %4 : vector<1x128xf32> to vector<16x128xf32>
    %23 = arith.mulf %21, %22 : vector<16x128xf32>
    %24 = arith.mulf %23, %23 : vector<16x128xf32>
    %cst_15 = arith.constant dense<0.000000e+00> : vector<16xf32>
    %25 = vector.multi_reduction <add>, %24, %cst_15 [1] : vector<16x128xf32> to vector<16xf32>
    %26 = vector.shape_cast %25 : vector<16xf32> to vector<16x1xf32>
    %cst_16 = arith.constant 0.0322580636 : f32
    %27 = vector.broadcast %cst_16 : f32 to vector<16x1xf32>
    %28 = arith.mulf %26, %27 : vector<16x1xf32>
    %29 = math.sqrt %28 : vector<16x1xf32>
    %cst_17 = arith.constant 9.99999997E-7 : f32
    %30 = vector.broadcast %cst_17 : f32 to vector<16x1xf32>
    %31 = arith.addf %29, %30 : vector<16x1xf32>
    %cst_18 = arith.constant 1.000000e+00 : f32
    %32 = vector.broadcast %cst_18 : f32 to vector<16x1xf32>
    %33 = arith.divf %32, %31 : vector<16x1xf32>
    %34 = vector.broadcast %13 : vector<1x128xf32> to vector<16x128xf32>
    %35 = arith.mulf %34, %23 : vector<16x128xf32>
    %36 = vector.broadcast %33 : vector<16x1xf32> to vector<16x128xf32>
    %37 = arith.mulf %35, %36 : vector<16x128xf32>
    %38 = vector.broadcast %15 : vector<1x128xf32> to vector<16x128xf32>
    %39 = arith.addf %37, %38 : vector<16x128xf32>
    %c0_19 = arith.constant 0 : index
    %c0_20 = arith.constant 0 : index
    %c0_21 = arith.constant 0 : index
    %40 = vector.load %arg9[%c0_19, %c0_20, %c0_21] : memref<1x128x256xf32, #tpu.memory_space<vmem>>, vector<1x128x256xf32>
    %41 = vector.shape_cast %40 : vector<1x128x256xf32> to vector<128x256xf32>
    %cst_22 = arith.constant dense<0.000000e+00> : vector<16x256xf32>
    %42 = tpu.matmul %39, %41, %cst_22 {dimension_numbers = #tpu.dot_dimension_numbers<[1], [0], [0], [1], [0, 0, 1, 1], [], []>} : vector<16x128xf32>, vector<128x256xf32>, vector<16x256xf32> -> vector<16x256xf32>
    %cst_23 = arith.constant 2.500000e-01 : f32
    %43 = vector.broadcast %cst_23 : f32 to vector<16x256xf32>
    %44 = arith.mulf %42, %43 : vector<16x256xf32>
    %c0_24 = arith.constant 0 : index
    %c0_25 = arith.constant 0 : index
    %c0_26 = arith.constant 0 : index
    %45 = vector.load %arg10[%c0_24, %c0_25, %c0_26] : memref<1x128x256xf32, #tpu.memory_space<vmem>>, vector<1x128x256xf32>
    %46 = vector.shape_cast %45 : vector<1x128x256xf32> to vector<128x256xf32>
    %cst_27 = arith.constant dense<0.000000e+00> : vector<16x256xf32>
    %47 = tpu.matmul %39, %46, %cst_27 {dimension_numbers = #tpu.dot_dimension_numbers<[1], [0], [0], [1], [0, 0, 1, 1], [], []>} : vector<16x128xf32>, vector<128x256xf32>, vector<16x256xf32> -> vector<16x256xf32>
    %c0_28 = arith.constant 0 : index
    %c0_29 = arith.constant 0 : index
    %c0_30 = arith.constant 0 : index
    %48 = vector.load %arg11[%c0_28, %c0_29, %c0_30] : memref<1x128x256xf32, #tpu.memory_space<vmem>>, vector<1x128x256xf32>
    %49 = vector.shape_cast %48 : vector<1x128x256xf32> to vector<128x256xf32>
    %cst_31 = arith.constant dense<0.000000e+00> : vector<16x256xf32>
    %50 = tpu.matmul %39, %49, %cst_31 {dimension_numbers = #tpu.dot_dimension_numbers<[1], [0], [0], [1], [0, 0, 1, 1], [], []>} : vector<16x128xf32>, vector<128x256xf32>, vector<16x256xf32> -> vector<16x256xf32>
    %c0_32 = arith.constant 0 : index
    %c0_33 = arith.constant 0 : index
    %c0_34 = arith.constant 0 : index
    %51 = vector.load %arg12[%c0_32, %c0_33, %c0_34] : memref<1x256x128xf32, #tpu.memory_space<vmem>>, vector<1x256x128xf32>
    %52 = vector.shape_cast %51 : vector<1x256x128xf32> to vector<256x128xf32>
    %cst_35 = arith.constant 0.000000e+00 : f32
    %53 = vector.broadcast %cst_35 : f32 to vector<16x128xf32>
    %54 = vector.extract_strided_slice %44 {offsets = [0, 0], sizes = [16, 128], strides = [1, 1]} : vector<16x256xf32> to vector<16x128xf32>
    %55 = vector.extract_strided_slice %47 {offsets = [0, 0], sizes = [16, 128], strides = [1, 1]} : vector<16x256xf32> to vector<16x128xf32>
    %56 = vector.extract_strided_slice %50 {offsets = [0, 0], sizes = [16, 128], strides = [1, 1]} : vector<16x256xf32> to vector<16x128xf32>
    "tpu.trace_start"() <{level = 10 : i32, message = "qd,kd->qk"}> : () -> ()
    %cst_36 = arith.constant dense<0.000000e+00> : vector<16x16xf32>
    %57 = tpu.matmul %54, %55, %cst_36 {dimension_numbers = #tpu.dot_dimension_numbers<[1], [1], [0], [0], [0, 0, 1, 0], [], []>} : vector<16x128xf32>, vector<16x128xf32>, vector<16x16xf32> -> vector<16x16xf32>
    "tpu.trace_stop"() : () -> ()
    %58 = arith.addf %57, %11 : vector<16x16xf32>
    %cst_37 = arith.constant dense<0xFF800000> : vector<16xf32>
    %59 = vector.multi_reduction <maximumf>, %58, %cst_37 [1] : vector<16x16xf32> to vector<16xf32>
    %60 = vector.shape_cast %59 : vector<16xf32> to vector<16x1xf32>
    %61 = vector.broadcast %60 : vector<16x1xf32> to vector<16x16xf32>
    %62 = arith.subf %58, %61 : vector<16x16xf32>
    %63 = math.exp %62 : vector<16x16xf32>
    %cst_38 = arith.constant dense<0.000000e+00> : vector<16xf32>
    %64 = vector.multi_reduction <add>, %63, %cst_38 [1] : vector<16x16xf32> to vector<16xf32>
    %65 = vector.shape_cast %64 : vector<16xf32> to vector<16x1xf32>
    %66 = tpu.reciprocal %65 {approx = true} : vector<16x1xf32> -> vector<16x1xf32>
    %67 = vector.broadcast %66 : vector<16x1xf32> to vector<16x16xf32>
    %68 = arith.mulf %63, %67 : vector<16x16xf32>
    %cst_39 = arith.constant dense<0.000000e+00> : vector<16x128xf32>
    %69 = tpu.matmul %68, %56, %cst_39 {dimension_numbers = #tpu.dot_dimension_numbers<[1], [0], [0], [1], [0, 0, 1, 1], [], []>} : vector<16x16xf32>, vector<16x128xf32>, vector<16x128xf32> -> vector<16x128xf32>
    %70 = vector.extract_strided_slice %52 {offsets = [0, 0], sizes = [128, 128], strides = [1, 1]} : vector<256x128xf32> to vector<128x128xf32>
    %cst_40 = arith.constant dense<0.000000e+00> : vector<16x128xf32>
    %71 = tpu.matmul %69, %70, %cst_40 {dimension_numbers = #tpu.dot_dimension_numbers<[1], [0], [0], [1], [0, 0, 1, 1], [], []>} : vector<16x128xf32>, vector<128x128xf32>, vector<16x128xf32> -> vector<16x128xf32>
    %72 = arith.addf %53, %71 : vector<16x128xf32>
    %73 = vector.extract_strided_slice %44 {offsets = [0, 128], sizes = [16, 128], strides = [1, 1]} : vector<16x256xf32> to vector<16x128xf32>
    %74 = vector.extract_strided_slice %47 {offsets = [0, 128], sizes = [16, 128], strides = [1, 1]} : vector<16x256xf32> to vector<16x128xf32>
    %75 = vector.extract_strided_slice %50 {offsets = [0, 128], sizes = [16, 128], strides = [1, 1]} : vector<16x256xf32> to vector<16x128xf32>
    "tpu.trace_start"() <{level = 10 : i32, message = "qd,kd->qk"}> : () -> ()
    %cst_41 = arith.constant dense<0.000000e+00> : vector<16x16xf32>
    %76 = tpu.matmul %73, %74, %cst_41 {dimension_numbers = #tpu.dot_dimension_numbers<[1], [1], [0], [0], [0, 0, 1, 0], [], []>} : vector<16x128xf32>, vector<16x128xf32>, vector<16x16xf32> -> vector<16x16xf32>
    "tpu.trace_stop"() : () -> ()
    %77 = arith.addf %76, %11 : vector<16x16xf32>
    %cst_42 = arith.constant dense<0xFF800000> : vector<16xf32>
    %78 = vector.multi_reduction <maximumf>, %77, %cst_42 [1] : vector<16x16xf32> to vector<16xf32>
    %79 = vector.shape_cast %78 : vector<16xf32> to vector<16x1xf32>
    %80 = vector.broadcast %79 : vector<16x1xf32> to vector<16x16xf32>
    %81 = arith.subf %77, %80 : vector<16x16xf32>
    %82 = math.exp %81 : vector<16x16xf32>
    %cst_43 = arith.constant dense<0.000000e+00> : vector<16xf32>
    %83 = vector.multi_reduction <add>, %82, %cst_43 [1] : vector<16x16xf32> to vector<16xf32>
    %84 = vector.shape_cast %83 : vector<16xf32> to vector<16x1xf32>
    %85 = tpu.reciprocal %84 {approx = true} : vector<16x1xf32> -> vector<16x1xf32>
    %86 = vector.broadcast %85 : vector<16x1xf32> to vector<16x16xf32>
    %87 = arith.mulf %82, %86 : vector<16x16xf32>
    %cst_44 = arith.constant dense<0.000000e+00> : vector<16x128xf32>
    %88 = tpu.matmul %87, %75, %cst_44 {dimension_numbers = #tpu.dot_dimension_numbers<[1], [0], [0], [1], [0, 0, 1, 1], [], []>} : vector<16x16xf32>, vector<16x128xf32>, vector<16x128xf32> -> vector<16x128xf32>
    %89 = vector.extract_strided_slice %52 {offsets = [128, 0], sizes = [128, 128], strides = [1, 1]} : vector<256x128xf32> to vector<128x128xf32>
    %cst_45 = arith.constant dense<0.000000e+00> : vector<16x128xf32>
    %90 = tpu.matmul %88, %89, %cst_45 {dimension_numbers = #tpu.dot_dimension_numbers<[1], [0], [0], [1], [0, 0, 1, 1], [], []>} : vector<16x128xf32>, vector<128x128xf32>, vector<16x128xf32> -> vector<16x128xf32>
    %91 = arith.addf %72, %90 : vector<16x128xf32>
    %92 = arith.addf %10, %91 : vector<16x128xf32>
    %c0_46 = arith.constant 0 : index
    %c0_47 = arith.constant 0 : index
    %c0_48 = arith.constant 0 : index
    %93 = vector.load %arg13[%c0_46, %c0_47, %c0_48] : memref<1x1x128xf32, #tpu.memory_space<vmem>>, vector<1x1x128xf32>
    %94 = vector.shape_cast %93 : vector<1x1x128xf32> to vector<1x128xf32>
    %c0_49 = arith.constant 0 : index
    %c0_50 = arith.constant 0 : index
    %c0_51 = arith.constant 0 : index
    %95 = vector.load %arg14[%c0_49, %c0_50, %c0_51] : memref<1x1x128xf32, #tpu.memory_space<vmem>>, vector<1x1x128xf32>
    %96 = vector.shape_cast %95 : vector<1x1x128xf32> to vector<1x128xf32>
    %cst_52 = arith.constant dense<0.000000e+00> : vector<16xf32>
    %97 = vector.multi_reduction <add>, %92, %cst_52 [1] : vector<16x128xf32> to vector<16xf32>
    %98 = vector.shape_cast %97 : vector<16xf32> to vector<16x1xf32>
    %cst_53 = arith.constant 3.125000e-02 : f32
    %99 = vector.broadcast %cst_53 : f32 to vector<16x1xf32>
    %100 = arith.mulf %98, %99 : vector<16x1xf32>
    %101 = vector.broadcast %100 : vector<16x1xf32> to vector<16x128xf32>
    %102 = arith.subf %92, %101 : vector<16x128xf32>
    %103 = vector.broadcast %4 : vector<1x128xf32> to vector<16x128xf32>
    %104 = arith.mulf %102, %103 : vector<16x128xf32>
    %105 = arith.mulf %104, %104 : vector<16x128xf32>
    %cst_54 = arith.constant dense<0.000000e+00> : vector<16xf32>
    %106 = vector.multi_reduction <add>, %105, %cst_54 [1] : vector<16x128xf32> to vector<16xf32>
    %107 = vector.shape_cast %106 : vector<16xf32> to vector<16x1xf32>
    %cst_55 = arith.constant 0.0322580636 : f32
    %108 = vector.broadcast %cst_55 : f32 to vector<16x1xf32>
    %109 = arith.mulf %107, %108 : vector<16x1xf32>
    %110 = math.sqrt %109 : vector<16x1xf32>
    %cst_56 = arith.constant 9.99999997E-7 : f32
    %111 = vector.broadcast %cst_56 : f32 to vector<16x1xf32>
    %112 = arith.addf %110, %111 : vector<16x1xf32>
    %cst_57 = arith.constant 1.000000e+00 : f32
    %113 = vector.broadcast %cst_57 : f32 to vector<16x1xf32>
    %114 = arith.divf %113, %112 : vector<16x1xf32>
    %115 = vector.broadcast %94 : vector<1x128xf32> to vector<16x128xf32>
    %116 = arith.mulf %115, %104 : vector<16x128xf32>
    %117 = vector.broadcast %114 : vector<16x1xf32> to vector<16x128xf32>
    %118 = arith.mulf %116, %117 : vector<16x128xf32>
    %119 = vector.broadcast %96 : vector<1x128xf32> to vector<16x128xf32>
    %120 = arith.addf %118, %119 : vector<16x128xf32>
    %c0_58 = arith.constant 0 : index
    %c0_59 = arith.constant 0 : index
    %c0_60 = arith.constant 0 : index
    %121 = vector.load %arg15[%c0_58, %c0_59, %c0_60] : memref<1x128x384xf32, #tpu.memory_space<vmem>>, vector<1x128x384xf32>
    %122 = vector.shape_cast %121 : vector<1x128x384xf32> to vector<128x384xf32>
    %c0_61 = arith.constant 0 : index
    %c0_62 = arith.constant 0 : index
    %c0_63 = arith.constant 0 : index
    %123 = vector.load %arg16[%c0_61, %c0_62, %c0_63] : memref<1x1x128xf32, #tpu.memory_space<vmem>>, vector<1x1x128xf32>
    %124 = vector.shape_cast %123 : vector<1x1x128xf32> to vector<1x128xf32>
    %cst_64 = arith.constant dense<0.000000e+00> : vector<16x384xf32>
    %125 = tpu.matmul %120, %122, %cst_64 {dimension_numbers = #tpu.dot_dimension_numbers<[1], [0], [0], [1], [0, 0, 1, 1], [], []>} : vector<16x128xf32>, vector<128x384xf32>, vector<16x384xf32> -> vector<16x384xf32>
    %126 = vector.extract_strided_slice %125 {offsets = [0, 0], sizes = [16, 128], strides = [1, 1]} : vector<16x384xf32> to vector<16x128xf32>
    %c1_i32 = arith.constant 1 : i32
    %127 = tpu.dynamic_rotate %126 by %c1_i32 dim 0 : vector<16x128xf32>, i32 -> vector<16x128xf32>
    %128 = vector.broadcast %5 : vector<16x1xf32> to vector<16x128xf32>
    %129 = arith.mulf %127, %128 : vector<16x128xf32>
    %130 = vector.extract_strided_slice %125 {offsets = [0, 256], sizes = [16, 128], strides = [1, 1]} : vector<16x384xf32> to vector<16x128xf32>
    %c15_i32 = arith.constant 15 : i32
    %131 = tpu.dynamic_rotate %130 by %c15_i32 dim 0 : vector<16x128xf32>, i32 -> vector<16x128xf32>
    %132 = vector.broadcast %6 : vector<16x1xf32> to vector<16x128xf32>
    %133 = arith.mulf %131, %132 : vector<16x128xf32>
    %134 = vector.extract_strided_slice %125 {offsets = [0, 128], sizes = [16, 128], strides = [1, 1]} : vector<16x384xf32> to vector<16x128xf32>
    %135 = arith.addf %129, %134 : vector<16x128xf32>
    %136 = arith.addf %135, %133 : vector<16x128xf32>
    %137 = vector.broadcast %124 : vector<1x128xf32> to vector<16x128xf32>
    %138 = arith.addf %136, %137 : vector<16x128xf32>
    %cst_65 = arith.constant 0.000000e+00 : f32
    %139 = vector.broadcast %cst_65 : f32 to vector<16x128xf32>
    %140 = arith.maximumf %138, %139 : vector<16x128xf32>
    %c0_66 = arith.constant 0 : index
    %c0_67 = arith.constant 0 : index
    %c0_68 = arith.constant 0 : index
    %141 = vector.load %arg17[%c0_66, %c0_67, %c0_68] : memref<1x128x384xf32, #tpu.memory_space<vmem>>, vector<1x128x384xf32>
    %142 = vector.shape_cast %141 : vector<1x128x384xf32> to vector<128x384xf32>
    %c0_69 = arith.constant 0 : index
    %c0_70 = arith.constant 0 : index
    %c0_71 = arith.constant 0 : index
    %143 = vector.load %arg18[%c0_69, %c0_70, %c0_71] : memref<1x1x128xf32, #tpu.memory_space<vmem>>, vector<1x1x128xf32>
    %144 = vector.shape_cast %143 : vector<1x1x128xf32> to vector<1x128xf32>
    %cst_72 = arith.constant dense<0.000000e+00> : vector<16x384xf32>
    %145 = tpu.matmul %140, %142, %cst_72 {dimension_numbers = #tpu.dot_dimension_numbers<[1], [0], [0], [1], [0, 0, 1, 1], [], []>} : vector<16x128xf32>, vector<128x384xf32>, vector<16x384xf32> -> vector<16x384xf32>
    %146 = vector.extract_strided_slice %145 {offsets = [0, 0], sizes = [16, 128], strides = [1, 1]} : vector<16x384xf32> to vector<16x128xf32>
    %c1_i32_73 = arith.constant 1 : i32
    %147 = tpu.dynamic_rotate %146 by %c1_i32_73 dim 0 : vector<16x128xf32>, i32 -> vector<16x128xf32>
    %148 = vector.broadcast %5 : vector<16x1xf32> to vector<16x128xf32>
    %149 = arith.mulf %147, %148 : vector<16x128xf32>
    %150 = vector.extract_strided_slice %145 {offsets = [0, 256], sizes = [16, 128], strides = [1, 1]} : vector<16x384xf32> to vector<16x128xf32>
    %c15_i32_74 = arith.constant 15 : i32
    %151 = tpu.dynamic_rotate %150 by %c15_i32_74 dim 0 : vector<16x128xf32>, i32 -> vector<16x128xf32>
    %152 = vector.broadcast %6 : vector<16x1xf32> to vector<16x128xf32>
    %153 = arith.mulf %151, %152 : vector<16x128xf32>
    %154 = vector.extract_strided_slice %145 {offsets = [0, 128], sizes = [16, 128], strides = [1, 1]} : vector<16x384xf32> to vector<16x128xf32>
    %155 = arith.addf %149, %154 : vector<16x128xf32>
    %156 = arith.addf %155, %153 : vector<16x128xf32>
    %157 = vector.broadcast %144 : vector<1x128xf32> to vector<16x128xf32>
    %158 = arith.addf %156, %157 : vector<16x128xf32>
    %cst_75 = arith.constant 0.000000e+00 : f32
    %159 = vector.broadcast %cst_75 : f32 to vector<16x128xf32>
    %160 = arith.maximumf %158, %159 : vector<16x128xf32>
    %161 = arith.addf %92, %160 : vector<16x128xf32>
    %c0_76 = arith.constant 0 : index
    %c0_77 = arith.constant 0 : index
    %162 = vector.load %arg22[%c0_76, %c0_77] : memref<16x128xf32, #tpu.memory_space<vmem>>, vector<16x128xf32>
    tpu.vector_store %arg22[%c0_76, %c0_77], %161 {strides = array<i32>} : memref<16x128xf32, #tpu.memory_space<vmem>>, vector<16x128xf32>,
    %c1_i32_78 = arith.constant 1 : i32
    %163 = arith.cmpi eq, %arg0, %c1_i32_78 : i32
    %164 = arith.extui %163 : i1 to i32
    %c0_i32_79 = arith.constant 0 : i32
    %165 = arith.cmpi ne, %164, %c0_i32_79 : i32
    scf.if %165 {
      %c0_80 = arith.constant 0 : index
      %c0_81 = arith.constant 0 : index
      %166 = vector.load %arg19[%c0_80, %c0_81] : memref<1x128xf32, #tpu.memory_space<vmem>>, vector<1x128xf32>
      %c0_82 = arith.constant 0 : index
      %c0_83 = arith.constant 0 : index
      %167 = vector.load %arg20[%c0_82, %c0_83] : memref<1x128xf32, #tpu.memory_space<vmem>>, vector<1x128xf32>
      %cst_84 = arith.constant dense<0.000000e+00> : vector<16xf32>
      %168 = vector.multi_reduction <add>, %161, %cst_84 [1] : vector<16x128xf32> to vector<16xf32>
      %169 = vector.shape_cast %168 : vector<16xf32> to vector<16x1xf32>
      %cst_85 = arith.constant 3.125000e-02 : f32
      %170 = vector.broadcast %cst_85 : f32 to vector<16x1xf32>
      %171 = arith.mulf %169, %170 : vector<16x1xf32>
      %172 = vector.broadcast %171 : vector<16x1xf32> to vector<16x128xf32>
      %173 = arith.subf %161, %172 : vector<16x128xf32>
      %174 = vector.broadcast %4 : vector<1x128xf32> to vector<16x128xf32>
      %175 = arith.mulf %173, %174 : vector<16x128xf32>
      %176 = arith.mulf %175, %175 : vector<16x128xf32>
      %cst_86 = arith.constant dense<0.000000e+00> : vector<16xf32>
      %177 = vector.multi_reduction <add>, %176, %cst_86 [1] : vector<16x128xf32> to vector<16xf32>
      %178 = vector.shape_cast %177 : vector<16xf32> to vector<16x1xf32>
      %cst_87 = arith.constant 0.0322580636 : f32
      %179 = vector.broadcast %cst_87 : f32 to vector<16x1xf32>
      %180 = arith.mulf %178, %179 : vector<16x1xf32>
      %181 = math.sqrt %180 : vector<16x1xf32>
      %cst_88 = arith.constant 9.99999997E-7 : f32
      %182 = vector.broadcast %cst_88 : f32 to vector<16x1xf32>
      %183 = arith.addf %181, %182 : vector<16x1xf32>
      %cst_89 = arith.constant 1.000000e+00 : f32
      %184 = vector.broadcast %cst_89 : f32 to vector<16x1xf32>
      %185 = arith.divf %184, %183 : vector<16x1xf32>
      %186 = vector.broadcast %166 : vector<1x128xf32> to vector<16x128xf32>
      %187 = arith.mulf %186, %175 : vector<16x128xf32>
      %188 = vector.broadcast %185 : vector<16x1xf32> to vector<16x128xf32>
      %189 = arith.mulf %187, %188 : vector<16x128xf32>
      %190 = vector.broadcast %167 : vector<1x128xf32> to vector<16x128xf32>
      %191 = arith.addf %189, %190 : vector<16x128xf32>
      %c0_90 = arith.constant 0 : index
      %c0_91 = arith.constant 0 : index
      %192 = vector.load %arg21[%c0_90, %c0_91] : memref<16x128xf32, #tpu.memory_space<vmem>>, vector<16x128xf32>
      tpu.vector_store %arg21[%c0_90, %c0_91], %191 {strides = array<i32>} : memref<16x128xf32, #tpu.memory_space<vmem>>, vector<16x128xf32>,
    } else {
    }
    return
  }
  func.func @transform_0(%arg0: i32) -> (i32, i32) {
    %c0_i32 = arith.constant 0 : i32
    %c0_i32_0 = arith.constant 0 : i32
    %c0_i32_1 = arith.constant 0 : i32
    return %c0_i32, %c0_i32_0 : i32, i32
  }
  func.func @transform_1(%arg0: i32) -> (i32, i32) {
    %c0_i32 = arith.constant 0 : i32
    %c0_i32_0 = arith.constant 0 : i32
    %c0_i32_1 = arith.constant 0 : i32
    return %c0_i32, %c0_i32_0 : i32, i32
  }
  func.func @transform_2(%arg0: i32) -> (i32, i32) {
    %c0_i32 = arith.constant 0 : i32
    %c0_i32_0 = arith.constant 0 : i32
    %c0_i32_1 = arith.constant 0 : i32
    return %c0_i32, %c0_i32_0 : i32, i32
  }
  func.func @transform_3(%arg0: i32) -> (i32, i32) {
    %c0_i32 = arith.constant 0 : i32
    %c0_i32_0 = arith.constant 0 : i32
    %c0_i32_1 = arith.constant 0 : i32
    return %c0_i32, %c0_i32_0 : i32, i32
  }
  func.func @transform_4(%arg0: i32) -> (i32, i32) {
    %c0_i32 = arith.constant 0 : i32
    %c0_i32_0 = arith.constant 0 : i32
    %c0_i32_1 = arith.constant 0 : i32
    return %c0_i32, %c0_i32_0 : i32, i32
  }
  func.func @transform_5(%arg0: i32) -> (i32, i32) {
    %c0_i32 = arith.constant 0 : i32
    %c0_i32_0 = arith.constant 0 : i32
    %c0_i32_1 = arith.constant 0 : i32
    return %c0_i32, %c0_i32_0 : i32, i32
  }
  func.func @transform_6(%arg0: i32) -> (i32, i32, i32) {
    %c0_i32 = arith.constant 0 : i32
    %c0_i32_0 = arith.constant 0 : i32
    %c0_i32_1 = arith.constant 0 : i32
    return %arg0, %c0_i32, %c0_i32_0 : i32, i32, i32
  }
  func.func @transform_7(%arg0: i32) -> (i32, i32, i32) {
    %c0_i32 = arith.constant 0 : i32
    %c0_i32_0 = arith.constant 0 : i32
    %c0_i32_1 = arith.constant 0 : i32
    return %arg0, %c0_i32, %c0_i32_0 : i32, i32, i32
  }
  func.func @transform_8(%arg0: i32) -> (i32, i32, i32) {
    %c0_i32 = arith.constant 0 : i32
    %c0_i32_0 = arith.constant 0 : i32
    %c0_i32_1 = arith.constant 0 : i32
    return %arg0, %c0_i32, %c0_i32_0 : i32, i32, i32
  }
  func.func @transform_9(%arg0: i32) -> (i32, i32, i32) {
    %c0_i32 = arith.constant 0 : i32
    %c0_i32_0 = arith.constant 0 : i32
    %c0_i32_1 = arith.constant 0 : i32
    return %arg0, %c0_i32, %c0_i32_0 : i32, i32, i32
  }
  func.func @transform_10(%arg0: i32) -> (i32, i32, i32) {
    %c0_i32 = arith.constant 0 : i32
    %c0_i32_0 = arith.constant 0 : i32
    %c0_i32_1 = arith.constant 0 : i32
    return %arg0, %c0_i32, %c0_i32_0 : i32, i32, i32
  }
  func.func @transform_11(%arg0: i32) -> (i32, i32, i32) {
    %c0_i32 = arith.constant 0 : i32
    %c0_i32_0 = arith.constant 0 : i32
    %c0_i32_1 = arith.constant 0 : i32
    return %arg0, %c0_i32, %c0_i32_0 : i32, i32, i32
  }
  func.func @transform_12(%arg0: i32) -> (i32, i32, i32) {
    %c0_i32 = arith.constant 0 : i32
    %c0_i32_0 = arith.constant 0 : i32
    %c0_i32_1 = arith.constant 0 : i32
    return %arg0, %c0_i32, %c0_i32_0 : i32, i32, i32
  }
  func.func @transform_13(%arg0: i32) -> (i32, i32, i32) {
    %c0_i32 = arith.constant 0 : i32
    %c0_i32_0 = arith.constant 0 : i32
    %c0_i32_1 = arith.constant 0 : i32
    return %arg0, %c0_i32, %c0_i32_0 : i32, i32, i32
  }
  func.func @transform_14(%arg0: i32) -> (i32, i32, i32) {
    %c0_i32 = arith.constant 0 : i32
    %c0_i32_0 = arith.constant 0 : i32
    %c0_i32_1 = arith.constant 0 : i32
    return %arg0, %c0_i32, %c0_i32_0 : i32, i32, i32
  }
  func.func @transform_15(%arg0: i32) -> (i32, i32, i32) {
    %c0_i32 = arith.constant 0 : i32
    %c0_i32_0 = arith.constant 0 : i32
    %c0_i32_1 = arith.constant 0 : i32
    return %arg0, %c0_i32, %c0_i32_0 : i32, i32, i32
  }
  func.func @transform_16(%arg0: i32) -> (i32, i32, i32) {
    %c0_i32 = arith.constant 0 : i32
    %c0_i32_0 = arith.constant 0 : i32
    %c0_i32_1 = arith.constant 0 : i32
    return %arg0, %c0_i32, %c0_i32_0 : i32, i32, i32
  }
  func.func @transform_17(%arg0: i32) -> (i32, i32, i32) {
    %c0_i32 = arith.constant 0 : i32
    %c0_i32_0 = arith.constant 0 : i32
    %c0_i32_1 = arith.constant 0 : i32
    return %arg0, %c0_i32, %c0_i32_0 : i32, i32, i32
  }
  func.func @transform_18(%arg0: i32) -> (i32, i32) {
    %c0_i32 = arith.constant 0 : i32
    %c0_i32_0 = arith.constant 0 : i32
    %c0_i32_1 = arith.constant 0 : i32
    return %c0_i32, %c0_i32_0 : i32, i32
  }
  func.func @transform_19(%arg0: i32) -> (i32, i32) {
    %c0_i32 = arith.constant 0 : i32
    %c0_i32_0 = arith.constant 0 : i32
    %c0_i32_1 = arith.constant 0 : i32
    return %c0_i32, %c0_i32_0 : i32, i32
  }
  func.func @transform_20(%arg0: i32) -> (i32, i32) {
    %c0_i32 = arith.constant 0 : i32
    %c0_i32_0 = arith.constant 0 : i32
    %c0_i32_1 = arith.constant 0 : i32
    return %c0_i32, %c0_i32_0 : i32, i32
  }
}

</mosaic_0001>

<llo_original>
// kernel: tpu_custom_call.1
$region0: #{tpu_custom_call.1}
  #allocation0 [shape = 'u32[]', space=smem, size = 0x4, offset = 0x4, fixed_abs, tag = 'smem constant byte address 0x4 - core index']
  #allocation1 [shape = 'u32[144,128]{1,0:T(1,128)}', space=vmem, size = 0x12000, scoped, tag = 'internal scratch']
  #allocation2 [shape = 'f32[16,128]{1,0:T(8,128)}', space=vmem, size = 0x2000, scoped, tag = 'scratch operand']
  %s0 = inlined_call_operand.vmem [shape: f32[16,128], index: 0, kind: input, shape index: {}]
  %s1 = inlined_call_operand.vmem [shape: f32[16,16], index: 1, kind: input, shape index: {}]
  %s2 = inlined_call_operand.vmem [shape: f32[16,1], index: 2, kind: input, shape index: {}]
  %s3 = inlined_call_operand.vmem [shape: f32[16,1], index: 3, kind: input, shape index: {}]
  %s4 = inlined_call_operand.vmem [shape: f32[16,128], index: 4, kind: input, shape index: {}]
  %s5 = inlined_call_operand.hbm [shape: f32[128,128], index: 5, kind: input, shape index: {}]
  %s6 = inlined_call_operand.vmem [shape: f32[2,1,128], index: 6, kind: input, shape index: {}]
  %s7 = inlined_call_operand.vmem [shape: f32[2,1,128], index: 7, kind: input, shape index: {}]
  %s8 = inlined_call_operand.hbm [shape: f32[2,128,256], index: 8, kind: input, shape index: {}]
  %s9 = inlined_call_operand.hbm [shape: f32[2,128,256], index: 9, kind: input, shape index: {}]
  %s10 = inlined_call_operand.hbm [shape: f32[2,128,256], index: 10, kind: input, shape index: {}]
  %s11 = inlined_call_operand.hbm [shape: f32[2,256,128], index: 11, kind: input, shape index: {}]
  %s12 = inlined_call_operand.vmem [shape: f32[2,1,128], index: 12, kind: input, shape index: {}]
  %s13 = inlined_call_operand.vmem [shape: f32[2,1,128], index: 13, kind: input, shape index: {}]
  %s14 = inlined_call_operand.hbm [shape: f32[2,128,384], index: 14, kind: input, shape index: {}]
  %s15 = inlined_call_operand.vmem [shape: f32[2,1,128], index: 15, kind: input, shape index: {}]
  %s16 = inlined_call_operand.hbm [shape: f32[2,128,384], index: 16, kind: input, shape index: {}]
  %s17 = inlined_call_operand.vmem [shape: f32[2,1,128], index: 17, kind: input, shape index: {}]
  %s18 = inlined_call_operand.vmem [shape: f32[1,128], index: 18, kind: input, shape index: {}]
  %s19 = inlined_call_operand.vmem [shape: f32[1,128], index: 19, kind: input, shape index: {}]
  %s20 = inlined_call_operand.hbm [shape: f32[16,128], index: 20, kind: output, shape index: {}]
  %s21 = sld [smem:[#allocation0]]
  $region149: #{tpu_custom_call.1} parent=0
    _
  %s23 = ssub.s32 1, %s21
  %s24 = scalar_select 0, %s23, %s21
  $region1: #{tpu_custom_call.1} parent=0
    #allocation3 [shape = 'u8[65536]{0}', space=vmem, size = 0x10000, scoped, tag = 'input window, operand 5, single buffered']
    #allocation4 [shape = 's32[2]{0}', space=sflag, size = 0x8, scoped, tag = 'scoped memory for tpu_custom_call.1']
    #allocation5 [shape = 's32[2]{0}', space=sflag, size = 0x8, scoped, tag = 'scoped memory for tpu_custom_call.1']
    #allocation6 [shape = 'u8[262144]{0}', space=vmem, size = 0x40000, scoped, tag = 'input window, operand 8']
    #allocation7 [shape = 's32[2]{0}', space=sflag, size = 0x8, scoped, tag = 'scoped memory for tpu_custom_call.1']
    #allocation8 [shape = 'u8[262144]{0}', space=vmem, size = 0x40000, scoped, tag = 'input window, operand 9']
    #allocation9 [shape = 'u8[262144]{0}', space=vmem, size = 0x40000, scoped, tag = 'input window, operand 10']
    #allocation10 [shape = 's32[2]{0}', space=sflag, size = 0x8, scoped, tag = 'scoped memory for tpu_custom_call.1']
    #allocation11 [shape = 'u8[262144]{0}', space=vmem, size = 0x40000, scoped, tag = 'input window, operand 11']
    #allocation12 [shape = 'u8[393216]{0}', space=vmem, size = 0x60000, scoped, tag = 'input window, operand 14']
    #allocation13 [shape = 's32[2]{0}', space=sflag, size = 0x8, scoped, tag = 'scoped memory for tpu_custom_call.1']
    #allocation14 [shape = 'u8[393216]{0}', space=vmem, size = 0x60000, scoped, tag = 'input window, operand 16']
    #allocation15 [shape = 'u8[8192]{0}', space=vmem, size = 0x2000, scoped, tag = 'output window, operand 0, single buffered']
    %25 = vsyncpa [#allocation4], 0
    %26 = vsyncpa [#allocation7], 0
    %s27 = scalar_lea.sflag [#allocation7], 1
    %28 = vsyncpa %s27, 0
    %29 = vsyncpa [#allocation10], 0
    %s30 = scalar_lea.sflag [#allocation10], 1
    %31 = vsyncpa %s30, 0
    %32 = vsyncpa [#allocation13], 0
    %s33 = scalar_lea.sflag [#allocation13], 1
    %34 = vsyncpa %s33, 0
    %35 = vsyncpa [#allocation5], 0
    loop: start=0, step=1, limit=4
    $region2: #{tpu_custom_call.1} parent=1 // loop_pre_header
      _
    $region3: #{tpu_custom_call.1} parent=1 // loop_header
      %s37 = sphi 0, %s41
      %p38 = scmp.ge.s32.totalorder %s37, 4
      %s45 = sphi 0, %s45
      %s47 = sphi 0, %s45
      %s48 = sphi 0, %s47
      %s62 = sphi 0, %s48
      %s66 = sphi 0, %s66
      %s68 = sphi 0, %s66
      %s69 = sphi 0, %s68
      %s83 = sphi 0, %s69
      %s87 = sphi 0, %s87
      %s89 = sphi 0, %s87
      %s90 = sphi 0, %s89
      %s104 = sphi 0, %s90
      %s108 = sphi 0, %s108
      %s110 = sphi 0, %s108
      %s111 = sphi 0, %s110
      %s125 = sphi 0, %s111
      %s129 = sphi 0, %s129
      %s131 = sphi 0, %s129
      %s132 = sphi 0, %s131
      %s146 = sphi 0, %s132
      %s150 = sphi 0, %s150
      %s152 = sphi 0, %s150
      %s153 = sphi 0, %s152
      %s167 = sphi 0, %s153
      %s173 = sphi 0, %s175
      %s176 = sphi 0, %s173
      %s177 = sphi 0, %s176
      %s193 = sphi 0, %s177
      %s199 = sphi 0, %s201
      %s202 = sphi 0, %s199
      %s203 = sphi 0, %s202
      %s219 = sphi 0, %s203
      %s225 = sphi 0, %s227
      %s228 = sphi 0, %s225
      %s229 = sphi 0, %s228
      %s245 = sphi 0, %s229
      %s251 = sphi 0, %s253
      %s254 = sphi 0, %s251
      %s255 = sphi 0, %s254
      %s271 = sphi 0, %s255
      %s277 = sphi 0, %s279
      %s280 = sphi 0, %s277
      %s281 = sphi 0, %s280
      %s297 = sphi 0, %s281
      %s303 = sphi 0, %s305
      %s306 = sphi 0, %s303
      %s307 = sphi 0, %s306
      %s323 = sphi 0, %s307
      %s329 = sphi 0, %s331
      %s332 = sphi 0, %s329
      %s333 = sphi 0, %s332
      %s349 = sphi 0, %s333
      %s355 = sphi 0, %s357
      %s358 = sphi 0, %s355
      %s359 = sphi 0, %s358
      %s375 = sphi 0, %s359
      %s381 = sphi 0, %s383
      %s384 = sphi 0, %s381
      %s385 = sphi 0, %s384
      %s401 = sphi 0, %s385
      %s407 = sphi 0, %s409
      %s410 = sphi 0, %s407
      %s411 = sphi 0, %s410
      %s427 = sphi 0, %s411
      %s433 = sphi 0, %s435
      %s436 = sphi 0, %s433
      %s437 = sphi 0, %s436
      %s453 = sphi 0, %s437
      %s459 = sphi 0, %s461
      %s462 = sphi 0, %s459
      %s463 = sphi 0, %s462
      %s479 = sphi 0, %s463
      %s483 = sphi 0, %s483
      %s485 = sphi 0, %s483
      %s486 = sphi 0, %s485
      %s500 = sphi 0, %s486
      %s504 = sphi 0, %s504
      %s506 = sphi 0, %s504
      %s507 = sphi 0, %s506
      %s521 = sphi 0, %s507
      %s525 = sphi 0, %s525
      %s527 = sphi 0, %s525
      %s528 = sphi 0, %s527
      %s542 = sphi 0, %s528
    $region4: #{tpu_custom_call.1} parent=1 // loop_header_branch
      %40 = sbr.rel (%p38) target = $region8
    $region5: #{tpu_custom_call.1} parent=1 // loop_body
      %s42 = ssub.s32 %s37, 1
      %s43 = ssub.s32 %s37, 2
      %s44 = sadd.s32 %s37, 1
      %s46 = sadd.s32 %s45, 1
      %p49 = scmp.eq.s32.totalorder %s37, 1
      %p50 = scmp.ne.s32.totalorder %s45, %s47
      %p51 = scmp.eq.s32.totalorder %s37, 0
      %p52 = por %p50, %p51
      %p53 = scmp.ne.s32.totalorder %s45, %s47
      %p54 = scmp.eq.s32.totalorder %s42, 1
      %p55 = por %p53, %p54
      %p56 = scmp.ne.s32.totalorder %s47, %s48
      %p57 = scmp.eq.s32.totalorder %s42, 0
      %p58 = por %p56, %p57
      %p59 = scmp.ne.s32.totalorder %s47, %s48
      %p60 = scmp.eq.s32.totalorder %s43, 1
      %p61 = por %p59, %p60
      %p63 = scmp.ne.s32.totalorder %s48, %s62
      %p64 = scmp.eq.s32.totalorder %s43, 0
      %p65 = por %p63, %p64
      %s67 = sadd.s32 %s66, 1
      %p70 = scmp.eq.s32.totalorder %s37, 1
      %p71 = scmp.ne.s32.totalorder %s66, %s68
      %p72 = scmp.eq.s32.totalorder %s37, 0
      %p73 = por %p71, %p72
      %p74 = scmp.ne.s32.totalorder %s66, %s68
      %p75 = scmp.eq.s32.totalorder %s42, 1
      %p76 = por %p74, %p75
      %p77 = scmp.ne.s32.totalorder %s68, %s69
      %p78 = scmp.eq.s32.totalorder %s42, 0
      %p79 = por %p77, %p78
      %p80 = scmp.ne.s32.totalorder %s68, %s69
      %p81 = scmp.eq.s32.totalorder %s43, 1
      %p82 = por %p80, %p81
      %p84 = scmp.ne.s32.totalorder %s69, %s83
      %p85 = scmp.eq.s32.totalorder %s43, 0
      %p86 = por %p84, %p85
      %s88 = sadd.s32 %s87, 1
      %p91 = scmp.eq.s32.totalorder %s37, 1
      %p92 = scmp.ne.s32.totalorder %s87, %s89
      %p93 = scmp.eq.s32.totalorder %s37, 0
      %p94 = por %p92, %p93
      %p95 = scmp.ne.s32.totalorder %s87, %s89
      %p96 = scmp.eq.s32.totalorder %s42, 1
      %p97 = por %p95, %p96
      %p98 = scmp.ne.s32.totalorder %s89, %s90
      %p99 = scmp.eq.s32.totalorder %s42, 0
      %p100 = por %p98, %p99
      %p101 = scmp.ne.s32.totalorder %s89, %s90
      %p102 = scmp.eq.s32.totalorder %s43, 1
      %p103 = por %p101, %p102
      %p105 = scmp.ne.s32.totalorder %s90, %s104
      %p106 = scmp.eq.s32.totalorder %s43, 0
      %p107 = por %p105, %p106
      %s109 = sadd.s32 %s108, 1
      %p112 = scmp.eq.s32.totalorder %s37, 1
      %p113 = scmp.ne.s32.totalorder %s108, %s110
      %p114 = scmp.eq.s32.totalorder %s37, 0
      %p115 = por %p113, %p114
      %p116 = scmp.ne.s32.totalorder %s108, %s110
      %p117 = scmp.eq.s32.totalorder %s42, 1
      %p118 = por %p116, %p117
      %p119 = scmp.ne.s32.totalorder %s110, %s111
      %p120 = scmp.eq.s32.totalorder %s42, 0
      %p121 = por %p119, %p120
      %p122 = scmp.ne.s32.totalorder %s110, %s111
      %p123 = scmp.eq.s32.totalorder %s43, 1
      %p124 = por %p122, %p123
      %p126 = scmp.ne.s32.totalorder %s111, %s125
      %p127 = scmp.eq.s32.totalorder %s43, 0
      %p128 = por %p126, %p127
      %s130 = sadd.s32 %s129, 1
      %p133 = scmp.eq.s32.totalorder %s37, 1
      %p134 = scmp.ne.s32.totalorder %s129, %s131
      %p135 = scmp.eq.s32.totalorder %s37, 0
      %p136 = por %p134, %p135
      %p137 = scmp.ne.s32.totalorder %s129, %s131
      %p138 = scmp.eq.s32.totalorder %s42, 1
      %p139 = por %p137, %p138
      %p140 = scmp.ne.s32.totalorder %s131, %s132
      %p141 = scmp.eq.s32.totalorder %s42, 0
      %p142 = por %p140, %p141
      %p143 = scmp.ne.s32.totalorder %s131, %s132
      %p144 = scmp.eq.s32.totalorder %s43, 1
      %p145 = por %p143, %p144
      %p147 = scmp.ne.s32.totalorder %s132, %s146
      %p148 = scmp.eq.s32.totalorder %s43, 0
      %p149 = por %p147, %p148
      %s151 = sadd.s32 %s150, 1
      %p154 = scmp.eq.s32.totalorder %s37, 1
      %p155 = scmp.ne.s32.totalorder %s150, %s152
      %p156 = scmp.eq.s32.totalorder %s37, 0
      %p157 = por %p155, %p156
      %p158 = scmp.ne.s32.totalorder %s150, %s152
      %p159 = scmp.eq.s32.totalorder %s42, 1
      %p160 = por %p158, %p159
      %p161 = scmp.ne.s32.totalorder %s152, %s153
      %p162 = scmp.eq.s32.totalorder %s42, 0
      %p163 = por %p161, %p162
      %p164 = scmp.ne.s32.totalorder %s152, %s153
      %p165 = scmp.eq.s32.totalorder %s43, 1
      %p166 = por %p164, %p165
      %p168 = scmp.ne.s32.totalorder %s153, %s167
      %p169 = scmp.eq.s32.totalorder %s43, 0
      %p170 = por %p168, %p169
      %s171 = ssub.s32 %s37, %s44
      %p172 = scmp.eq.s32.totalorder %s171, 0
      %s174 = sadd.s32 %s173, 1
      %s175 = scalar_select %p172, %s173, %s174
      %p178 = pneg %p172
      %p179 = scmp.eq.s32.totalorder %s37, 1
      %p180 = por %p178, %p179
      %p181 = scmp.ne.s32.totalorder %s173, %s176
      %p182 = scmp.eq.s32.totalorder %s37, 0
      %p183 = por %p181, %p182
      %p184 = scmp.ne.s32.totalorder %s173, %s176
      %p185 = scmp.eq.s32.totalorder %s42, 1
      %p186 = por %p184, %p185
      %p187 = scmp.ne.s32.totalorder %s176, %s177
      %p188 = scmp.eq.s32.totalorder %s42, 0
      %p189 = por %p187, %p188
      %p190 = scmp.ne.s32.totalorder %s176, %s177
      %p191 = scmp.eq.s32.totalorder %s43, 1
      %p192 = por %p190, %p191
      %p194 = scmp.ne.s32.totalorder %s177, %s193
      %p195 = scmp.eq.s32.totalorder %s43, 0
      %p196 = por %p194, %p195
      %s197 = ssub.s32 %s37, %s44
      %p198 = scmp.eq.s32.totalorder %s197, 0
      %s200 = sadd.s32 %s199, 1
      %s201 = scalar_select %p198, %s199, %s200
      %p204 = pneg %p198
      %p205 = scmp.eq.s32.totalorder %s37, 1
      %p206 = por %p204, %p205
      %p207 = scmp.ne.s32.totalorder %s199, %s202
      %p208 = scmp.eq.s32.totalorder %s37, 0
      %p209 = por %p207, %p208
      %p210 = scmp.ne.s32.totalorder %s199, %s202
      %p211 = scmp.eq.s32.totalorder %s42, 1
      %p212 = por %p210, %p211
      %p213 = scmp.ne.s32.totalorder %s202, %s203
      %p214 = scmp.eq.s32.totalorder %s42, 0
      %p215 = por %p213, %p214
      %p216 = scmp.ne.s32.totalorder %s202, %s203
      %p217 = scmp.eq.s32.totalorder %s43, 1
      %p218 = por %p216, %p217
      %p220 = scmp.ne.s32.totalorder %s203, %s219
      %p221 = scmp.eq.s32.totalorder %s43, 0
      %p222 = por %p220, %p221
      %s223 = ssub.s32 %s37, %s44
      %p224 = scmp.eq.s32.totalorder %s223, 0
      %s226 = sadd.s32 %s225, 1
      %s227 = scalar_select %p224, %s225, %s226
      %p230 = pneg %p224
      %p231 = scmp.eq.s32.totalorder %s37, 1
      %p232 = por %p230, %p231
      %p233 = scmp.ne.s32.totalorder %s225, %s228
      %p234 = scmp.eq.s32.totalorder %s37, 0
      %p235 = por %p233, %p234
      %p236 = scmp.ne.s32.totalorder %s225, %s228
      %p237 = scmp.eq.s32.totalorder %s42, 1
      %p238 = por %p236, %p237
      %p239 = scmp.ne.s32.totalorder %s228, %s229
      %p240 = scmp.eq.s32.totalorder %s42, 0
      %p241 = por %p239, %p240
      %p242 = scmp.ne.s32.totalorder %s228, %s229
      %p243 = scmp.eq.s32.totalorder %s43, 1
      %p244 = por %p242, %p243
      %p246 = scmp.ne.s32.totalorder %s229, %s245
      %p247 = scmp.eq.s32.totalorder %s43, 0
      %p248 = por %p246, %p247
      %s249 = ssub.s32 %s37, %s44
      %p250 = scmp.eq.s32.totalorder %s249, 0
      %s252 = sadd.s32 %s251, 1
      %s253 = scalar_select %p250, %s251, %s252
      %p256 = pneg %p250
      %p257 = scmp.eq.s32.totalorder %s37, 1
      %p258 = por %p256, %p257
      %p259 = scmp.ne.s32.totalorder %s251, %s254
      %p260 = scmp.eq.s32.totalorder %s37, 0
      %p261 = por %p259, %p260
      %p262 = scmp.ne.s32.totalorder %s251, %s254
      %p263 = scmp.eq.s32.totalorder %s42, 1
      %p264 = por %p262, %p263
      %p265 = scmp.ne.s32.totalorder %s254, %s255
      %p266 = scmp.eq.s32.totalorder %s42, 0
      %p267 = por %p265, %p266
      %p268 = scmp.ne.s32.totalorder %s254, %s255
      %p269 = scmp.eq.s32.totalorder %s43, 1
      %p270 = por %p268, %p269
      %p272 = scmp.ne.s32.totalorder %s255, %s271
      %p273 = scmp.eq.s32.totalorder %s43, 0
      %p274 = por %p272, %p273
      %s275 = ssub.s32 %s37, %s44
      %p276 = scmp.eq.s32.totalorder %s275, 0
      %s278 = sadd.s32 %s277, 1
      %s279 = scalar_select %p276, %s277, %s278
      %p282 = pneg %p276
      %p283 = scmp.eq.s32.totalorder %s37, 1
      %p284 = por %p282, %p283
      %p285 = scmp.ne.s32.totalorder %s277, %s280
      %p286 = scmp.eq.s32.totalorder %s37, 0
      %p287 = por %p285, %p286
      %p288 = scmp.ne.s32.totalorder %s277, %s280
      %p289 = scmp.eq.s32.totalorder %s42, 1
      %p290 = por %p288, %p289
      %p291 = scmp.ne.s32.totalorder %s280, %s281
      %p292 = scmp.eq.s32.totalorder %s42, 0
      %p293 = por %p291, %p292
      %p294 = scmp.ne.s32.totalorder %s280, %s281
      %p295 = scmp.eq.s32.totalorder %s43, 1
      %p296 = por %p294, %p295
      %p298 = scmp.ne.s32.totalorder %s281, %s297
      %p299 = scmp.eq.s32.totalorder %s43, 0
      %p300 = por %p298, %p299
      %s301 = ssub.s32 %s37, %s44
      %p302 = scmp.eq.s32.totalorder %s301, 0
      %s304 = sadd.s32 %s303, 1
      %s305 = scalar_select %p302, %s303, %s304
      %p308 = pneg %p302
      %p309 = scmp.eq.s32.totalorder %s37, 1
      %p310 = por %p308, %p309
      %p311 = scmp.ne.s32.totalorder %s303, %s306
      %p312 = scmp.eq.s32.totalorder %s37, 0
      %p313 = por %p311, %p312
      %p314 = scmp.ne.s32.totalorder %s303, %s306
      %p315 = scmp.eq.s32.totalorder %s42, 1
      %p316 = por %p314, %p315
      %p317 = scmp.ne.s32.totalorder %s306, %s307
      %p318 = scmp.eq.s32.totalorder %s42, 0
      %p319 = por %p317, %p318
      %p320 = scmp.ne.s32.totalorder %s306, %s307
      %p321 = scmp.eq.s32.totalorder %s43, 1
      %p322 = por %p320, %p321
      %p324 = scmp.ne.s32.totalorder %s307, %s323
      %p325 = scmp.eq.s32.totalorder %s43, 0
      %p326 = por %p324, %p325
      %s327 = ssub.s32 %s37, %s44
      %p328 = scmp.eq.s32.totalorder %s327, 0
      %s330 = sadd.s32 %s329, 1
      %s331 = scalar_select %p328, %s329, %s330
      %p334 = pneg %p328
      %p335 = scmp.eq.s32.totalorder %s37, 1
      %p336 = por %p334, %p335
      %p337 = scmp.ne.s32.totalorder %s329, %s332
      %p338 = scmp.eq.s32.totalorder %s37, 0
      %p339 = por %p337, %p338
      %p340 = scmp.ne.s32.totalorder %s329, %s332
      %p341 = scmp.eq.s32.totalorder %s42, 1
      %p342 = por %p340, %p341
      %p343 = scmp.ne.s32.totalorder %s332, %s333
      %p344 = scmp.eq.s32.totalorder %s42, 0
      %p345 = por %p343, %p344
      %p346 = scmp.ne.s32.totalorder %s332, %s333
      %p347 = scmp.eq.s32.totalorder %s43, 1
      %p348 = por %p346, %p347
      %p350 = scmp.ne.s32.totalorder %s333, %s349
      %p351 = scmp.eq.s32.totalorder %s43, 0
      %p352 = por %p350, %p351
      %s353 = ssub.s32 %s37, %s44
      %p354 = scmp.eq.s32.totalorder %s353, 0
      %s356 = sadd.s32 %s355, 1
      %s357 = scalar_select %p354, %s355, %s356
      %p360 = pneg %p354
      %p361 = scmp.eq.s32.totalorder %s37, 1
      %p362 = por %p360, %p361
      %p363 = scmp.ne.s32.totalorder %s355, %s358
      %p364 = scmp.eq.s32.totalorder %s37, 0
      %p365 = por %p363, %p364
      %p366 = scmp.ne.s32.totalorder %s355, %s358
      %p367 = scmp.eq.s32.totalorder %s42, 1
      %p368 = por %p366, %p367
      %p369 = scmp.ne.s32.totalorder %s358, %s359
      %p370 = scmp.eq.s32.totalorder %s42, 0
      %p371 = por %p369, %p370
      %p372 = scmp.ne.s32.totalorder %s358, %s359
      %p373 = scmp.eq.s32.totalorder %s43, 1
      %p374 = por %p372, %p373
      %p376 = scmp.ne.s32.totalorder %s359, %s375
      %p377 = scmp.eq.s32.totalorder %s43, 0
      %p378 = por %p376, %p377
      %s379 = ssub.s32 %s37, %s44
      %p380 = scmp.eq.s32.totalorder %s379, 0
      %s382 = sadd.s32 %s381, 1
      %s383 = scalar_select %p380, %s381, %s382
      %p386 = pneg %p380
      %p387 = scmp.eq.s32.totalorder %s37, 1
      %p388 = por %p386, %p387
      %p389 = scmp.ne.s32.totalorder %s381, %s384
      %p390 = scmp.eq.s32.totalorder %s37, 0
      %p391 = por %p389, %p390
      %p392 = scmp.ne.s32.totalorder %s381, %s384
      %p393 = scmp.eq.s32.totalorder %s42, 1
      %p394 = por %p392, %p393
      %p395 = scmp.ne.s32.totalorder %s384, %s385
      %p396 = scmp.eq.s32.totalorder %s42, 0
      %p397 = por %p395, %p396
      %p398 = scmp.ne.s32.totalorder %s384, %s385
      %p399 = scmp.eq.s32.totalorder %s43, 1
      %p400 = por %p398, %p399
      %p402 = scmp.ne.s32.totalorder %s385, %s401
      %p403 = scmp.eq.s32.totalorder %s43, 0
      %p404 = por %p402, %p403
      %s405 = ssub.s32 %s37, %s44
      %p406 = scmp.eq.s32.totalorder %s405, 0
      %s408 = sadd.s32 %s407, 1
      %s409 = scalar_select %p406, %s407, %s408
      %p412 = pneg %p406
      %p413 = scmp.eq.s32.totalorder %s37, 1
      %p414 = por %p412, %p413
      %p415 = scmp.ne.s32.totalorder %s407, %s410
      %p416 = scmp.eq.s32.totalorder %s37, 0
      %p417 = por %p415, %p416
      %p418 = scmp.ne.s32.totalorder %s407, %s410
      %p419 = scmp.eq.s32.totalorder %s42, 1
      %p420 = por %p418, %p419
      %p421 = scmp.ne.s32.totalorder %s410, %s411
      %p422 = scmp.eq.s32.totalorder %s42, 0
      %p423 = por %p421, %p422
      %p424 = scmp.ne.s32.totalorder %s410, %s411
      %p425 = scmp.eq.s32.totalorder %s43, 1
      %p426 = por %p424, %p425
      %p428 = scmp.ne.s32.totalorder %s411, %s427
      %p429 = scmp.eq.s32.totalorder %s43, 0
      %p430 = por %p428, %p429
      %s431 = ssub.s32 %s37, %s44
      %p432 = scmp.eq.s32.totalorder %s431, 0
      %s434 = sadd.s32 %s433, 1
      %s435 = scalar_select %p432, %s433, %s434
      %p438 = pneg %p432
      %p439 = scmp.eq.s32.totalorder %s37, 1
      %p440 = por %p438, %p439
      %p441 = scmp.ne.s32.totalorder %s433, %s436
      %p442 = scmp.eq.s32.totalorder %s37, 0
      %p443 = por %p441, %p442
      %p444 = scmp.ne.s32.totalorder %s433, %s436
      %p445 = scmp.eq.s32.totalorder %s42, 1
      %p446 = por %p444, %p445
      %p447 = scmp.ne.s32.totalorder %s436, %s437
      %p448 = scmp.eq.s32.totalorder %s42, 0
      %p449 = por %p447, %p448
      %p450 = scmp.ne.s32.totalorder %s436, %s437
      %p451 = scmp.eq.s32.totalorder %s43, 1
      %p452 = por %p450, %p451
      %p454 = scmp.ne.s32.totalorder %s437, %s453
      %p455 = scmp.eq.s32.totalorder %s43, 0
      %p456 = por %p454, %p455
      %s457 = ssub.s32 %s37, %s44
      %p458 = scmp.eq.s32.totalorder %s457, 0
      %s460 = sadd.s32 %s459, 1
      %s461 = scalar_select %p458, %s459, %s460
      %p464 = pneg %p458
      %p465 = scmp.eq.s32.totalorder %s37, 1
      %p466 = por %p464, %p465
      %p467 = scmp.ne.s32.totalorder %s459, %s462
      %p468 = scmp.eq.s32.totalorder %s37, 0
      %p469 = por %p467, %p468
      %p470 = scmp.ne.s32.totalorder %s459, %s462
      %p471 = scmp.eq.s32.totalorder %s42, 1
      %p472 = por %p470, %p471
      %p473 = scmp.ne.s32.totalorder %s462, %s463
      %p474 = scmp.eq.s32.totalorder %s42, 0
      %p475 = por %p473, %p474
      %p476 = scmp.ne.s32.totalorder %s462, %s463
      %p477 = scmp.eq.s32.totalorder %s43, 1
      %p478 = por %p476, %p477
      %p480 = scmp.ne.s32.totalorder %s463, %s479
      %p481 = scmp.eq.s32.totalorder %s43, 0
      %p482 = por %p480, %p481
      %s484 = sadd.s32 %s483, 1
      %p487 = scmp.eq.s32.totalorder %s37, 1
      %p488 = scmp.ne.s32.totalorder %s483, %s485
      %p489 = scmp.eq.s32.totalorder %s37, 0
      %p490 = por %p488, %p489
      %p491 = scmp.ne.s32.totalorder %s483, %s485
      %p492 = scmp.eq.s32.totalorder %s42, 1
      %p493 = por %p491, %p492
      %p494 = scmp.ne.s32.totalorder %s485, %s486
      %p495 = scmp.eq.s32.totalorder %s42, 0
      %p496 = por %p494, %p495
      %p497 = scmp.ne.s32.totalorder %s485, %s486
      %p498 = scmp.eq.s32.totalorder %s43, 1
      %p499 = por %p497, %p498
      %p501 = scmp.ne.s32.totalorder %s486, %s500
      %p502 = scmp.eq.s32.totalorder %s43, 0
      %p503 = por %p501, %p502
      %s505 = sadd.s32 %s504, 1
      %p508 = scmp.eq.s32.totalorder %s37, 1
      %p509 = scmp.ne.s32.totalorder %s504, %s506
      %p510 = scmp.eq.s32.totalorder %s37, 0
      %p511 = por %p509, %p510
      %p512 = scmp.ne.s32.totalorder %s504, %s506
      %p513 = scmp.eq.s32.totalorder %s42, 1
      %p514 = por %p512, %p513
      %p515 = scmp.ne.s32.totalorder %s506, %s507
      %p516 = scmp.eq.s32.totalorder %s42, 0
      %p517 = por %p515, %p516
      %p518 = scmp.ne.s32.totalorder %s506, %s507
      %p519 = scmp.eq.s32.totalorder %s43, 1
      %p520 = por %p518, %p519
      %p522 = scmp.ne.s32.totalorder %s507, %s521
      %p523 = scmp.eq.s32.totalorder %s43, 0
      %p524 = por %p522, %p523
      %s526 = sadd.s32 %s525, 1
      %p529 = scmp.eq.s32.totalorder %s37, 1
      %p530 = scmp.ne.s32.totalorder %s525, %s527
      %p531 = scmp.eq.s32.totalorder %s37, 0
      %p532 = por %p530, %p531
      %p533 = scmp.ne.s32.totalorder %s525, %s527
      %p534 = scmp.eq.s32.totalorder %s42, 1
      %p535 = por %p533, %p534
      %p536 = scmp.ne.s32.totalorder %s527, %s528
      %p537 = scmp.eq.s32.totalorder %s42, 0
      %p538 = por %p536, %p537
      %p539 = scmp.ne.s32.totalorder %s527, %s528
      %p540 = scmp.eq.s32.totalorder %s43, 1
      %p541 = por %p539, %p540
      %p543 = scmp.ne.s32.totalorder %s528, %s542
      %p544 = scmp.eq.s32.totalorder %s43, 0
      %p545 = por %p543, %p544
      %p546 = scmp.le.s32.totalorder 1, %s37
      %p547 = scmp.lt.s32.totalorder %s37, 3
      %p548 = pnand %p546, %p547
      %p549 = pneg %p548
      // Predicated region
      $region9: #{tpu_custom_call.1} parent=5 // pred_check
        _
      $region10: #{tpu_custom_call.1} parent=5 // pred_check_branch
        %551 = sbr.rel (%p548) target = $region12
      $region11: #{tpu_custom_call.1} parent=5 // pred_region
        %s552 = ssub.s32 %s37, 1
        // Predicated region
        $region13: #{tpu_custom_call.1} parent=11 // pred_check
          %p553 = pneg %p58
        $region14: #{tpu_custom_call.1} parent=11 // pred_check_branch
          %555 = sbr.rel (%p553) target = $region16
        $region15: #{tpu_custom_call.1} parent=11 // pred_region
          _
        $region16: #{tpu_custom_call.1} parent=11 // pred_fallthru
          _
        // Predicated region
        $region17: #{tpu_custom_call.1} parent=11 // pred_check
          %p556 = pneg %p79
        $region18: #{tpu_custom_call.1} parent=11 // pred_check_branch
          %558 = sbr.rel (%p556) target = $region20
        $region19: #{tpu_custom_call.1} parent=11 // pred_region
          _
        $region20: #{tpu_custom_call.1} parent=11 // pred_fallthru
          _
        // Predicated region
        $region21: #{tpu_custom_call.1} parent=11 // pred_check
          %p559 = pneg %p100
        $region22: #{tpu_custom_call.1} parent=11 // pred_check_branch
          %561 = sbr.rel (%p559) target = $region24
        $region23: #{tpu_custom_call.1} parent=11 // pred_region
          _
        $region24: #{tpu_custom_call.1} parent=11 // pred_fallthru
          _
        // Predicated region
        $region25: #{tpu_custom_call.1} parent=11 // pred_check
          %p562 = pneg %p121
        $region26: #{tpu_custom_call.1} parent=11 // pred_check_branch
          %564 = sbr.rel (%p562) target = $region28
        $region27: #{tpu_custom_call.1} parent=11 // pred_region
          _
        $region28: #{tpu_custom_call.1} parent=11 // pred_fallthru
          _
        // Predicated region
        $region29: #{tpu_custom_call.1} parent=11 // pred_check
          %p565 = pneg %p142
        $region30: #{tpu_custom_call.1} parent=11 // pred_check_branch
          %567 = sbr.rel (%p565) target = $region32
        $region31: #{tpu_custom_call.1} parent=11 // pred_region
          _
        $region32: #{tpu_custom_call.1} parent=11 // pred_fallthru
          _
        // Predicated region
        $region33: #{tpu_custom_call.1} parent=11 // pred_check
          %p568 = pneg %p163
        $region34: #{tpu_custom_call.1} parent=11 // pred_check_branch
          %570 = sbr.rel (%p568) target = $region36
        $region35: #{tpu_custom_call.1} parent=11 // pred_region
          %s572 = ssub.s32 2048, 2048
          %573 = vsyncadd [#allocation4], %s572
          %s574 = sshll.u32 [#allocation3], 4
          %s575 = int_to_ptr.vmem [resolvable:$true] %s574
          %580 = dma.hbm_to_vmem [thread:$0]  %s5, 2048, %s575, [#allocation4], 128, 128, 8
        $region36: #{tpu_custom_call.1} parent=11 // pred_fallthru
          _
        // Predicated region
        $region37: #{tpu_custom_call.1} parent=11 // pred_check
          %p581 = pneg %p496
        $region38: #{tpu_custom_call.1} parent=11 // pred_check_branch
          %583 = sbr.rel (%p581) target = $region40
        $region39: #{tpu_custom_call.1} parent=11 // pred_region
          _
        $region40: #{tpu_custom_call.1} parent=11 // pred_fallthru
          _
        // Predicated region
        $region41: #{tpu_custom_call.1} parent=11 // pred_check
          %p584 = pneg %p517
        $region42: #{tpu_custom_call.1} parent=11 // pred_check_branch
          %586 = sbr.rel (%p584) target = $region44
        $region43: #{tpu_custom_call.1} parent=11 // pred_region
          _
        $region44: #{tpu_custom_call.1} parent=11 // pred_fallthru
          _
      $region12: #{tpu_custom_call.1} parent=5 // pred_fallthru
        _
      %p587 = scmp.lt.s32.totalorder %s37, 2
      // Predicated region
      $region45: #{tpu_custom_call.1} parent=5 // pred_check
        %p588 = pneg %p587
      $region46: #{tpu_custom_call.1} parent=5 // pred_check_branch
        %590 = sbr.rel (%p588) target = $region48
      $region47: #{tpu_custom_call.1} parent=5 // pred_region
        // Predicated region
        $region49: #{tpu_custom_call.1} parent=47 // pred_check
          %p591 = pneg %p183
        $region50: #{tpu_custom_call.1} parent=47 // pred_check_branch
          %593 = sbr.rel (%p591) target = $region52
        $region51: #{tpu_custom_call.1} parent=47 // pred_region
          %p594 = scmp.lt.s32.totalorder %s37, 1
          %s595 = scalar_select %p594, %s37, 1
          %s596 = scalar_lea.vmem %s6, %s595
        $region52: #{tpu_custom_call.1} parent=47 // pred_fallthru
          _
        // Predicated region
        $region53: #{tpu_custom_call.1} parent=47 // pred_check
          %p597 = pneg %p209
        $region54: #{tpu_custom_call.1} parent=47 // pred_check_branch
          %599 = sbr.rel (%p597) target = $region56
        $region55: #{tpu_custom_call.1} parent=47 // pred_region
          %p600 = scmp.lt.s32.totalorder %s37, 1
          %s601 = scalar_select %p600, %s37, 1
          %s602 = scalar_lea.vmem %s7, %s601
        $region56: #{tpu_custom_call.1} parent=47 // pred_fallthru
          _
        // Predicated region
        $region57: #{tpu_custom_call.1} parent=47 // pred_check
          %p603 = pneg %p235
        $region58: #{tpu_custom_call.1} parent=47 // pred_check_branch
          %605 = sbr.rel (%p603) target = $region60
        $region59: #{tpu_custom_call.1} parent=47 // pred_region
          %s606 = sand.u32 %s37, 1
          %s607 = scalar_lea.sflag [#allocation7], %s606
          %s608 = sand.u32 %s225, 1
          %s609 = smul.addr %s608, 256
          %s610 = scalar_lea.vmem [#allocation6], %s609
          %s612 = ssub.s32 4096, 4096
          %613 = vsyncadd %s607, %s612
          %s614 = smul.addr %s37, 32
          %s615 = smul.addr %s614, 128
          %s616 = scalar_lea.hbm %s8, %s615
          %s617 = sshll.u32 %s610, 4
          %s618 = int_to_ptr.vmem [resolvable:$true] %s617
          %623 = dma.hbm_to_vmem [thread:$0]  %s616, 4096, %s618, %s607, 256, 256, 16
        $region60: #{tpu_custom_call.1} parent=47 // pred_fallthru
          _
        // Predicated region
        $region61: #{tpu_custom_call.1} parent=47 // pred_check
          %p624 = pneg %p261
        $region62: #{tpu_custom_call.1} parent=47 // pred_check_branch
          %626 = sbr.rel (%p624) target = $region64
        $region63: #{tpu_custom_call.1} parent=47 // pred_region
          %s627 = sand.u32 %s37, 1
          %s628 = scalar_lea.sflag [#allocation7], %s627
          %s629 = sand.u32 %s251, 1
          %s630 = smul.addr %s629, 256
          %s631 = scalar_lea.vmem [#allocation8], %s630
          %s633 = ssub.s32 4096, 4096
          %634 = vsyncadd %s628, %s633
          %s635 = smul.addr %s37, 32
          %s636 = smul.addr %s635, 128
          %s637 = scalar_lea.hbm %s9, %s636
          %s638 = sshll.u32 %s631, 4
          %s639 = int_to_ptr.vmem [resolvable:$true] %s638
          %644 = dma.hbm_to_vmem [thread:$0]  %s637, 4096, %s639, %s628, 256, 256, 16
        $region64: #{tpu_custom_call.1} parent=47 // pred_fallthru
          _
        // Predicated region
        $region65: #{tpu_custom_call.1} parent=47 // pred_check
          %p645 = pneg %p287
        $region66: #{tpu_custom_call.1} parent=47 // pred_check_branch
          %647 = sbr.rel (%p645) target = $region68
        $region67: #{tpu_custom_call.1} parent=47 // pred_region
          %s648 = sand.u32 %s37, 1
          %s649 = scalar_lea.sflag [#allocation10], %s648
          %s650 = sand.u32 %s277, 1
          %s651 = smul.addr %s650, 256
          %s652 = scalar_lea.vmem [#allocation9], %s651
          %s654 = ssub.s32 4096, 4096
          %655 = vsyncadd %s649, %s654
          %s656 = smul.addr %s37, 32
          %s657 = smul.addr %s656, 128
          %s658 = scalar_lea.hbm %s10, %s657
          %s659 = sshll.u32 %s652, 4
          %s660 = int_to_ptr.vmem [resolvable:$true] %s659
          %665 = dma.hbm_to_vmem [thread:$0]  %s658, 4096, %s660, %s649, 256, 256, 16
        $region68: #{tpu_custom_call.1} parent=47 // pred_fallthru
          _
        // Predicated region
        $region69: #{tpu_custom_call.1} parent=47 // pred_check
          %p666 = pneg %p313
        $region70: #{tpu_custom_call.1} parent=47 // pred_check_branch
          %668 = sbr.rel (%p666) target = $region72
        $region71: #{tpu_custom_call.1} parent=47 // pred_region
          %s669 = sand.u32 %s37, 1
          %s670 = scalar_lea.sflag [#allocation10], %s669
          %s671 = sand.u32 %s303, 1
          %s672 = smul.addr %s671, 256
          %s673 = scalar_lea.vmem [#allocation11], %s672
          %s675 = ssub.s32 4096, 4096
          %676 = vsyncadd %s670, %s675
          %s677 = smul.addr %s37, 32
          %s678 = smul.addr %s677, 128
          %s679 = scalar_lea.hbm %s11, %s678
          %s680 = sshll.u32 %s673, 4
          %s681 = int_to_ptr.vmem [resolvable:$true] %s680
          %686 = dma.hbm_to_vmem [thread:$0]  %s679, 4096, %s681, %s670, 128, 128, 8
        $region72: #{tpu_custom_call.1} parent=47 // pred_fallthru
          _
        // Predicated region
        $region73: #{tpu_custom_call.1} parent=47 // pred_check
          %p687 = pneg %p339
        $region74: #{tpu_custom_call.1} parent=47 // pred_check_branch
          %689 = sbr.rel (%p687) target = $region76
        $region75: #{tpu_custom_call.1} parent=47 // pred_region
          %p690 = scmp.lt.s32.totalorder %s37, 1
          %s691 = scalar_select %p690, %s37, 1
          %s692 = scalar_lea.vmem %s12, %s691
        $region76: #{tpu_custom_call.1} parent=47 // pred_fallthru
          _
        // Predicated region
        $region77: #{tpu_custom_call.1} parent=47 // pred_check
          %p693 = pneg %p365
        $region78: #{tpu_custom_call.1} parent=47 // pred_check_branch
          %695 = sbr.rel (%p693) target = $region80
        $region79: #{tpu_custom_call.1} parent=47 // pred_region
          %p696 = scmp.lt.s32.totalorder %s37, 1
          %s697 = scalar_select %p696, %s37, 1
          %s698 = scalar_lea.vmem %s13, %s697
        $region80: #{tpu_custom_call.1} parent=47 // pred_fallthru
          _
        // Predicated region
        $region81: #{tpu_custom_call.1} parent=47 // pred_check
          %p699 = pneg %p391
        $region82: #{tpu_custom_call.1} parent=47 // pred_check_branch
          %701 = sbr.rel (%p699) target = $region84
        $region83: #{tpu_custom_call.1} parent=47 // pred_region
          %s702 = sand.u32 %s37, 1
          %s703 = scalar_lea.sflag [#allocation13], %s702
          %s704 = sand.u32 %s381, 1
          %s705 = smul.addr %s704, 384
          %s706 = scalar_lea.vmem [#allocation12], %s705
          %s708 = ssub.s32 6144, 6144
          %709 = vsyncadd %s703, %s708
          %s710 = smul.addr %s37, 48
          %s711 = smul.addr %s710, 128
          %s712 = scalar_lea.hbm %s14, %s711
          %s713 = sshll.u32 %s706, 4
          %s714 = int_to_ptr.vmem [resolvable:$true] %s713
          %719 = dma.hbm_to_vmem [thread:$0]  %s712, 6144, %s714, %s703, 384, 384, 24
        $region84: #{tpu_custom_call.1} parent=47 // pred_fallthru
          _
        // Predicated region
        $region85: #{tpu_custom_call.1} parent=47 // pred_check
          %p720 = pneg %p417
        $region86: #{tpu_custom_call.1} parent=47 // pred_check_branch
          %722 = sbr.rel (%p720) target = $region88
        $region87: #{tpu_custom_call.1} parent=47 // pred_region
          %p723 = scmp.lt.s32.totalorder %s37, 1
          %s724 = scalar_select %p723, %s37, 1
          %s725 = scalar_lea.vmem %s15, %s724
        $region88: #{tpu_custom_call.1} parent=47 // pred_fallthru
          _
        // Predicated region
        $region89: #{tpu_custom_call.1} parent=47 // pred_check
          %p726 = pneg %p443
        $region90: #{tpu_custom_call.1} parent=47 // pred_check_branch
          %728 = sbr.rel (%p726) target = $region92
        $region91: #{tpu_custom_call.1} parent=47 // pred_region
          %s729 = sand.u32 %s37, 1
          %s730 = scalar_lea.sflag [#allocation13], %s729
          %s731 = sand.u32 %s433, 1
          %s732 = smul.addr %s731, 384
          %s733 = scalar_lea.vmem [#allocation14], %s732
          %s735 = ssub.s32 6144, 6144
          %736 = vsyncadd %s730, %s735
          %s737 = smul.addr %s37, 48
          %s738 = smul.addr %s737, 128
          %s739 = scalar_lea.hbm %s16, %s738
          %s740 = sshll.u32 %s733, 4
          %s741 = int_to_ptr.vmem [resolvable:$true] %s740
          %746 = dma.hbm_to_vmem [thread:$0]  %s739, 6144, %s741, %s730, 384, 384, 24
        $region92: #{tpu_custom_call.1} parent=47 // pred_fallthru
          _
        // Predicated region
        $region93: #{tpu_custom_call.1} parent=47 // pred_check
          %p747 = pneg %p469
        $region94: #{tpu_custom_call.1} parent=47 // pred_check_branch
          %749 = sbr.rel (%p747) target = $region96
        $region95: #{tpu_custom_call.1} parent=47 // pred_region
          %p750 = scmp.lt.s32.totalorder %s37, 1
          %s751 = scalar_select %p750, %s37, 1
          %s752 = scalar_lea.vmem %s17, %s751
        $region96: #{tpu_custom_call.1} parent=47 // pred_fallthru
          _
      $region48: #{tpu_custom_call.1} parent=5 // pred_fallthru
        _
      %p753 = scmp.le.s32.totalorder 1, %s37
      %p754 = scmp.lt.s32.totalorder %s37, 3
      %p755 = pnand %p753, %p754
      %p756 = pneg %p755
      // Predicated region
      $region97: #{tpu_custom_call.1} parent=5 // pred_check
        _
      $region98: #{tpu_custom_call.1} parent=5 // pred_check_branch
        %758 = sbr.rel (%p755) target = $region100
      $region99: #{tpu_custom_call.1} parent=5 // pred_region
        %s759 = ssub.s32 %s37, 1
        // Predicated region
        $region101: #{tpu_custom_call.1} parent=99 // pred_check
          %p760 = pneg %p163
        $region102: #{tpu_custom_call.1} parent=99 // pred_check_branch
          %762 = sbr.rel (%p760) target = $region104
        $region103: #{tpu_custom_call.1} parent=99 // pred_region
          %763 = dma.done [#allocation4], 2048
        $region104: #{tpu_custom_call.1} parent=99 // pred_fallthru
          _
        %s764 = sand.u32 %s42, 1
        %s765 = scalar_lea.sflag [#allocation7], %s764
        %s766 = sand.u32 %s228, 1
        %s767 = smul.addr %s766, 256
        %s768 = scalar_lea.vmem [#allocation6], %s767
        // Predicated region
        $region105: #{tpu_custom_call.1} parent=99 // pred_check
          %p769 = pneg %p241
        $region106: #{tpu_custom_call.1} parent=99 // pred_check_branch
          %771 = sbr.rel (%p769) target = $region108
        $region107: #{tpu_custom_call.1} parent=99 // pred_region
          %772 = dma.done %s765, 4096
        $region108: #{tpu_custom_call.1} parent=99 // pred_fallthru
          _
        %s773 = sand.u32 %s42, 1
        %s774 = scalar_lea.sflag [#allocation7], %s773
        %s775 = sand.u32 %s254, 1
        %s776 = smul.addr %s775, 256
        %s777 = scalar_lea.vmem [#allocation8], %s776
        // Predicated region
        $region109: #{tpu_custom_call.1} parent=99 // pred_check
          %p778 = pneg %p267
        $region110: #{tpu_custom_call.1} parent=99 // pred_check_branch
          %780 = sbr.rel (%p778) target = $region112
        $region111: #{tpu_custom_call.1} parent=99 // pred_region
          %781 = dma.done %s774, 4096
        $region112: #{tpu_custom_call.1} parent=99 // pred_fallthru
          _
        %s782 = sand.u32 %s42, 1
        %s783 = scalar_lea.sflag [#allocation10], %s782
        %s784 = sand.u32 %s280, 1
        %s785 = smul.addr %s784, 256
        %s786 = scalar_lea.vmem [#allocation9], %s785
        // Predicated region
        $region113: #{tpu_custom_call.1} parent=99 // pred_check
          %p787 = pneg %p293
        $region114: #{tpu_custom_call.1} parent=99 // pred_check_branch
          %789 = sbr.rel (%p787) target = $region116
        $region115: #{tpu_custom_call.1} parent=99 // pred_region
          %790 = dma.done %s783, 4096
        $region116: #{tpu_custom_call.1} parent=99 // pred_fallthru
          _
        %s791 = sand.u32 %s42, 1
        %s792 = scalar_lea.sflag [#allocation10], %s791
        %s793 = sand.u32 %s306, 1
        %s794 = smul.addr %s793, 256
        %s795 = scalar_lea.vmem [#allocation11], %s794
        // Predicated region
        $region117: #{tpu_custom_call.1} parent=99 // pred_check
          %p796 = pneg %p319
        $region118: #{tpu_custom_call.1} parent=99 // pred_check_branch
          %798 = sbr.rel (%p796) target = $region120
        $region119: #{tpu_custom_call.1} parent=99 // pred_region
          %799 = dma.done %s792, 4096
        $region120: #{tpu_custom_call.1} parent=99 // pred_fallthru
          _
        %s800 = sand.u32 %s42, 1
        %s801 = scalar_lea.sflag [#allocation13], %s800
        %s802 = sand.u32 %s384, 1
        %s803 = smul.addr %s802, 384
        %s804 = scalar_lea.vmem [#allocation12], %s803
        // Predicated region
        $region121: #{tpu_custom_call.1} parent=99 // pred_check
          %p805 = pneg %p397
        $region122: #{tpu_custom_call.1} parent=99 // pred_check_branch
          %807 = sbr.rel (%p805) target = $region124
        $region123: #{tpu_custom_call.1} parent=99 // pred_region
          %808 = dma.done %s801, 6144
        $region124: #{tpu_custom_call.1} parent=99 // pred_fallthru
          _
        %s809 = sand.u32 %s42, 1
        %s810 = scalar_lea.sflag [#allocation13], %s809
        %s811 = sand.u32 %s436, 1
        %s812 = smul.addr %s811, 384
        %s813 = scalar_lea.vmem [#allocation14], %s812
        // Predicated region
        $region125: #{tpu_custom_call.1} parent=99 // pred_check
          %p814 = pneg %p449
        $region126: #{tpu_custom_call.1} parent=99 // pred_check_branch
          %816 = sbr.rel (%p814) target = $region128
        $region127: #{tpu_custom_call.1} parent=99 // pred_region
          %817 = dma.done %s810, 6144
        $region128: #{tpu_custom_call.1} parent=99 // pred_fallthru
          _
        %p818 = pneg %p58
        %p819 = pneg %p55
        %p820 = pneg %p79
        %p821 = pneg %p76
        %p822 = pneg %p100
        %p823 = pneg %p97
        %p824 = pneg %p121
        %p825 = pneg %p118
        %p826 = pneg %p142
        %p827 = pneg %p139
        %p828 = pneg %p163
        %p829 = pneg %p160
        %p830 = scmp.lt.s32.totalorder %s42, 1
        %s831 = scalar_select %p830, %s42, 1
        %s832 = scalar_lea.vmem %s6, %s831
        %p833 = pneg %p189
        %p834 = pneg %p186
        %p835 = scmp.lt.s32.totalorder %s42, 1
        %s836 = scalar_select %p835, %s42, 1
        %s837 = scalar_lea.vmem %s7, %s836
        %p838 = pneg %p215
        %p839 = pneg %p212
        %s840 = sand.u32 %s42, 1
        %s841 = scalar_lea.sflag [#allocation7], %s840
        %s842 = sand.u32 %s228, 1
        %s843 = smul.addr %s842, 256
        %s844 = scalar_lea.vmem [#allocation6], %s843
        %p845 = pneg %p241
        %p846 = pneg %p238
        %s847 = sand.u32 %s42, 1
        %s848 = scalar_lea.sflag [#allocation7], %s847
        %s849 = sand.u32 %s254, 1
        %s850 = smul.addr %s849, 256
        %s851 = scalar_lea.vmem [#allocation8], %s850
        %p852 = pneg %p267
        %p853 = pneg %p264
        %s854 = sand.u32 %s42, 1
        %s855 = scalar_lea.sflag [#allocation10], %s854
        %s856 = sand.u32 %s280, 1
        %s857 = smul.addr %s856, 256
        %s858 = scalar_lea.vmem [#allocation9], %s857
        %p859 = pneg %p293
        %p860 = pneg %p290
        %s861 = sand.u32 %s42, 1
        %s862 = scalar_lea.sflag [#allocation10], %s861
        %s863 = sand.u32 %s306, 1
        %s864 = smul.addr %s863, 256
        %s865 = scalar_lea.vmem [#allocation11], %s864
        %p866 = pneg %p319
        %p867 = pneg %p316
        %p868 = scmp.lt.s32.totalorder %s42, 1
        %s869 = scalar_select %p868, %s42, 1
        %s870 = scalar_lea.vmem %s12, %s869
        %p871 = pneg %p345
        %p872 = pneg %p342
        %p873 = scmp.lt.s32.totalorder %s42, 1
        %s874 = scalar_select %p873, %s42, 1
        %s875 = scalar_lea.vmem %s13, %s874
        %p876 = pneg %p371
        %p877 = pneg %p368
        %s878 = sand.u32 %s42, 1
        %s879 = scalar_lea.sflag [#allocation13], %s878
        %s880 = sand.u32 %s384, 1
        %s881 = smul.addr %s880, 384
        %s882 = scalar_lea.vmem [#allocation12], %s881
        %p883 = pneg %p397
        %p884 = pneg %p394
        %p885 = scmp.lt.s32.totalorder %s42, 1
        %s886 = scalar_select %p885, %s42, 1
        %s887 = scalar_lea.vmem %s15, %s886
        %p888 = pneg %p423
        %p889 = pneg %p420
        %s890 = sand.u32 %s42, 1
        %s891 = scalar_lea.sflag [#allocation13], %s890
        %s892 = sand.u32 %s436, 1
        %s893 = smul.addr %s892, 384
        %s894 = scalar_lea.vmem [#allocation14], %s893
        %p895 = pneg %p449
        %p896 = pneg %p446
        %p897 = scmp.lt.s32.totalorder %s42, 1
        %s898 = scalar_select %p897, %s42, 1
        %s899 = scalar_lea.vmem %s17, %s898
        %p900 = pneg %p475
        %p901 = pneg %p472
        %p902 = pneg %p496
        %p903 = pneg %p493
        %p904 = pneg %p517
        %p905 = pneg %p514
        %p906 = pneg %p538
        %p907 = pneg %p535
        %p908 = scmp.lt.s32.totalorder %s42, 1
        %s909 = scalar_select %p908, %s42, 1
        %s910 = scalar_lea.vmem %s6, %s909
        %p911 = scmp.lt.s32.totalorder %s42, 1
        %s912 = scalar_select %p911, %s42, 1
        %s913 = scalar_lea.vmem %s7, %s912
        %p914 = scmp.lt.s32.totalorder %s42, 1
        %s915 = scalar_select %p914, %s42, 1
        %s916 = scalar_lea.vmem %s12, %s915
        %p917 = scmp.lt.s32.totalorder %s42, 1
        %s918 = scalar_select %p917, %s42, 1
        %s919 = scalar_lea.vmem %s13, %s918
        %p920 = scmp.lt.s32.totalorder %s42, 1
        %s921 = scalar_select %p920, %s42, 1
        %s922 = scalar_lea.vmem %s15, %s921
        %p923 = scmp.lt.s32.totalorder %s42, 1
        %s924 = scalar_select %p923, %s42, 1
        %s925 = scalar_lea.vmem %s17, %s924
        %v926 = vlaneseq
        %v927 = vand.u32 %v926, 127
        %vm928 = vcmp.lt.s32.totalorder %v927, 32
        %v929 = vsel %vm928, 1, 0
        %v930 = vcvt.s32.f32 %v929
        %v931 = vld [vmem:[%s2] sm:$0xff]
        %v932 = vld [vmem:[%s2 + $0x8] sm:$0xff]
        %v933 = vld [vmem:[%s3] sm:$0xff]
        %v934 = vld [vmem:[%s3 + $0x8] sm:$0xff]
        %p935 = scmp.eq.s32.totalorder %s42, 0
        // Predicated region
        $region129: #{tpu_custom_call.1} parent=99 // pred_check
          %p936 = pneg %p935
        $region130: #{tpu_custom_call.1} parent=99 // pred_check_branch
          %938 = sbr.rel (%p936) target = $region132
        $region131: #{tpu_custom_call.1} parent=99 // pred_region
          %v939 = vld [vmem:[%s0] sm:$0xff]
          %v940 = vld [vmem:[%s0 + $0x8] sm:$0xff]
          %v941 = vld [vmem:[#allocation3] sm:$0xff]
          %v942 = vld [vmem:[#allocation3 + $0x8] sm:$0xff]
          %v943 = vld [vmem:[#allocation3 + $0x10] sm:$0xff]
          %v944 = vld [vmem:[#allocation3 + $0x18] sm:$0xff]
          %v945 = vld [vmem:[#allocation3 + $0x20] sm:$0xff]
          %v946 = vld [vmem:[#allocation3 + $0x28] sm:$0xff]
          %v947 = vld [vmem:[#allocation3 + $0x30] sm:$0xff]
          %v948 = vld [vmem:[#allocation3 + $0x38] sm:$0xff]
          %v949 = vld [vmem:[#allocation3 + $0x40] sm:$0xff]
          %v950 = vld [vmem:[#allocation3 + $0x48] sm:$0xff]
          %v951 = vld [vmem:[#allocation3 + $0x50] sm:$0xff]
          %v952 = vld [vmem:[#allocation3 + $0x58] sm:$0xff]
          %v953 = vld [vmem:[#allocation3 + $0x60] sm:$0xff]
          %v954 = vld [vmem:[#allocation3 + $0x68] sm:$0xff]
          %v955 = vld [vmem:[#allocation3 + $0x70] sm:$0xff]
          %v956 = vld [vmem:[#allocation3 + $0x78] sm:$0xff]
          %v957 = vld [vmem:[%s4] sm:$0xff]
          %v958 = vld [vmem:[%s4 + $0x8] sm:$0xff]
          %959 = vmatprep.subr.mxu0 0.0
          %960 = vmatpush1.msra.mxu0 %v941
          %961 = vmatprep.subr.mxu0 0.0
          %962 = vmatpush1.msra.mxu0 %v942
          %963 = vmatprep.subr.mxu0 0.0
          %964 = vmatpush1.msra.mxu0 %v943
          %965 = vmatprep.subr.mxu0 0.0
          %966 = vmatpush1.msra.mxu0 %v944
          %967 = vmatprep.subr.mxu0 0.0
          %968 = vmatpush1.msra.mxu0 %v945
          %969 = vmatprep.subr.mxu0 0.0
          %970 = vmatpush1.msra.mxu0 %v946
          %971 = vmatprep.subr.mxu0 0.0
          %972 = vmatpush1.msra.mxu0 %v947
          %973 = vmatprep.subr.mxu0 0.0
          %974 = vmatpush1.msra.mxu0 %v948
          %975 = vmatprep.subr.mxu0 0.0
          %976 = vmatpush1.msra.mxu0 %v949
          %977 = vmatprep.subr.mxu0 0.0
          %978 = vmatpush1.msra.mxu0 %v950
          %979 = vmatprep.subr.mxu0 0.0
          %980 = vmatpush1.msra.mxu0 %v951
          %981 = vmatprep.subr.mxu0 0.0
          %982 = vmatpush1.msra.mxu0 %v952
          %983 = vmatprep.subr.mxu0 0.0
          %984 = vmatpush1.msra.mxu0 %v953
          %985 = vmatprep.subr.mxu0 0.0
          %986 = vmatpush1.msra.mxu0 %v954
          %987 = vmatprep.subr.mxu0 0.0
          %988 = vmatpush1.msra.mxu0 %v955
          %989 = vmatprep.subr.mxu0 0.0
          %990 = vmatpush1.msra.mxu0 %v956
          %991 = vmatprep.subr.mxu0 0.0
          %992 = vmatpush1.msra.mxu0 0.0
          %993 = vmatprep.subr.mxu0 0.0
          %994 = vmatpush1.msra.mxu0 0.0
          %995 = vmatprep.subr.mxu0 0.0
          %996 = vmatpush1.msra.mxu0 0.0
          %997 = vmatprep.subr.mxu0 0.0
          %998 = vmatpush1.msra.mxu0 0.0
          %999 = vmatprep.subr.mxu0 0.0
          %1000 = vmatpush1.msra.mxu0 0.0
          %1001 = vmatprep.subr.mxu0 0.0
          %1002 = vmatpush1.msra.mxu0 0.0
          %1003 = vmatprep.subr.mxu0 0.0
          %1004 = vmatpush1.msra.mxu0 0.0
          %1005 = vmatprep.subr.mxu0 0.0
          %1006 = vmatpush1.msra.mxu0 0.0
          %1007 = vmatprep.subr.mxu0 0.0
          %1008 = vmatpush1.msra.mxu0 0.0
          %1009 = vmatprep.subr.mxu0 0.0
          %1010 = vmatpush1.msra.mxu0 0.0
          %1011 = vmatprep.subr.mxu0 0.0
          %1012 = vmatpush1.msra.mxu0 0.0
          %1013 = vmatprep.subr.mxu0 0.0
          %1014 = vmatpush1.msra.mxu0 0.0
          %1015 = vmatprep.subr.mxu0 0.0
          %1016 = vmatpush1.msra.mxu0 0.0
          %1017 = vmatprep.subr.mxu0 0.0
          %1018 = vmatpush1.msra.mxu0 0.0
          %1019 = vmatprep.subr.mxu0 0.0
          %1020 = vmatpush1.msra.mxu0 0.0
          %1021 = vmatprep.subr.mxu0 0.0
          %1022 = vmatpush1.msra.mxu0 0.0
          %1023 = vmatprep.mubr.f32.mxu0 0.0
          %1024 = vmatmul.mubr.f32.gmra.mrb[0].mxu0 %v939
          %v1025 = vpop.f32.mrb[0].mxu0
          %v1026 = vadd.f32 %v957, %v1025
          %v1027 = vpop.f32.mrb[0].mxu0
          %1028 = vmatprep.mubr.f32.mxu0 0.0
          %1029 = vmatmul.mubr.f32.gmra.mrb[0].mxu0 %v940
          %v1030 = vpop.f32.mrb[0].mxu0
          %v1031 = vadd.f32 %v958, %v1030
          %v1032 = vpop.f32.mrb[0].mxu0
          %1033 = vdwg.mxu0
          %1034 = vst [vmem:[#allocation2] sm:$0xff] %v1026
          %1035 = vst [vmem:[#allocation2 + $0x8] sm:$0xff] %v1031
        $region132: #{tpu_custom_call.1} parent=99 // pred_fallthru
          _
        %v1036 = vld [vmem:[#allocation2] sm:$0xff]
        %v1037 = vld [vmem:[#allocation2 + $0x8] sm:$0xff]
        %v1038 = vld [vmem:[%s1] sm:$0xff]
        %v1039 = vld [vmem:[%s1 + $0x8] sm:$0xff]
        %v1040 = vld [vmem:[%s910] sm:$0x1]
        %v1041 = vld [vmem:[%s913] sm:$0x1]
        %1042 = vadd.xlane.f32.xlu0 %v1036
        %v1043 = vpop.xlane.xlu0 %1042
        %1044 = vadd.xlane.f32.xlu0 %v1037
        %v1045 = vpop.xlane.xlu0 %1044
        %v1046 = vmul.f32 %v1043, 0.03125
        %v1047 = vmul.f32 %v1045, 0.03125
        %v1048 = vsub.f32 %v1036, %v1046
        %v1049 = vsub.f32 %v1037, %v1047
        %v1050 = vmul.f32 %v1048, %v930
        %v1051 = vmul.f32 %v1049, %v930
        %v1052 = vmul.f32 %v1050, %v1050
        %v1053 = vmul.f32 %v1051, %v1051
        %1054 = vadd.xlane.f32.xlu0 %v1052
        %v1055 = vpop.xlane.xlu0 %1054
        %1056 = vadd.xlane.f32.xlu0 %v1053
        %v1057 = vpop.xlane.xlu0 %1056
        %v1058 = vmul.f32 %v1055, 0.032258064
        %v1059 = vmul.f32 %v1057, 0.032258064
        %v1060 = vrsqrt.pop %v1058
        %v1061 = vmul.f32 %v1058, %v1060
        %vm1062 = vcmp.eq.f32.partialorder %v1058, inf
        %v1063 = vsel %vm1062, %v1058, %v1061
        %vm1064 = vcmp.eq.f32.partialorder %v1058, 0.0
        %v1065 = vand.u32 %v1058, 2147483648
        %v1066 = vsel %vm1064, %v1065, %v1063
        %v1067 = vrsqrt.pop %v1059
        %v1068 = vmul.f32 %v1059, %v1067
        %vm1069 = vcmp.eq.f32.partialorder %v1059, inf
        %v1070 = vsel %vm1069, %v1059, %v1068
        %vm1071 = vcmp.eq.f32.partialorder %v1059, 0.0
        %v1072 = vand.u32 %v1059, 2147483648
        %v1073 = vsel %vm1071, %v1072, %v1070
        %v1074 = vadd.f32 %v1066, 1e-06
        %v1075 = vadd.f32 %v1073, 1e-06
        %v1076 = vrcp.pop %v1074
        %v1077 = vmul.f32 1.0, %v1076
        %v1078 = vrcp.pop %v1075
        %v1079 = vmul.f32 1.0, %v1078
        %v1081 = vlaneseq
        %v1082 = vshrl.u32 %v1081, 7
        %v1083 = vsub.s32 0, %v1082
        %v1084 = vrot.slane %v1040, %v1083
        %v1086 = vmul.f32 %v1084, %v1050
        %v1087 = vmul.f32 %v1084, %v1051
        %v1088 = vmul.f32 %v1086, %v1077
        %v1089 = vmul.f32 %v1087, %v1079
        %v1091 = vlaneseq
        %v1092 = vshrl.u32 %v1091, 7
        %v1093 = vsub.s32 0, %v1092
        %v1094 = vrot.slane %v1041, %v1093
        %v1096 = vadd.f32 %v1088, %v1094
        %v1097 = vadd.f32 %v1089, %v1094
        %v1098 = vld [vmem:[%s768] sm:$0xff]
        %v1099 = vld [vmem:[%s768 + $0x8] sm:$0xff]
        %v1100 = vld [vmem:[%s768 + $0x10] sm:$0xff]
        %v1101 = vld [vmem:[%s768 + $0x18] sm:$0xff]
        %v1102 = vld [vmem:[%s768 + $0x20] sm:$0xff]
        %v1103 = vld [vmem:[%s768 + $0x28] sm:$0xff]
        %v1104 = vld [vmem:[%s768 + $0x30] sm:$0xff]
        %v1105 = vld [vmem:[%s768 + $0x38] sm:$0xff]
        %v1106 = vld [vmem:[%s768 + $0x40] sm:$0xff]
        %v1107 = vld [vmem:[%s768 + $0x48] sm:$0xff]
        %v1108 = vld [vmem:[%s768 + $0x50] sm:$0xff]
        %v1109 = vld [vmem:[%s768 + $0x58] sm:$0xff]
        %v1110 = vld [vmem:[%s768 + $0x60] sm:$0xff]
        %v1111 = vld [vmem:[%s768 + $0x68] sm:$0xff]
        %v1112 = vld [vmem:[%s768 + $0x70] sm:$0xff]
        %v1113 = vld [vmem:[%s768 + $0x78] sm:$0xff]
        %v1114 = vld [vmem:[%s768 + $0x80] sm:$0xff]
        %v1115 = vld [vmem:[%s768 + $0x88] sm:$0xff]
        %v1116 = vld [vmem:[%s768 + $0x90] sm:$0xff]
        %v1117 = vld [vmem:[%s768 + $0x98] sm:$0xff]
        %v1118 = vld [vmem:[%s768 + $0xa0] sm:$0xff]
        %v1119 = vld [vmem:[%s768 + $0xa8] sm:$0xff]
        %v1120 = vld [vmem:[%s768 + $0xb0] sm:$0xff]
        %v1121 = vld [vmem:[%s768 + $0xb8] sm:$0xff]
        %v1122 = vld [vmem:[%s768 + $0xc0] sm:$0xff]
        %v1123 = vld [vmem:[%s768 + $0xc8] sm:$0xff]
        %v1124 = vld [vmem:[%s768 + $0xd0] sm:$0xff]
        %v1125 = vld [vmem:[%s768 + $0xd8] sm:$0xff]
        %v1126 = vld [vmem:[%s768 + $0xe0] sm:$0xff]
        %v1127 = vld [vmem:[%s768 + $0xe8] sm:$0xff]
        %v1128 = vld [vmem:[%s768 + $0xf0] sm:$0xff]
        %v1129 = vld [vmem:[%s768 + $0xf8] sm:$0xff]
        %1130 = vmatprep.subr.mxu0 %v1099
        %1131 = vmatpush1.msra.mxu0 %v1098
        %1132 = vmatprep.subr.mxu0 %v1101
        %1133 = vmatpush1.msra.mxu0 %v1100
        %1134 = vmatprep.subr.mxu0 %v1103
        %1135 = vmatpush1.msra.mxu0 %v1102
        %1136 = vmatprep.subr.mxu0 %v1105
        %1137 = vmatpush1.msra.mxu0 %v1104
        %1138 = vmatprep.subr.mxu0 %v1107
        %1139 = vmatpush1.msra.mxu0 %v1106
        %1140 = vmatprep.subr.mxu0 %v1109
        %1141 = vmatpush1.msra.mxu0 %v1108
        %1142 = vmatprep.subr.mxu0 %v1111
        %1143 = vmatpush1.msra.mxu0 %v1110
        %1144 = vmatprep.subr.mxu0 %v1113
        %1145 = vmatpush1.msra.mxu0 %v1112
        %1146 = vmatprep.subr.mxu0 %v1115
        %1147 = vmatpush1.msra.mxu0 %v1114
        %1148 = vmatprep.subr.mxu0 %v1117
        %1149 = vmatpush1.msra.mxu0 %v1116
        %1150 = vmatprep.subr.mxu0 %v1119
        %1151 = vmatpush1.msra.mxu0 %v1118
        %1152 = vmatprep.subr.mxu0 %v1121
        %1153 = vmatpush1.msra.mxu0 %v1120
        %1154 = vmatprep.subr.mxu0 %v1123
        %1155 = vmatpush1.msra.mxu0 %v1122
        %1156 = vmatprep.subr.mxu0 %v1125
        %1157 = vmatpush1.msra.mxu0 %v1124
        %1158 = vmatprep.subr.mxu0 %v1127
        %1159 = vmatpush1.msra.mxu0 %v1126
        %1160 = vmatprep.subr.mxu0 %v1129
        %1161 = vmatpush1.msra.mxu0 %v1128
        %1162 = vmatprep.subr.mxu0 0.0
        %1163 = vmatpush1.msra.mxu0 0.0
        %1164 = vmatprep.subr.mxu0 0.0
        %1165 = vmatpush1.msra.mxu0 0.0
        %1166 = vmatprep.subr.mxu0 0.0
        %1167 = vmatpush1.msra.mxu0 0.0
        %1168 = vmatprep.subr.mxu0 0.0
        %1169 = vmatpush1.msra.mxu0 0.0
        %1170 = vmatprep.subr.mxu0 0.0
        %1171 = vmatpush1.msra.mxu0 0.0
        %1172 = vmatprep.subr.mxu0 0.0
        %1173 = vmatpush1.msra.mxu0 0.0
        %1174 = vmatprep.subr.mxu0 0.0
        %1175 = vmatpush1.msra.mxu0 0.0
        %1176 = vmatprep.subr.mxu0 0.0
        %1177 = vmatpush1.msra.mxu0 0.0
        %1178 = vmatprep.subr.mxu0 0.0
        %1179 = vmatpush1.msra.mxu0 0.0
        %1180 = vmatprep.subr.mxu0 0.0
        %1181 = vmatpush1.msra.mxu0 0.0
        %1182 = vmatprep.subr.mxu0 0.0
        %1183 = vmatpush1.msra.mxu0 0.0
        %1184 = vmatprep.subr.mxu0 0.0
        %1185 = vmatpush1.msra.mxu0 0.0
        %1186 = vmatprep.subr.mxu0 0.0
        %1187 = vmatpush1.msra.mxu0 0.0
        %1188 = vmatprep.subr.mxu0 0.0
        %1189 = vmatpush1.msra.mxu0 0.0
        %1190 = vmatprep.subr.mxu0 0.0
        %1191 = vmatpush1.msra.mxu0 0.0
        %1192 = vmatprep.subr.mxu0 0.0
        %1193 = vmatpush1.msra.mxu0 0.0
        %1194 = vmatprep.mubr.f32.mxu0 0.0
        %1195 = vmatmul.mubr.f32.gmra.mrb[0].mxu0 %v1096
        %v1196 = vpop.f32.mrb[0].mxu0
        %v1197 = vadd.f32 0.0, %v1196
        %v1198 = vpop.f32.mrb[0].mxu0
        %v1199 = vadd.f32 0.0, %v1198
        %1200 = vmatprep.mubr.f32.mxu0 0.0
        %1201 = vmatmul.mubr.f32.gmra.mrb[0].mxu0 %v1097
        %v1202 = vpop.f32.mrb[0].mxu0
        %v1203 = vadd.f32 0.0, %v1202
        %v1204 = vpop.f32.mrb[0].mxu0
        %v1205 = vadd.f32 0.0, %v1204
        %1206 = vdwg.mxu0
        %v1207 = vmul.f32 %v1197, 0.25
        %v1208 = vmul.f32 %v1199, 0.25
        %v1209 = vmul.f32 %v1203, 0.25
        %v1210 = vmul.f32 %v1205, 0.25
        %v1211 = vld [vmem:[%s777] sm:$0xff]
        %v1212 = vld [vmem:[%s777 + $0x8] sm:$0xff]
        %v1213 = vld [vmem:[%s777 + $0x10] sm:$0xff]
        %v1214 = vld [vmem:[%s777 + $0x18] sm:$0xff]
        %v1215 = vld [vmem:[%s777 + $0x20] sm:$0xff]
        %v1216 = vld [vmem:[%s777 + $0x28] sm:$0xff]
        %v1217 = vld [vmem:[%s777 + $0x30] sm:$0xff]
        %v1218 = vld [vmem:[%s777 + $0x38] sm:$0xff]
        %v1219 = vld [vmem:[%s777 + $0x40] sm:$0xff]
        %v1220 = vld [vmem:[%s777 + $0x48] sm:$0xff]
        %v1221 = vld [vmem:[%s777 + $0x50] sm:$0xff]
        %v1222 = vld [vmem:[%s777 + $0x58] sm:$0xff]
        %v1223 = vld [vmem:[%s777 + $0x60] sm:$0xff]
        %v1224 = vld [vmem:[%s777 + $0x68] sm:$0xff]
        %v1225 = vld [vmem:[%s777 + $0x70] sm:$0xff]
        %v1226 = vld [vmem:[%s777 + $0x78] sm:$0xff]
        %v1227 = vld [vmem:[%s777 + $0x80] sm:$0xff]
        %v1228 = vld [vmem:[%s777 + $0x88] sm:$0xff]
        %v1229 = vld [vmem:[%s777 + $0x90] sm:$0xff]
        %v1230 = vld [vmem:[%s777 + $0x98] sm:$0xff]
        %v1231 = vld [vmem:[%s777 + $0xa0] sm:$0xff]
        %v1232 = vld [vmem:[%s777 + $0xa8] sm:$0xff]
        %v1233 = vld [vmem:[%s777 + $0xb0] sm:$0xff]
        %v1234 = vld [vmem:[%s777 + $0xb8] sm:$0xff]
        %v1235 = vld [vmem:[%s777 + $0xc0] sm:$0xff]
        %v1236 = vld [vmem:[%s777 + $0xc8] sm:$0xff]
        %v1237 = vld [vmem:[%s777 + $0xd0] sm:$0xff]
        %v1238 = vld [vmem:[%s777 + $0xd8] sm:$0xff]
        %v1239 = vld [vmem:[%s777 + $0xe0] sm:$0xff]
        %v1240 = vld [vmem:[%s777 + $0xe8] sm:$0xff]
        %v1241 = vld [vmem:[%s777 + $0xf0] sm:$0xff]
        %v1242 = vld [vmem:[%s777 + $0xf8] sm:$0xff]
        %1243 = vmatprep.subr.mxu0 %v1212
        %1244 = vmatpush1.msra.mxu0 %v1211
        %1245 = vmatprep.subr.mxu0 %v1214
        %1246 = vmatpush1.msra.mxu0 %v1213
        %1247 = vmatprep.subr.mxu0 %v1216
        %1248 = vmatpush1.msra.mxu0 %v1215
        %1249 = vmatprep.subr.mxu0 %v1218
        %1250 = vmatpush1.msra.mxu0 %v1217
        %1251 = vmatprep.subr.mxu0 %v1220
        %1252 = vmatpush1.msra.mxu0 %v1219
        %1253 = vmatprep.subr.mxu0 %v1222
        %1254 = vmatpush1.msra.mxu0 %v1221
        %1255 = vmatprep.subr.mxu0 %v1224
        %1256 = vmatpush1.msra.mxu0 %v1223
        %1257 = vmatprep.subr.mxu0 %v1226
        %1258 = vmatpush1.msra.mxu0 %v1225
        %1259 = vmatprep.subr.mxu0 %v1228
        %1260 = vmatpush1.msra.mxu0 %v1227
        %1261 = vmatprep.subr.mxu0 %v1230
        %1262 = vmatpush1.msra.mxu0 %v1229
        %1263 = vmatprep.subr.mxu0 %v1232
        %1264 = vmatpush1.msra.mxu0 %v1231
        %1265 = vmatprep.subr.mxu0 %v1234
        %1266 = vmatpush1.msra.mxu0 %v1233
        %1267 = vmatprep.subr.mxu0 %v1236
        %1268 = vmatpush1.msra.mxu0 %v1235
        %1269 = vmatprep.subr.mxu0 %v1238
        %1270 = vmatpush1.msra.mxu0 %v1237
        %1271 = vmatprep.subr.mxu0 %v1240
        %1272 = vmatpush1.msra.mxu0 %v1239
        %1273 = vmatprep.subr.mxu0 %v1242
        %1274 = vmatpush1.msra.mxu0 %v1241
        %1275 = vmatprep.subr.mxu0 0.0
        %1276 = vmatpush1.msra.mxu0 0.0
        %1277 = vmatprep.subr.mxu0 0.0
        %1278 = vmatpush1.msra.mxu0 0.0
        %1279 = vmatprep.subr.mxu0 0.0
        %1280 = vmatpush1.msra.mxu0 0.0
        %1281 = vmatprep.subr.mxu0 0.0
        %1282 = vmatpush1.msra.mxu0 0.0
        %1283 = vmatprep.subr.mxu0 0.0
        %1284 = vmatpush1.msra.mxu0 0.0
        %1285 = vmatprep.subr.mxu0 0.0
        %1286 = vmatpush1.msra.mxu0 0.0
        %1287 = vmatprep.subr.mxu0 0.0
        %1288 = vmatpush1.msra.mxu0 0.0
        %1289 = vmatprep.subr.mxu0 0.0
        %1290 = vmatpush1.msra.mxu0 0.0
        %1291 = vmatprep.subr.mxu0 0.0
        %1292 = vmatpush1.msra.mxu0 0.0
        %1293 = vmatprep.subr.mxu0 0.0
        %1294 = vmatpush1.msra.mxu0 0.0
        %1295 = vmatprep.subr.mxu0 0.0
        %1296 = vmatpush1.msra.mxu0 0.0
        %1297 = vmatprep.subr.mxu0 0.0
        %1298 = vmatpush1.msra.mxu0 0.0
        %1299 = vmatprep.subr.mxu0 0.0
        %1300 = vmatpush1.msra.mxu0 0.0
        %1301 = vmatprep.subr.mxu0 0.0
        %1302 = vmatpush1.msra.mxu0 0.0
        %1303 = vmatprep.subr.mxu0 0.0
        %1304 = vmatpush1.msra.mxu0 0.0
        %1305 = vmatprep.subr.mxu0 0.0
        %1306 = vmatpush1.msra.mxu0 0.0
        %1307 = vmatprep.mubr.f32.mxu0 0.0
        %1308 = vmatmul.mubr.f32.gmra.mrb[0].mxu0 %v1096
        %v1309 = vpop.f32.mrb[0].mxu0
        %v1310 = vadd.f32 0.0, %v1309
        %v1311 = vpop.f32.mrb[0].mxu0
        %v1312 = vadd.f32 0.0, %v1311
        %1313 = vmatprep.mubr.f32.mxu0 0.0
        %1314 = vmatmul.mubr.f32.gmra.mrb[0].mxu0 %v1097
        %v1315 = vpop.f32.mrb[0].mxu0
        %v1316 = vadd.f32 0.0, %v1315
        %v1317 = vpop.f32.mrb[0].mxu0
        %v1318 = vadd.f32 0.0, %v1317
        %1319 = vdwg.mxu0
        %v1320 = vld [vmem:[%s786] sm:$0xff]
        %v1321 = vld [vmem:[%s786 + $0x8] sm:$0xff]
        %v1322 = vld [vmem:[%s786 + $0x10] sm:$0xff]
        %v1323 = vld [vmem:[%s786 + $0x18] sm:$0xff]
        %v1324 = vld [vmem:[%s786 + $0x20] sm:$0xff]
        %v1325 = vld [vmem:[%s786 + $0x28] sm:$0xff]
        %v1326 = vld [vmem:[%s786 + $0x30] sm:$0xff]
        %v1327 = vld [vmem:[%s786 + $0x38] sm:$0xff]
        %v1328 = vld [vmem:[%s786 + $0x40] sm:$0xff]
        %v1329 = vld [vmem:[%s786 + $0x48] sm:$0xff]
        %v1330 = vld [vmem:[%s786 + $0x50] sm:$0xff]
        %v1331 = vld [vmem:[%s786 + $0x58] sm:$0xff]
        %v1332 = vld [vmem:[%s786 + $0x60] sm:$0xff]
        %v1333 = vld [vmem:[%s786 + $0x68] sm:$0xff]
        %v1334 = vld [vmem:[%s786 + $0x70] sm:$0xff]
        %v1335 = vld [vmem:[%s786 + $0x78] sm:$0xff]
        %v1336 = vld [vmem:[%s786 + $0x80] sm:$0xff]
        %v1337 = vld [vmem:[%s786 + $0x88] sm:$0xff]
        %v1338 = vld [vmem:[%s786 + $0x90] sm:$0xff]
        %v1339 = vld [vmem:[%s786 + $0x98] sm:$0xff]
        %v1340 = vld [vmem:[%s786 + $0xa0] sm:$0xff]
        %v1341 = vld [vmem:[%s786 + $0xa8] sm:$0xff]
        %v1342 = vld [vmem:[%s786 + $0xb0] sm:$0xff]
        %v1343 = vld [vmem:[%s786 + $0xb8] sm:$0xff]
        %v1344 = vld [vmem:[%s786 + $0xc0] sm:$0xff]
        %v1345 = vld [vmem:[%s786 + $0xc8] sm:$0xff]
        %v1346 = vld [vmem:[%s786 + $0xd0] sm:$0xff]
        %v1347 = vld [vmem:[%s786 + $0xd8] sm:$0xff]
        %v1348 = vld [vmem:[%s786 + $0xe0] sm:$0xff]
        %v1349 = vld [vmem:[%s786 + $0xe8] sm:$0xff]
        %v1350 = vld [vmem:[%s786 + $0xf0] sm:$0xff]
        %v1351 = vld [vmem:[%s786 + $0xf8] sm:$0xff]
        %1352 = vmatprep.subr.mxu0 %v1321
        %1353 = vmatpush1.msra.mxu0 %v1320
        %1354 = vmatprep.subr.mxu0 %v1323
        %1355 = vmatpush1.msra.mxu0 %v1322
        %1356 = vmatprep.subr.mxu0 %v1325
        %1357 = vmatpush1.msra.mxu0 %v1324
        %1358 = vmatprep.subr.mxu0 %v1327
        %1359 = vmatpush1.msra.mxu0 %v1326
        %1360 = vmatprep.subr.mxu0 %v1329
        %1361 = vmatpush1.msra.mxu0 %v1328
        %1362 = vmatprep.subr.mxu0 %v1331
        %1363 = vmatpush1.msra.mxu0 %v1330
        %1364 = vmatprep.subr.mxu0 %v1333
        %1365 = vmatpush1.msra.mxu0 %v1332
        %1366 = vmatprep.subr.mxu0 %v1335
        %1367 = vmatpush1.msra.mxu0 %v1334
        %1368 = vmatprep.subr.mxu0 %v1337
        %1369 = vmatpush1.msra.mxu0 %v1336
        %1370 = vmatprep.subr.mxu0 %v1339
        %1371 = vmatpush1.msra.mxu0 %v1338
        %1372 = vmatprep.subr.mxu0 %v1341
        %1373 = vmatpush1.msra.mxu0 %v1340
        %1374 = vmatprep.subr.mxu0 %v1343
        %1375 = vmatpush1.msra.mxu0 %v1342
        %1376 = vmatprep.subr.mxu0 %v1345
        %1377 = vmatpush1.msra.mxu0 %v1344
        %1378 = vmatprep.subr.mxu0 %v1347
        %1379 = vmatpush1.msra.mxu0 %v1346
        %1380 = vmatprep.subr.mxu0 %v1349
        %1381 = vmatpush1.msra.mxu0 %v1348
        %1382 = vmatprep.subr.mxu0 %v1351
        %1383 = vmatpush1.msra.mxu0 %v1350
        %1384 = vmatprep.subr.mxu0 0.0
        %1385 = vmatpush1.msra.mxu0 0.0
        %1386 = vmatprep.subr.mxu0 0.0
        %1387 = vmatpush1.msra.mxu0 0.0
        %1388 = vmatprep.subr.mxu0 0.0
        %1389 = vmatpush1.msra.mxu0 0.0
        %1390 = vmatprep.subr.mxu0 0.0
        %1391 = vmatpush1.msra.mxu0 0.0
        %1392 = vmatprep.subr.mxu0 0.0
        %1393 = vmatpush1.msra.mxu0 0.0
        %1394 = vmatprep.subr.mxu0 0.0
        %1395 = vmatpush1.msra.mxu0 0.0
        %1396 = vmatprep.subr.mxu0 0.0
        %1397 = vmatpush1.msra.mxu0 0.0
        %1398 = vmatprep.subr.mxu0 0.0
        %1399 = vmatpush1.msra.mxu0 0.0
        %1400 = vmatprep.subr.mxu0 0.0
        %1401 = vmatpush1.msra.mxu0 0.0
        %1402 = vmatprep.subr.mxu0 0.0
        %1403 = vmatpush1.msra.mxu0 0.0
        %1404 = vmatprep.subr.mxu0 0.0
        %1405 = vmatpush1.msra.mxu0 0.0
        %1406 = vmatprep.subr.mxu0 0.0
        %1407 = vmatpush1.msra.mxu0 0.0
        %1408 = vmatprep.subr.mxu0 0.0
        %1409 = vmatpush1.msra.mxu0 0.0
        %1410 = vmatprep.subr.mxu0 0.0
        %1411 = vmatpush1.msra.mxu0 0.0
        %1412 = vmatprep.subr.mxu0 0.0
        %1413 = vmatpush1.msra.mxu0 0.0
        %1414 = vmatprep.subr.mxu0 0.0
        %1415 = vmatpush1.msra.mxu0 0.0
        %1416 = vmatprep.mubr.f32.mxu0 0.0
        %1417 = vmatmul.mubr.f32.gmra.mrb[0].mxu0 %v1096
        %v1418 = vpop.f32.mrb[0].mxu0
        %v1419 = vadd.f32 0.0, %v1418
        %v1420 = vpop.f32.mrb[0].mxu0
        %v1421 = vadd.f32 0.0, %v1420
        %1422 = vmatprep.mubr.f32.mxu0 0.0
        %1423 = vmatmul.mubr.f32.gmra.mrb[0].mxu0 %v1097
        %v1424 = vpop.f32.mrb[0].mxu0
        %v1425 = vadd.f32 0.0, %v1424
        %v1426 = vpop.f32.mrb[0].mxu0
        %v1427 = vadd.f32 0.0, %v1426
        %1428 = vdwg.mxu0
        %v1429 = vld [vmem:[%s795] sm:$0xff]
        %v1430 = vld [vmem:[%s795 + $0x8] sm:$0xff]
        %v1431 = vld [vmem:[%s795 + $0x10] sm:$0xff]
        %v1432 = vld [vmem:[%s795 + $0x18] sm:$0xff]
        %v1433 = vld [vmem:[%s795 + $0x20] sm:$0xff]
        %v1434 = vld [vmem:[%s795 + $0x28] sm:$0xff]
        %v1435 = vld [vmem:[%s795 + $0x30] sm:$0xff]
        %v1436 = vld [vmem:[%s795 + $0x38] sm:$0xff]
        %v1437 = vld [vmem:[%s795 + $0x40] sm:$0xff]
        %v1438 = vld [vmem:[%s795 + $0x48] sm:$0xff]
        %v1439 = vld [vmem:[%s795 + $0x50] sm:$0xff]
        %v1440 = vld [vmem:[%s795 + $0x58] sm:$0xff]
        %v1441 = vld [vmem:[%s795 + $0x60] sm:$0xff]
        %v1442 = vld [vmem:[%s795 + $0x68] sm:$0xff]
        %v1443 = vld [vmem:[%s795 + $0x70] sm:$0xff]
        %v1444 = vld [vmem:[%s795 + $0x78] sm:$0xff]
        %v1445 = vld [vmem:[%s795 + $0x80] sm:$0xff]
        %v1446 = vld [vmem:[%s795 + $0x88] sm:$0xff]
        %v1447 = vld [vmem:[%s795 + $0x90] sm:$0xff]
        %v1448 = vld [vmem:[%s795 + $0x98] sm:$0xff]
        %v1449 = vld [vmem:[%s795 + $0xa0] sm:$0xff]
        %v1450 = vld [vmem:[%s795 + $0xa8] sm:$0xff]
        %v1451 = vld [vmem:[%s795 + $0xb0] sm:$0xff]
        %v1452 = vld [vmem:[%s795 + $0xb8] sm:$0xff]
        %v1453 = vld [vmem:[%s795 + $0xc0] sm:$0xff]
        %v1454 = vld [vmem:[%s795 + $0xc8] sm:$0xff]
        %v1455 = vld [vmem:[%s795 + $0xd0] sm:$0xff]
        %v1456 = vld [vmem:[%s795 + $0xd8] sm:$0xff]
        %v1457 = vld [vmem:[%s795 + $0xe0] sm:$0xff]
        %v1458 = vld [vmem:[%s795 + $0xe8] sm:$0xff]
        %v1459 = vld [vmem:[%s795 + $0xf0] sm:$0xff]
        %v1460 = vld [vmem:[%s795 + $0xf8] sm:$0xff]
        %1461 = vmatprep.subr.mxu0 0.0
        %1462 = vmatpush1.xpose.msra.mxu0 %v1310
        %1463 = vmatprep.subr.mxu0 0.0
        %1464 = vmatpush1.xpose.msra.mxu0 %v1316
        %1465 = vmatprep.subr.mxu0 0.0
        %1466 = vmatpush1.xpose.msra.mxu0 0.0
        %1467 = vmatprep.subr.mxu0 0.0
        %1468 = vmatpush1.xpose.msra.mxu0 0.0
        %1469 = vmatprep.subr.mxu0 0.0
        %1470 = vmatpush1.xpose.msra.mxu0 0.0
        %1471 = vmatprep.subr.mxu0 0.0
        %1472 = vmatpush1.xpose.msra.mxu0 0.0
        %1473 = vmatprep.subr.mxu0 0.0
        %1474 = vmatpush1.xpose.msra.mxu0 0.0
        %1475 = vmatprep.subr.mxu0 0.0
        %1476 = vmatpush1.xpose.msra.mxu0 0.0
        %1477 = vmatprep.subr.mxu0 0.0
        %1478 = vmatpush1.xpose.msra.mxu0 0.0
        %1479 = vmatprep.subr.mxu0 0.0
        %1480 = vmatpush1.xpose.msra.mxu0 0.0
        %1481 = vmatprep.subr.mxu0 0.0
        %1482 = vmatpush1.xpose.msra.mxu0 0.0
        %1483 = vmatprep.subr.mxu0 0.0
        %1484 = vmatpush1.xpose.msra.mxu0 0.0
        %1485 = vmatprep.subr.mxu0 0.0
        %1486 = vmatpush1.xpose.msra.mxu0 0.0
        %1487 = vmatprep.subr.mxu0 0.0
        %1488 = vmatpush1.xpose.msra.mxu0 0.0
        %1489 = vmatprep.subr.mxu0 0.0
        %1490 = vmatpush1.xpose.msra.mxu0 0.0
        %1491 = vmatprep.subr.mxu0 0.0
        %1492 = vmatpush1.xpose.msra.mxu0 0.0
        %1493 = vmatprep.subr.mxu0 0.0
        %1494 = vmatpush1.xpose.msra.mxu0 0.0
        %1495 = vmatprep.subr.mxu0 0.0
        %1496 = vmatpush1.xpose.msra.mxu0 0.0
        %1497 = vmatprep.subr.mxu0 0.0
        %1498 = vmatpush1.xpose.msra.mxu0 0.0
        %1499 = vmatprep.subr.mxu0 0.0
        %1500 = vmatpush1.xpose.msra.mxu0 0.0
        %1501 = vmatprep.subr.mxu0 0.0
        %1502 = vmatpush1.xpose.msra.mxu0 0.0
        %1503 = vmatprep.subr.mxu0 0.0
        %1504 = vmatpush1.xpose.msra.mxu0 0.0
        %1505 = vmatprep.subr.mxu0 0.0
        %1506 = vmatpush1.xpose.msra.mxu0 0.0
        %1507 = vmatprep.subr.mxu0 0.0
        %1508 = vmatpush1.xpose.msra.mxu0 0.0
        %1509 = vmatprep.subr.mxu0 0.0
        %1510 = vmatpush1.xpose.msra.mxu0 0.0
        %1511 = vmatprep.subr.mxu0 0.0
        %1512 = vmatpush1.xpose.msra.mxu0 0.0
        %1513 = vmatprep.subr.mxu0 0.0
        %1514 = vmatpush1.xpose.msra.mxu0 0.0
        %1515 = vmatprep.subr.mxu0 0.0
        %1516 = vmatpush1.xpose.msra.mxu0 0.0
        %1517 = vmatprep.subr.mxu0 0.0
        %1518 = vmatpush1.xpose.msra.mxu0 0.0
        %1519 = vmatprep.subr.mxu0 0.0
        %1520 = vmatpush1.xpose.msra.mxu0 0.0
        %1521 = vmatprep.subr.mxu0 0.0
        %1522 = vmatpush1.xpose.msra.mxu0 0.0
        %1523 = vmatprep.subr.mxu0 0.0
        %1524 = vmatpush1.xpose.msra.mxu0 0.0
        %1525 = vmatprep.mubr.f32.mxu0 0.0
        %1526 = vmatmul.mubr.f32.gmra.mrb[0].mxu0 %v1207
        %v1527 = vpop.f32.mrb[0].mxu0
        %v1528 = vadd.f32 %v1038, %v1527
        %v1529 = vpop.f32.mrb[0].mxu0
        %1530 = vmatprep.mubr.f32.mxu0 0.0
        %1531 = vmatmul.mubr.f32.gmra.mrb[0].mxu0 %v1209
        %v1532 = vpop.f32.mrb[0].mxu0
        %v1533 = vadd.f32 %v1039, %v1532
        %v1534 = vpop.f32.mrb[0].mxu0
        %1535 = vdwg.mxu0
        %vm1536 = vcmask 130048
        %v1537 = vsel %vm1536, %v1528, -inf
        %1538 = vmax.xlane.f32.xlu0 %v1537
        %v1539 = vpop.xlane.xlu0 %1538
        %v1540 = vsel %vm1536, %v1533, -inf
        %1541 = vmax.xlane.f32.xlu0 %v1540
        %v1542 = vpop.xlane.xlu0 %1541
        %v1543 = vsub.f32 %v1528, %v1539
        %v1544 = vsub.f32 %v1533, %v1542
        %v1545 = vmul.f32 %v1543, 1.442695
        %v1546 = vpow.pop %v1545
        %v1547 = vmul.f32 %v1544, 1.442695
        %v1548 = vpow.pop %v1547
        %v1549 = vsel %vm1536, %v1546, 0.0
        %1550 = vadd.xlane.f32.xlu0 %v1549
        %v1551 = vpop.xlane.xlu0 %1550
        %v1552 = vsel %vm1536, %v1548, 0.0
        %1553 = vadd.xlane.f32.xlu0 %v1552
        %v1554 = vpop.xlane.xlu0 %1553
        %v1555 = vrcp.pop %v1551
        %v1556 = vrcp.pop %v1554
        %v1557 = vmul.f32 %v1546, %v1555
        %v1558 = vmul.f32 %v1548, %v1556
        %v1560 = vsel %vm1536, %v1557, 0
        %v1563 = vsel %vm1536, %v1558, 0
        %1565 = vmatprep.subr.mxu0 0.0
        %1566 = vmatpush1.msra.mxu0 %v1419
        %1567 = vmatprep.subr.mxu0 0.0
        %1568 = vmatpush1.msra.mxu0 %v1425
        %1569 = vmatprep.subr.mxu0 0.0
        %1570 = vmatpush1.msra.mxu0 0.0
        %1571 = vmatprep.subr.mxu0 0.0
        %1572 = vmatpush1.msra.mxu0 0.0
        %1573 = vmatprep.subr.mxu0 0.0
        %1574 = vmatpush1.msra.mxu0 0.0
        %1575 = vmatprep.subr.mxu0 0.0
        %1576 = vmatpush1.msra.mxu0 0.0
        %1577 = vmatprep.subr.mxu0 0.0
        %1578 = vmatpush1.msra.mxu0 0.0
        %1579 = vmatprep.subr.mxu0 0.0
        %1580 = vmatpush1.msra.mxu0 0.0
        %1581 = vmatprep.subr.mxu0 0.0
        %1582 = vmatpush1.msra.mxu0 0.0
        %1583 = vmatprep.subr.mxu0 0.0
        %1584 = vmatpush1.msra.mxu0 0.0
        %1585 = vmatprep.subr.mxu0 0.0
        %1586 = vmatpush1.msra.mxu0 0.0
        %1587 = vmatprep.subr.mxu0 0.0
        %1588 = vmatpush1.msra.mxu0 0.0
        %1589 = vmatprep.subr.mxu0 0.0
        %1590 = vmatpush1.msra.mxu0 0.0
        %1591 = vmatprep.subr.mxu0 0.0
        %1592 = vmatpush1.msra.mxu0 0.0
        %1593 = vmatprep.subr.mxu0 0.0
        %1594 = vmatpush1.msra.mxu0 0.0
        %1595 = vmatprep.subr.mxu0 0.0
        %1596 = vmatpush1.msra.mxu0 0.0
        %1597 = vmatprep.subr.mxu0 0.0
        %1598 = vmatpush1.msra.mxu0 0.0
        %1599 = vmatprep.subr.mxu0 0.0
        %1600 = vmatpush1.msra.mxu0 0.0
        %1601 = vmatprep.subr.mxu0 0.0
        %1602 = vmatpush1.msra.mxu0 0.0
        %1603 = vmatprep.subr.mxu0 0.0
        %1604 = vmatpush1.msra.mxu0 0.0
        %1605 = vmatprep.subr.mxu0 0.0
        %1606 = vmatpush1.msra.mxu0 0.0
        %1607 = vmatprep.subr.mxu0 0.0
        %1608 = vmatpush1.msra.mxu0 0.0
        %1609 = vmatprep.subr.mxu0 0.0
        %1610 = vmatpush1.msra.mxu0 0.0
        %1611 = vmatprep.subr.mxu0 0.0
        %1612 = vmatpush1.msra.mxu0 0.0
        %1613 = vmatprep.subr.mxu0 0.0
        %1614 = vmatpush1.msra.mxu0 0.0
        %1615 = vmatprep.subr.mxu0 0.0
        %1616 = vmatpush1.msra.mxu0 0.0
        %1617 = vmatprep.subr.mxu0 0.0
        %1618 = vmatpush1.msra.mxu0 0.0
        %1619 = vmatprep.subr.mxu0 0.0
        %1620 = vmatpush1.msra.mxu0 0.0
        %1621 = vmatprep.subr.mxu0 0.0
        %1622 = vmatpush1.msra.mxu0 0.0
        %1623 = vmatprep.subr.mxu0 0.0
        %1624 = vmatpush1.msra.mxu0 0.0
        %1625 = vmatprep.subr.mxu0 0.0
        %1626 = vmatpush1.msra.mxu0 0.0
        %1627 = vmatprep.subr.mxu0 0.0
        %1628 = vmatpush1.msra.mxu0 0.0
        %1629 = vmatprep.mubr.f32.mxu0 0.0
        %1630 = vmatmul.mubr.f32.gmra.mrb[0].mxu0 %v1560
        %v1631 = vpop.f32.mrb[0].mxu0
        %v1632 = vadd.f32 0.0, %v1631
        %v1633 = vpop.f32.mrb[0].mxu0
        %1634 = vmatprep.mubr.f32.mxu0 0.0
        %1635 = vmatmul.mubr.f32.gmra.mrb[0].mxu0 %v1563
        %v1636 = vpop.f32.mrb[0].mxu0
        %v1637 = vadd.f32 0.0, %v1636
        %v1638 = vpop.f32.mrb[0].mxu0
        %1639 = vdwg.mxu0
        %1640 = vmatprep.subr.mxu0 0.0
        %1641 = vmatpush1.xpose.msra.mxu0 %v1312
        %1642 = vmatprep.subr.mxu0 0.0
        %1643 = vmatpush1.xpose.msra.mxu0 %v1318
        %1644 = vmatprep.subr.mxu0 0.0
        %1645 = vmatpush1.xpose.msra.mxu0 0.0
        %1646 = vmatprep.subr.mxu0 0.0
        %1647 = vmatpush1.xpose.msra.mxu0 0.0
        %1648 = vmatprep.subr.mxu0 0.0
        %1649 = vmatpush1.xpose.msra.mxu0 0.0
        %1650 = vmatprep.subr.mxu0 0.0
        %1651 = vmatpush1.xpose.msra.mxu0 0.0
        %1652 = vmatprep.subr.mxu0 0.0
        %1653 = vmatpush1.xpose.msra.mxu0 0.0
        %1654 = vmatprep.subr.mxu0 0.0
        %1655 = vmatpush1.xpose.msra.mxu0 0.0
        %1656 = vmatprep.subr.mxu0 0.0
        %1657 = vmatpush1.xpose.msra.mxu0 0.0
        %1658 = vmatprep.subr.mxu0 0.0
        %1659 = vmatpush1.xpose.msra.mxu0 0.0
        %1660 = vmatprep.subr.mxu0 0.0
        %1661 = vmatpush1.xpose.msra.mxu0 0.0
        %1662 = vmatprep.subr.mxu0 0.0
        %1663 = vmatpush1.xpose.msra.mxu0 0.0
        %1664 = vmatprep.subr.mxu0 0.0
        %1665 = vmatpush1.xpose.msra.mxu0 0.0
        %1666 = vmatprep.subr.mxu0 0.0
        %1667 = vmatpush1.xpose.msra.mxu0 0.0
        %1668 = vmatprep.subr.mxu0 0.0
        %1669 = vmatpush1.xpose.msra.mxu0 0.0
        %1670 = vmatprep.subr.mxu0 0.0
        %1671 = vmatpush1.xpose.msra.mxu0 0.0
        %1672 = vmatprep.subr.mxu0 0.0
        %1673 = vmatpush1.xpose.msra.mxu0 0.0
        %1674 = vmatprep.subr.mxu0 0.0
        %1675 = vmatpush1.xpose.msra.mxu0 0.0
        %1676 = vmatprep.subr.mxu0 0.0
        %1677 = vmatpush1.xpose.msra.mxu0 0.0
        %1678 = vmatprep.subr.mxu0 0.0
        %1679 = vmatpush1.xpose.msra.mxu0 0.0
        %1680 = vmatprep.subr.mxu0 0.0
        %1681 = vmatpush1.xpose.msra.mxu0 0.0
        %1682 = vmatprep.subr.mxu0 0.0
        %1683 = vmatpush1.xpose.msra.mxu0 0.0
        %1684 = vmatprep.subr.mxu0 0.0
        %1685 = vmatpush1.xpose.msra.mxu0 0.0
        %1686 = vmatprep.subr.mxu0 0.0
        %1687 = vmatpush1.xpose.msra.mxu0 0.0
        %1688 = vmatprep.subr.mxu0 0.0
        %1689 = vmatpush1.xpose.msra.mxu0 0.0
        %1690 = vmatprep.subr.mxu0 0.0
        %1691 = vmatpush1.xpose.msra.mxu0 0.0
        %1692 = vmatprep.subr.mxu0 0.0
        %1693 = vmatpush1.xpose.msra.mxu0 0.0
        %1694 = vmatprep.subr.mxu0 0.0
        %1695 = vmatpush1.xpose.msra.mxu0 0.0
        %1696 = vmatprep.subr.mxu0 0.0
        %1697 = vmatpush1.xpose.msra.mxu0 0.0
        %1698 = vmatprep.subr.mxu0 0.0
        %1699 = vmatpush1.xpose.msra.mxu0 0.0
        %1700 = vmatprep.subr.mxu0 0.0
        %1701 = vmatpush1.xpose.msra.mxu0 0.0
        %1702 = vmatprep.subr.mxu0 0.0
        %1703 = vmatpush1.xpose.msra.mxu0 0.0
        %1704 = vmatprep.mubr.f32.mxu0 0.0
        %1705 = vmatmul.mubr.f32.gmra.mrb[0].mxu0 %v1208
        %v1706 = vpop.f32.mrb[0].mxu0
        %v1707 = vadd.f32 %v1038, %v1706
        %v1708 = vpop.f32.mrb[0].mxu0
        %1709 = vmatprep.mubr.f32.mxu0 0.0
        %1710 = vmatmul.mubr.f32.gmra.mrb[0].mxu0 %v1210
        %v1711 = vpop.f32.mrb[0].mxu0
        %v1712 = vadd.f32 %v1039, %v1711
        %v1713 = vpop.f32.mrb[0].mxu0
        %1714 = vdwg.mxu0
        %v1715 = vsel %vm1536, %v1707, -inf
        %1716 = vmax.xlane.f32.xlu0 %v1715
        %v1717 = vpop.xlane.xlu0 %1716
        %v1718 = vsel %vm1536, %v1712, -inf
        %1719 = vmax.xlane.f32.xlu0 %v1718
        %v1720 = vpop.xlane.xlu0 %1719
        %v1721 = vsub.f32 %v1707, %v1717
        %v1722 = vsub.f32 %v1712, %v1720
        %v1723 = vmul.f32 %v1721, 1.442695
        %v1724 = vpow.pop %v1723
        %v1725 = vmul.f32 %v1722, 1.442695
        %v1726 = vpow.pop %v1725
        %v1727 = vsel %vm1536, %v1724, 0.0
        %1728 = vadd.xlane.f32.xlu0 %v1727
        %v1729 = vpop.xlane.xlu0 %1728
        %v1730 = vsel %vm1536, %v1726, 0.0
        %1731 = vadd.xlane.f32.xlu0 %v1730
        %v1732 = vpop.xlane.xlu0 %1731
        %v1733 = vrcp.pop %v1729
        %v1734 = vrcp.pop %v1732
        %v1735 = vmul.f32 %v1724, %v1733
        %v1736 = vmul.f32 %v1726, %v1734
        %v1738 = vsel %vm1536, %v1735, 0
        %v1741 = vsel %vm1536, %v1736, 0
        %1743 = vmatprep.subr.mxu0 0.0
        %1744 = vmatpush1.msra.mxu0 %v1421
        %1745 = vmatprep.subr.mxu0 0.0
        %1746 = vmatpush1.msra.mxu0 %v1427
        %1747 = vmatprep.subr.mxu0 0.0
        %1748 = vmatpush1.msra.mxu0 0.0
        %1749 = vmatprep.subr.mxu0 0.0
        %1750 = vmatpush1.msra.mxu0 0.0
        %1751 = vmatprep.subr.mxu0 0.0
        %1752 = vmatpush1.msra.mxu0 0.0
        %1753 = vmatprep.subr.mxu0 0.0
        %1754 = vmatpush1.msra.mxu0 0.0
        %1755 = vmatprep.subr.mxu0 0.0
        %1756 = vmatpush1.msra.mxu0 0.0
        %1757 = vmatprep.subr.mxu0 0.0
        %1758 = vmatpush1.msra.mxu0 0.0
        %1759 = vmatprep.subr.mxu0 0.0
        %1760 = vmatpush1.msra.mxu0 0.0
        %1761 = vmatprep.subr.mxu0 0.0
        %1762 = vmatpush1.msra.mxu0 0.0
        %1763 = vmatprep.subr.mxu0 0.0
        %1764 = vmatpush1.msra.mxu0 0.0
        %1765 = vmatprep.subr.mxu0 0.0
        %1766 = vmatpush1.msra.mxu0 0.0
        %1767 = vmatprep.subr.mxu0 0.0
        %1768 = vmatpush1.msra.mxu0 0.0
        %1769 = vmatprep.subr.mxu0 0.0
        %1770 = vmatpush1.msra.mxu0 0.0
        %1771 = vmatprep.subr.mxu0 0.0
        %1772 = vmatpush1.msra.mxu0 0.0
        %1773 = vmatprep.subr.mxu0 0.0
        %1774 = vmatpush1.msra.mxu0 0.0
        %1775 = vmatprep.subr.mxu0 0.0
        %1776 = vmatpush1.msra.mxu0 0.0
        %1777 = vmatprep.subr.mxu0 0.0
        %1778 = vmatpush1.msra.mxu0 0.0
        %1779 = vmatprep.subr.mxu0 0.0
        %1780 = vmatpush1.msra.mxu0 0.0
        %1781 = vmatprep.subr.mxu0 0.0
        %1782 = vmatpush1.msra.mxu0 0.0
        %1783 = vmatprep.subr.mxu0 0.0
        %1784 = vmatpush1.msra.mxu0 0.0
        %1785 = vmatprep.subr.mxu0 0.0
        %1786 = vmatpush1.msra.mxu0 0.0
        %1787 = vmatprep.subr.mxu0 0.0
        %1788 = vmatpush1.msra.mxu0 0.0
        %1789 = vmatprep.subr.mxu0 0.0
        %1790 = vmatpush1.msra.mxu0 0.0
        %1791 = vmatprep.subr.mxu0 0.0
        %1792 = vmatpush1.msra.mxu0 0.0
        %1793 = vmatprep.subr.mxu0 0.0
        %1794 = vmatpush1.msra.mxu0 0.0
        %1795 = vmatprep.subr.mxu0 0.0
        %1796 = vmatpush1.msra.mxu0 0.0
        %1797 = vmatprep.subr.mxu0 0.0
        %1798 = vmatpush1.msra.mxu0 0.0
        %1799 = vmatprep.subr.mxu0 0.0
        %1800 = vmatpush1.msra.mxu0 0.0
        %1801 = vmatprep.subr.mxu0 0.0
        %1802 = vmatpush1.msra.mxu0 0.0
        %1803 = vmatprep.subr.mxu0 0.0
        %1804 = vmatpush1.msra.mxu0 0.0
        %1805 = vmatprep.subr.mxu0 0.0
        %1806 = vmatpush1.msra.mxu0 0.0
        %1807 = vmatprep.mubr.f32.mxu0 0.0
        %1808 = vmatmul.mubr.f32.gmra.mrb[0].mxu0 %v1738
        %v1809 = vpop.f32.mrb[0].mxu0
        %v1810 = vadd.f32 0.0, %v1809
        %v1811 = vpop.f32.mrb[0].mxu0
        %1812 = vmatprep.mubr.f32.mxu0 0.0
        %1813 = vmatmul.mubr.f32.gmra.mrb[0].mxu0 %v1741
        %v1814 = vpop.f32.mrb[0].mxu0
        %v1815 = vadd.f32 0.0, %v1814
        %v1816 = vpop.f32.mrb[0].mxu0
        %1817 = vdwg.mxu0
        %1818 = vmatprep.subr.mxu0 0.0
        %1819 = vmatpush1.msra.mxu0 %v1445
        %1820 = vmatprep.subr.mxu0 0.0
        %1821 = vmatpush1.msra.mxu0 %v1446
        %1822 = vmatprep.subr.mxu0 0.0
        %1823 = vmatpush1.msra.mxu0 %v1447
        %1824 = vmatprep.subr.mxu0 0.0
        %1825 = vmatpush1.msra.mxu0 %v1448
        %1826 = vmatprep.subr.mxu0 0.0
        %1827 = vmatpush1.msra.mxu0 %v1449
        %1828 = vmatprep.subr.mxu0 0.0
        %1829 = vmatpush1.msra.mxu0 %v1450
        %1830 = vmatprep.subr.mxu0 0.0
        %1831 = vmatpush1.msra.mxu0 %v1451
        %1832 = vmatprep.subr.mxu0 0.0
        %1833 = vmatpush1.msra.mxu0 %v1452
        %1834 = vmatprep.subr.mxu0 0.0
        %1835 = vmatpush1.msra.mxu0 %v1453
        %1836 = vmatprep.subr.mxu0 0.0
        %1837 = vmatpush1.msra.mxu0 %v1454
        %1838 = vmatprep.subr.mxu0 0.0
        %1839 = vmatpush1.msra.mxu0 %v1455
        %1840 = vmatprep.subr.mxu0 0.0
        %1841 = vmatpush1.msra.mxu0 %v1456
        %1842 = vmatprep.subr.mxu0 0.0
        %1843 = vmatpush1.msra.mxu0 %v1457
        %1844 = vmatprep.subr.mxu0 0.0
        %1845 = vmatpush1.msra.mxu0 %v1458
        %1846 = vmatprep.subr.mxu0 0.0
        %1847 = vmatpush1.msra.mxu0 %v1459
        %1848 = vmatprep.subr.mxu0 0.0
        %1849 = vmatpush1.msra.mxu0 %v1460
        %1850 = vmatprep.subr.mxu0 0.0
        %1851 = vmatpush1.msra.mxu0 0.0
        %1852 = vmatprep.subr.mxu0 0.0
        %1853 = vmatpush1.msra.mxu0 0.0
        %1854 = vmatprep.subr.mxu0 0.0
        %1855 = vmatpush1.msra.mxu0 0.0
        %1856 = vmatprep.subr.mxu0 0.0
        %1857 = vmatpush1.msra.mxu0 0.0
        %1858 = vmatprep.subr.mxu0 0.0
        %1859 = vmatpush1.msra.mxu0 0.0
        %1860 = vmatprep.subr.mxu0 0.0
        %1861 = vmatpush1.msra.mxu0 0.0
        %1862 = vmatprep.subr.mxu0 0.0
        %1863 = vmatpush1.msra.mxu0 0.0
        %1864 = vmatprep.subr.mxu0 0.0
        %1865 = vmatpush1.msra.mxu0 0.0
        %1866 = vmatprep.subr.mxu0 0.0
        %1867 = vmatpush1.msra.mxu0 0.0
        %1868 = vmatprep.subr.mxu0 0.0
        %1869 = vmatpush1.msra.mxu0 0.0
        %1870 = vmatprep.subr.mxu0 0.0
        %1871 = vmatpush1.msra.mxu0 0.0
        %1872 = vmatprep.subr.mxu0 0.0
        %1873 = vmatpush1.msra.mxu0 0.0
        %1874 = vmatprep.subr.mxu0 0.0
        %1875 = vmatpush1.msra.mxu0 0.0
        %1876 = vmatprep.subr.mxu0 0.0
        %1877 = vmatpush1.msra.mxu0 0.0
        %1878 = vmatprep.subr.mxu0 0.0
        %1879 = vmatpush1.msra.mxu0 0.0
        %1880 = vmatprep.subr.mxu0 0.0
        %1881 = vmatpush1.msra.mxu0 0.0
        %1882 = vmatprep.mubr.f32.mxu0 0.0
        %1883 = vmatmul.mubr.f32.gmra.mrb[0].mxu0 %v1810
        %v1884 = vpop.f32.mrb[0].mxu0
        %v1885 = vadd.f32 0.0, %v1884
        %v1886 = vpop.f32.mrb[0].mxu0
        %1887 = vmatprep.mubr.f32.mxu0 0.0
        %1888 = vmatmul.mubr.f32.gmra.mrb[0].mxu0 %v1815
        %v1889 = vpop.f32.mrb[0].mxu0
        %v1890 = vadd.f32 0.0, %v1889
        %v1891 = vpop.f32.mrb[0].mxu0
        %1892 = vdwg.mxu0
        %1893 = vmatprep.subr.mxu0 0.0
        %1894 = vmatpush1.msra.mxu0 %v1429
        %1895 = vmatprep.subr.mxu0 0.0
        %1896 = vmatpush1.msra.mxu0 %v1430
        %1897 = vmatprep.subr.mxu0 0.0
        %1898 = vmatpush1.msra.mxu0 %v1431
        %1899 = vmatprep.subr.mxu0 0.0
        %1900 = vmatpush1.msra.mxu0 %v1432
        %1901 = vmatprep.subr.mxu0 0.0
        %1902 = vmatpush1.msra.mxu0 %v1433
        %1903 = vmatprep.subr.mxu0 0.0
        %1904 = vmatpush1.msra.mxu0 %v1434
        %1905 = vmatprep.subr.mxu0 0.0
        %1906 = vmatpush1.msra.mxu0 %v1435
        %1907 = vmatprep.subr.mxu0 0.0
        %1908 = vmatpush1.msra.mxu0 %v1436
        %1909 = vmatprep.subr.mxu0 0.0
        %1910 = vmatpush1.msra.mxu0 %v1437
        %1911 = vmatprep.subr.mxu0 0.0
        %1912 = vmatpush1.msra.mxu0 %v1438
        %1913 = vmatprep.subr.mxu0 0.0
        %1914 = vmatpush1.msra.mxu0 %v1439
        %1915 = vmatprep.subr.mxu0 0.0
        %1916 = vmatpush1.msra.mxu0 %v1440
        %1917 = vmatprep.subr.mxu0 0.0
        %1918 = vmatpush1.msra.mxu0 %v1441
        %1919 = vmatprep.subr.mxu0 0.0
        %1920 = vmatpush1.msra.mxu0 %v1442
        %1921 = vmatprep.subr.mxu0 0.0
        %1922 = vmatpush1.msra.mxu0 %v1443
        %1923 = vmatprep.subr.mxu0 0.0
        %1924 = vmatpush1.msra.mxu0 %v1444
        %1925 = vmatprep.subr.mxu0 0.0
        %1926 = vmatpush1.msra.mxu0 0.0
        %1927 = vmatprep.subr.mxu0 0.0
        %1928 = vmatpush1.msra.mxu0 0.0
        %1929 = vmatprep.subr.mxu0 0.0
        %1930 = vmatpush1.msra.mxu0 0.0
        %1931 = vmatprep.subr.mxu0 0.0
        %1932 = vmatpush1.msra.mxu0 0.0
        %1933 = vmatprep.subr.mxu0 0.0
        %1934 = vmatpush1.msra.mxu0 0.0
        %1935 = vmatprep.subr.mxu0 0.0
        %1936 = vmatpush1.msra.mxu0 0.0
        %1937 = vmatprep.subr.mxu0 0.0
        %1938 = vmatpush1.msra.mxu0 0.0
        %1939 = vmatprep.subr.mxu0 0.0
        %1940 = vmatpush1.msra.mxu0 0.0
        %1941 = vmatprep.subr.mxu0 0.0
        %1942 = vmatpush1.msra.mxu0 0.0
        %1943 = vmatprep.subr.mxu0 0.0
        %1944 = vmatpush1.msra.mxu0 0.0
        %1945 = vmatprep.subr.mxu0 0.0
        %1946 = vmatpush1.msra.mxu0 0.0
        %1947 = vmatprep.subr.mxu0 0.0
        %1948 = vmatpush1.msra.mxu0 0.0
        %1949 = vmatprep.subr.mxu0 0.0
        %1950 = vmatpush1.msra.mxu0 0.0
        %1951 = vmatprep.subr.mxu0 0.0
        %1952 = vmatpush1.msra.mxu0 0.0
        %1953 = vmatprep.subr.mxu0 0.0
        %1954 = vmatpush1.msra.mxu0 0.0
        %1955 = vmatprep.subr.mxu0 0.0
        %1956 = vmatpush1.msra.mxu0 0.0
        %1957 = vmatprep.mubr.f32.mxu0 0.0
        %1958 = vmatmul.mubr.f32.gmra.mrb[0].mxu0 %v1632
        %v1959 = vpop.f32.mrb[0].mxu0
        %v1960 = vadd.f32 %v1885, %v1959
        %v1961 = vpop.f32.mrb[0].mxu0
        %1962 = vmatprep.mubr.f32.mxu0 0.0
        %1963 = vmatmul.mubr.f32.gmra.mrb[0].mxu0 %v1637
        %v1964 = vpop.f32.mrb[0].mxu0
        %v1965 = vadd.f32 %v1890, %v1964
        %v1966 = vpop.f32.mrb[0].mxu0
        %1967 = vdwg.mxu0
        %v1968 = vadd.f32 %v1036, %v1960
        %v1969 = vadd.f32 %v1037, %v1965
        %v1970 = vld [vmem:[%s916] sm:$0x1]
        %v1971 = vld [vmem:[%s919] sm:$0x1]
        %1972 = vadd.xlane.f32.xlu0 %v1968
        %v1973 = vpop.xlane.xlu0 %1972
        %1974 = vadd.xlane.f32.xlu0 %v1969
        %v1975 = vpop.xlane.xlu0 %1974
        %v1976 = vmul.f32 %v1973, 0.03125
        %v1977 = vmul.f32 %v1975, 0.03125
        %v1978 = vsub.f32 %v1968, %v1976
        %v1979 = vsub.f32 %v1969, %v1977
        %v1980 = vmul.f32 %v1978, %v930
        %v1981 = vmul.f32 %v1979, %v930
        %v1982 = vmul.f32 %v1980, %v1980
        %v1983 = vmul.f32 %v1981, %v1981
        %1984 = vadd.xlane.f32.xlu0 %v1982
        %v1985 = vpop.xlane.xlu0 %1984
        %1986 = vadd.xlane.f32.xlu0 %v1983
        %v1987 = vpop.xlane.xlu0 %1986
        %v1988 = vmul.f32 %v1985, 0.032258064
        %v1989 = vmul.f32 %v1987, 0.032258064
        %v1990 = vrsqrt.pop %v1988
        %v1991 = vmul.f32 %v1988, %v1990
        %vm1992 = vcmp.eq.f32.partialorder %v1988, inf
        %v1993 = vsel %vm1992, %v1988, %v1991
        %vm1994 = vcmp.eq.f32.partialorder %v1988, 0.0
        %v1995 = vand.u32 %v1988, 2147483648
        %v1996 = vsel %vm1994, %v1995, %v1993
        %v1997 = vrsqrt.pop %v1989
        %v1998 = vmul.f32 %v1989, %v1997
        %vm1999 = vcmp.eq.f32.partialorder %v1989, inf
        %v2000 = vsel %vm1999, %v1989, %v1998
        %vm2001 = vcmp.eq.f32.partialorder %v1989, 0.0
        %v2002 = vand.u32 %v1989, 2147483648
        %v2003 = vsel %vm2001, %v2002, %v2000
        %v2004 = vadd.f32 %v1996, 1e-06
        %v2005 = vadd.f32 %v2003, 1e-06
        %v2006 = vrcp.pop %v2004
        %v2007 = vmul.f32 1.0, %v2006
        %v2008 = vrcp.pop %v2005
        %v2009 = vmul.f32 1.0, %v2008
        %v2011 = vlaneseq
        %v2012 = vshrl.u32 %v2011, 7
        %v2013 = vsub.s32 0, %v2012
        %v2014 = vrot.slane %v1970, %v2013
        %v2016 = vmul.f32 %v2014, %v1980
        %v2017 = vmul.f32 %v2014, %v1981
        %v2018 = vmul.f32 %v2016, %v2007
        %v2019 = vmul.f32 %v2017, %v2009
        %v2021 = vlaneseq
        %v2022 = vshrl.u32 %v2021, 7
        %v2023 = vsub.s32 0, %v2022
        %v2024 = vrot.slane %v1971, %v2023
        %v2026 = vadd.f32 %v2018, %v2024
        %v2027 = vadd.f32 %v2019, %v2024
        %v2028 = vld [vmem:[%s804] sm:$0xff]
        %v2029 = vld [vmem:[%s804 + $0x8] sm:$0xff]
        %v2030 = vld [vmem:[%s804 + $0x10] sm:$0xff]
        %v2031 = vld [vmem:[%s804 + $0x18] sm:$0xff]
        %v2032 = vld [vmem:[%s804 + $0x20] sm:$0xff]
        %v2033 = vld [vmem:[%s804 + $0x28] sm:$0xff]
        %v2034 = vld [vmem:[%s804 + $0x30] sm:$0xff]
        %v2035 = vld [vmem:[%s804 + $0x38] sm:$0xff]
        %v2036 = vld [vmem:[%s804 + $0x40] sm:$0xff]
        %v2037 = vld [vmem:[%s804 + $0x48] sm:$0xff]
        %v2038 = vld [vmem:[%s804 + $0x50] sm:$0xff]
        %v2039 = vld [vmem:[%s804 + $0x58] sm:$0xff]
        %v2040 = vld [vmem:[%s804 + $0x60] sm:$0xff]
        %v2041 = vld [vmem:[%s804 + $0x68] sm:$0xff]
        %v2042 = vld [vmem:[%s804 + $0x70] sm:$0xff]
        %v2043 = vld [vmem:[%s804 + $0x78] sm:$0xff]
        %v2044 = vld [vmem:[%s804 + $0x80] sm:$0xff]
        %v2045 = vld [vmem:[%s804 + $0x88] sm:$0xff]
        %v2046 = vld [vmem:[%s804 + $0x90] sm:$0xff]
        %v2047 = vld [vmem:[%s804 + $0x98] sm:$0xff]
        %v2048 = vld [vmem:[%s804 + $0xa0] sm:$0xff]
        %v2049 = vld [vmem:[%s804 + $0xa8] sm:$0xff]
        %v2050 = vld [vmem:[%s804 + $0xb0] sm:$0xff]
        %v2051 = vld [vmem:[%s804 + $0xb8] sm:$0xff]
        %v2052 = vld [vmem:[%s804 + $0xc0] sm:$0xff]
        %v2053 = vld [vmem:[%s804 + $0xc8] sm:$0xff]
        %v2054 = vld [vmem:[%s804 + $0xd0] sm:$0xff]
        %v2055 = vld [vmem:[%s804 + $0xd8] sm:$0xff]
        %v2056 = vld [vmem:[%s804 + $0xe0] sm:$0xff]
        %v2057 = vld [vmem:[%s804 + $0xe8] sm:$0xff]
        %v2058 = vld [vmem:[%s804 + $0xf0] sm:$0xff]
        %v2059 = vld [vmem:[%s804 + $0xf8] sm:$0xff]
        %v2060 = vld [vmem:[%s804 + $0x100] sm:$0xff]
        %v2061 = vld [vmem:[%s804 + $0x108] sm:$0xff]
        %v2062 = vld [vmem:[%s804 + $0x110] sm:$0xff]
        %v2063 = vld [vmem:[%s804 + $0x118] sm:$0xff]
        %v2064 = vld [vmem:[%s804 + $0x120] sm:$0xff]
        %v2065 = vld [vmem:[%s804 + $0x128] sm:$0xff]
        %v2066 = vld [vmem:[%s804 + $0x130] sm:$0xff]
        %v2067 = vld [vmem:[%s804 + $0x138] sm:$0xff]
        %v2068 = vld [vmem:[%s804 + $0x140] sm:$0xff]
        %v2069 = vld [vmem:[%s804 + $0x148] sm:$0xff]
        %v2070 = vld [vmem:[%s804 + $0x150] sm:$0xff]
        %v2071 = vld [vmem:[%s804 + $0x158] sm:$0xff]
        %v2072 = vld [vmem:[%s804 + $0x160] sm:$0xff]
        %v2073 = vld [vmem:[%s804 + $0x168] sm:$0xff]
        %v2074 = vld [vmem:[%s804 + $0x170] sm:$0xff]
        %v2075 = vld [vmem:[%s804 + $0x178] sm:$0xff]
        %v2076 = vld [vmem:[%s922] sm:$0x1]
        %2077 = vmatprep.subr.mxu0 %v2029
        %2078 = vmatpush1.msra.mxu0 %v2028
        %2079 = vmatprep.subr.mxu0 %v2032
        %2080 = vmatpush1.msra.mxu0 %v2031
        %2081 = vmatprep.subr.mxu0 %v2035
        %2082 = vmatpush1.msra.mxu0 %v2034
        %2083 = vmatprep.subr.mxu0 %v2038
        %2084 = vmatpush1.msra.mxu0 %v2037
        %2085 = vmatprep.subr.mxu0 %v2041
        %2086 = vmatpush1.msra.mxu0 %v2040
        %2087 = vmatprep.subr.mxu0 %v2044
        %2088 = vmatpush1.msra.mxu0 %v2043
        %2089 = vmatprep.subr.mxu0 %v2047
        %2090 = vmatpush1.msra.mxu0 %v2046
        %2091 = vmatprep.subr.mxu0 %v2050
        %2092 = vmatpush1.msra.mxu0 %v2049
        %2093 = vmatprep.subr.mxu0 %v2053
        %2094 = vmatpush1.msra.mxu0 %v2052
        %2095 = vmatprep.subr.mxu0 %v2056
        %2096 = vmatpush1.msra.mxu0 %v2055
        %2097 = vmatprep.subr.mxu0 %v2059
        %2098 = vmatpush1.msra.mxu0 %v2058
        %2099 = vmatprep.subr.mxu0 %v2062
        %2100 = vmatpush1.msra.mxu0 %v2061
        %2101 = vmatprep.subr.mxu0 %v2065
        %2102 = vmatpush1.msra.mxu0 %v2064
        %2103 = vmatprep.subr.mxu0 %v2068
        %2104 = vmatpush1.msra.mxu0 %v2067
        %2105 = vmatprep.subr.mxu0 %v2071
        %2106 = vmatpush1.msra.mxu0 %v2070
        %2107 = vmatprep.subr.mxu0 %v2074
        %2108 = vmatpush1.msra.mxu0 %v2073
        %2109 = vmatprep.subr.mxu0 0.0
        %2110 = vmatpush1.msra.mxu0 0.0
        %2111 = vmatprep.subr.mxu0 0.0
        %2112 = vmatpush1.msra.mxu0 0.0
        %2113 = vmatprep.subr.mxu0 0.0
        %2114 = vmatpush1.msra.mxu0 0.0
        %2115 = vmatprep.subr.mxu0 0.0
        %2116 = vmatpush1.msra.mxu0 0.0
        %2117 = vmatprep.subr.mxu0 0.0
        %2118 = vmatpush1.msra.mxu0 0.0
        %2119 = vmatprep.subr.mxu0 0.0
        %2120 = vmatpush1.msra.mxu0 0.0
        %2121 = vmatprep.subr.mxu0 0.0
        %2122 = vmatpush1.msra.mxu0 0.0
        %2123 = vmatprep.subr.mxu0 0.0
        %2124 = vmatpush1.msra.mxu0 0.0
        %2125 = vmatprep.subr.mxu0 0.0
        %2126 = vmatpush1.msra.mxu0 0.0
        %2127 = vmatprep.subr.mxu0 0.0
        %2128 = vmatpush1.msra.mxu0 0.0
        %2129 = vmatprep.subr.mxu0 0.0
        %2130 = vmatpush1.msra.mxu0 0.0
        %2131 = vmatprep.subr.mxu0 0.0
        %2132 = vmatpush1.msra.mxu0 0.0
        %2133 = vmatprep.subr.mxu0 0.0
        %2134 = vmatpush1.msra.mxu0 0.0
        %2135 = vmatprep.subr.mxu0 0.0
        %2136 = vmatpush1.msra.mxu0 0.0
        %2137 = vmatprep.subr.mxu0 0.0
        %2138 = vmatpush1.msra.mxu0 0.0
        %2139 = vmatprep.subr.mxu0 0.0
        %2140 = vmatpush1.msra.mxu0 0.0
        %2141 = vmatprep.mubr.f32.mxu0 0.0
        %2142 = vmatmul.mubr.f32.gmra.mrb[0].mxu0 %v2026
        %v2143 = vpop.f32.mrb[0].mxu0
        %v2144 = vadd.f32 0.0, %v2143
        %v2145 = vpop.f32.mrb[0].mxu0
        %v2146 = vadd.f32 0.0, %v2145
        %2147 = vmatprep.mubr.f32.mxu0 0.0
        %2148 = vmatmul.mubr.f32.gmra.mrb[0].mxu0 %v2027
        %v2149 = vpop.f32.mrb[0].mxu0
        %v2150 = vadd.f32 0.0, %v2149
        %v2151 = vpop.f32.mrb[0].mxu0
        %v2152 = vadd.f32 0.0, %v2151
        %2153 = vdwg.mxu0
        %2154 = vmatprep.subr.mxu0 0.0
        %2155 = vmatpush1.msra.mxu0 %v2030
        %2156 = vmatprep.subr.mxu0 0.0
        %2157 = vmatpush1.msra.mxu0 %v2033
        %2158 = vmatprep.subr.mxu0 0.0
        %2159 = vmatpush1.msra.mxu0 %v2036
        %2160 = vmatprep.subr.mxu0 0.0
        %2161 = vmatpush1.msra.mxu0 %v2039
        %2162 = vmatprep.subr.mxu0 0.0
        %2163 = vmatpush1.msra.mxu0 %v2042
        %2164 = vmatprep.subr.mxu0 0.0
        %2165 = vmatpush1.msra.mxu0 %v2045
        %2166 = vmatprep.subr.mxu0 0.0
        %2167 = vmatpush1.msra.mxu0 %v2048
        %2168 = vmatprep.subr.mxu0 0.0
        %2169 = vmatpush1.msra.mxu0 %v2051
        %2170 = vmatprep.subr.mxu0 0.0
        %2171 = vmatpush1.msra.mxu0 %v2054
        %2172 = vmatprep.subr.mxu0 0.0
        %2173 = vmatpush1.msra.mxu0 %v2057
        %2174 = vmatprep.subr.mxu0 0.0
        %2175 = vmatpush1.msra.mxu0 %v2060
        %2176 = vmatprep.subr.mxu0 0.0
        %2177 = vmatpush1.msra.mxu0 %v2063
        %2178 = vmatprep.subr.mxu0 0.0
        %2179 = vmatpush1.msra.mxu0 %v2066
        %2180 = vmatprep.subr.mxu0 0.0
        %2181 = vmatpush1.msra.mxu0 %v2069
        %2182 = vmatprep.subr.mxu0 0.0
        %2183 = vmatpush1.msra.mxu0 %v2072
        %2184 = vmatprep.subr.mxu0 0.0
        %2185 = vmatpush1.msra.mxu0 %v2075
        %2186 = vmatprep.subr.mxu0 0.0
        %2187 = vmatpush1.msra.mxu0 0.0
        %2188 = vmatprep.subr.mxu0 0.0
        %2189 = vmatpush1.msra.mxu0 0.0
        %2190 = vmatprep.subr.mxu0 0.0
        %2191 = vmatpush1.msra.mxu0 0.0
        %2192 = vmatprep.subr.mxu0 0.0
        %2193 = vmatpush1.msra.mxu0 0.0
        %2194 = vmatprep.subr.mxu0 0.0
        %2195 = vmatpush1.msra.mxu0 0.0
        %2196 = vmatprep.subr.mxu0 0.0
        %2197 = vmatpush1.msra.mxu0 0.0
        %2198 = vmatprep.subr.mxu0 0.0
        %2199 = vmatpush1.msra.mxu0 0.0
        %2200 = vmatprep.subr.mxu0 0.0
        %2201 = vmatpush1.msra.mxu0 0.0
        %2202 = vmatprep.subr.mxu0 0.0
        %2203 = vmatpush1.msra.mxu0 0.0
        %2204 = vmatprep.subr.mxu0 0.0
        %2205 = vmatpush1.msra.mxu0 0.0
        %2206 = vmatprep.subr.mxu0 0.0
        %2207 = vmatpush1.msra.mxu0 0.0
        %2208 = vmatprep.subr.mxu0 0.0
        %2209 = vmatpush1.msra.mxu0 0.0
        %2210 = vmatprep.subr.mxu0 0.0
        %2211 = vmatpush1.msra.mxu0 0.0
        %2212 = vmatprep.subr.mxu0 0.0
        %2213 = vmatpush1.msra.mxu0 0.0
        %2214 = vmatprep.subr.mxu0 0.0
        %2215 = vmatpush1.msra.mxu0 0.0
        %2216 = vmatprep.subr.mxu0 0.0
        %2217 = vmatpush1.msra.mxu0 0.0
        %2218 = vmatprep.mubr.f32.mxu0 0.0
        %2219 = vmatmul.mubr.f32.gmra.mrb[0].mxu0 %v2026
        %v2220 = vpop.f32.mrb[0].mxu0
        %v2221 = vadd.f32 0.0, %v2220
        %v2222 = vpop.f32.mrb[0].mxu0
        %2223 = vmatprep.mubr.f32.mxu0 0.0
        %2224 = vmatmul.mubr.f32.gmra.mrb[0].mxu0 %v2027
        %v2225 = vpop.f32.mrb[0].mxu0
        %v2226 = vadd.f32 0.0, %v2225
        %v2227 = vpop.f32.mrb[0].mxu0
        %2228 = vdwg.mxu0
        %v2229 = vrot.slane %v2144, 7
        %v2230 = vrot.slane %v2150, 7
        %v2231 = vlaneseq
        %v2232 = vshrl.u32 %v2231, 7
        %vm2233 = vcmp.lt.s32.totalorder %v2232, 1
        %v2234 = vsel %vm2233, %v2229, %v2230
        %v2235 = vsel %vm2233, %v2230, %v2229
        %2237 = vset.pattern.permute.xlu0 0
        %2238 = vperm.xlu0 %2237, %v931
        %v2239 = vpop.permute.xlu0 %2238
        %2242 = vset.pattern.permute.xlu0 0
        %2243 = vperm.xlu0 %2242, %v932
        %v2244 = vpop.permute.xlu0 %2243
        %v2246 = vmul.f32 %v2235, %v2239
        %v2247 = vmul.f32 %v2234, %v2244
        %v2248 = vrot.slane %v2221, 1
        %v2249 = vrot.slane %v2226, 1
        %vm2250 = vcmp.lt.s32.totalorder %v2232, 7
        %v2251 = vsel %vm2250, %v2248, %v2249
        %v2252 = vsel %vm2250, %v2249, %v2248
        %2254 = vset.pattern.permute.xlu0 0
        %2255 = vperm.xlu0 %2254, %v933
        %v2256 = vpop.permute.xlu0 %2255
        %2259 = vset.pattern.permute.xlu0 0
        %2260 = vperm.xlu0 %2259, %v934
        %v2261 = vpop.permute.xlu0 %2260
        %v2263 = vmul.f32 %v2251, %v2256
        %v2264 = vmul.f32 %v2252, %v2261
        %v2265 = vadd.f32 %v2246, %v2146
        %v2266 = vadd.f32 %v2247, %v2152
        %v2267 = vadd.f32 %v2265, %v2263
        %v2268 = vadd.f32 %v2266, %v2264
        %v2270 = vlaneseq
        %v2271 = vshrl.u32 %v2270, 7
        %v2272 = vsub.s32 0, %v2271
        %v2273 = vrot.slane %v2076, %v2272
        %v2275 = vadd.f32 %v2267, %v2273
        %v2276 = vadd.f32 %v2268, %v2273
        %v2277 = vmax.f32 %v2275, 0.0
        %v2278 = vmax.f32 %v2276, 0.0
        %v2279 = vld [vmem:[%s813] sm:$0xff]
        %v2280 = vld [vmem:[%s813 + $0x8] sm:$0xff]
        %v2281 = vld [vmem:[%s813 + $0x10] sm:$0xff]
        %v2282 = vld [vmem:[%s813 + $0x18] sm:$0xff]
        %v2283 = vld [vmem:[%s813 + $0x20] sm:$0xff]
        %v2284 = vld [vmem:[%s813 + $0x28] sm:$0xff]
        %v2285 = vld [vmem:[%s813 + $0x30] sm:$0xff]
        %v2286 = vld [vmem:[%s813 + $0x38] sm:$0xff]
        %v2287 = vld [vmem:[%s813 + $0x40] sm:$0xff]
        %v2288 = vld [vmem:[%s813 + $0x48] sm:$0xff]
        %v2289 = vld [vmem:[%s813 + $0x50] sm:$0xff]
        %v2290 = vld [vmem:[%s813 + $0x58] sm:$0xff]
        %v2291 = vld [vmem:[%s813 + $0x60] sm:$0xff]
        %v2292 = vld [vmem:[%s813 + $0x68] sm:$0xff]
        %v2293 = vld [vmem:[%s813 + $0x70] sm:$0xff]
        %v2294 = vld [vmem:[%s813 + $0x78] sm:$0xff]
        %v2295 = vld [vmem:[%s813 + $0x80] sm:$0xff]
        %v2296 = vld [vmem:[%s813 + $0x88] sm:$0xff]
        %v2297 = vld [vmem:[%s813 + $0x90] sm:$0xff]
        %v2298 = vld [vmem:[%s813 + $0x98] sm:$0xff]
        %v2299 = vld [vmem:[%s813 + $0xa0] sm:$0xff]
        %v2300 = vld [vmem:[%s813 + $0xa8] sm:$0xff]
        %v2301 = vld [vmem:[%s813 + $0xb0] sm:$0xff]
        %v2302 = vld [vmem:[%s813 + $0xb8] sm:$0xff]
        %v2303 = vld [vmem:[%s813 + $0xc0] sm:$0xff]
        %v2304 = vld [vmem:[%s813 + $0xc8] sm:$0xff]
        %v2305 = vld [vmem:[%s813 + $0xd0] sm:$0xff]
        %v2306 = vld [vmem:[%s813 + $0xd8] sm:$0xff]
        %v2307 = vld [vmem:[%s813 + $0xe0] sm:$0xff]
        %v2308 = vld [vmem:[%s813 + $0xe8] sm:$0xff]
        %v2309 = vld [vmem:[%s813 + $0xf0] sm:$0xff]
        %v2310 = vld [vmem:[%s813 + $0xf8] sm:$0xff]
        %v2311 = vld [vmem:[%s813 + $0x100] sm:$0xff]
        %v2312 = vld [vmem:[%s813 + $0x108] sm:$0xff]
        %v2313 = vld [vmem:[%s813 + $0x110] sm:$0xff]
        %v2314 = vld [vmem:[%s813 + $0x118] sm:$0xff]
        %v2315 = vld [vmem:[%s813 + $0x120] sm:$0xff]
        %v2316 = vld [vmem:[%s813 + $0x128] sm:$0xff]
        %v2317 = vld [vmem:[%s813 + $0x130] sm:$0xff]
        %v2318 = vld [vmem:[%s813 + $0x138] sm:$0xff]
        %v2319 = vld [vmem:[%s813 + $0x140] sm:$0xff]
        %v2320 = vld [vmem:[%s813 + $0x148] sm:$0xff]
        %v2321 = vld [vmem:[%s813 + $0x150] sm:$0xff]
        %v2322 = vld [vmem:[%s813 + $0x158] sm:$0xff]
        %v2323 = vld [vmem:[%s813 + $0x160] sm:$0xff]
        %v2324 = vld [vmem:[%s813 + $0x168] sm:$0xff]
        %v2325 = vld [vmem:[%s813 + $0x170] sm:$0xff]
        %v2326 = vld [vmem:[%s813 + $0x178] sm:$0xff]
        %v2327 = vld [vmem:[%s925] sm:$0x1]
        %2328 = vmatprep.subr.mxu0 %v2280
        %2329 = vmatpush1.msra.mxu0 %v2279
        %2330 = vmatprep.subr.mxu0 %v2283
        %2331 = vmatpush1.msra.mxu0 %v2282
        %2332 = vmatprep.subr.mxu0 %v2286
        %2333 = vmatpush1.msra.mxu0 %v2285
        %2334 = vmatprep.subr.mxu0 %v2289
        %2335 = vmatpush1.msra.mxu0 %v2288
        %2336 = vmatprep.subr.mxu0 %v2292
        %2337 = vmatpush1.msra.mxu0 %v2291
        %2338 = vmatprep.subr.mxu0 %v2295
        %2339 = vmatpush1.msra.mxu0 %v2294
        %2340 = vmatprep.subr.mxu0 %v2298
        %2341 = vmatpush1.msra.mxu0 %v2297
        %2342 = vmatprep.subr.mxu0 %v2301
        %2343 = vmatpush1.msra.mxu0 %v2300
        %2344 = vmatprep.subr.mxu0 %v2304
        %2345 = vmatpush1.msra.mxu0 %v2303
        %2346 = vmatprep.subr.mxu0 %v2307
        %2347 = vmatpush1.msra.mxu0 %v2306
        %2348 = vmatprep.subr.mxu0 %v2310
        %2349 = vmatpush1.msra.mxu0 %v2309
        %2350 = vmatprep.subr.mxu0 %v2313
        %2351 = vmatpush1.msra.mxu0 %v2312
        %2352 = vmatprep.subr.mxu0 %v2316
        %2353 = vmatpush1.msra.mxu0 %v2315
        %2354 = vmatprep.subr.mxu0 %v2319
        %2355 = vmatpush1.msra.mxu0 %v2318
        %2356 = vmatprep.subr.mxu0 %v2322
        %2357 = vmatpush1.msra.mxu0 %v2321
        %2358 = vmatprep.subr.mxu0 %v2325
        %2359 = vmatpush1.msra.mxu0 %v2324
        %2360 = vmatprep.subr.mxu0 0.0
        %2361 = vmatpush1.msra.mxu0 0.0
        %2362 = vmatprep.subr.mxu0 0.0
        %2363 = vmatpush1.msra.mxu0 0.0
        %2364 = vmatprep.subr.mxu0 0.0
        %2365 = vmatpush1.msra.mxu0 0.0
        %2366 = vmatprep.subr.mxu0 0.0
        %2367 = vmatpush1.msra.mxu0 0.0
        %2368 = vmatprep.subr.mxu0 0.0
        %2369 = vmatpush1.msra.mxu0 0.0
        %2370 = vmatprep.subr.mxu0 0.0
        %2371 = vmatpush1.msra.mxu0 0.0
        %2372 = vmatprep.subr.mxu0 0.0
        %2373 = vmatpush1.msra.mxu0 0.0
        %2374 = vmatprep.subr.mxu0 0.0
        %2375 = vmatpush1.msra.mxu0 0.0
        %2376 = vmatprep.subr.mxu0 0.0
        %2377 = vmatpush1.msra.mxu0 0.0
        %2378 = vmatprep.subr.mxu0 0.0
        %2379 = vmatpush1.msra.mxu0 0.0
        %2380 = vmatprep.subr.mxu0 0.0
        %2381 = vmatpush1.msra.mxu0 0.0
        %2382 = vmatprep.subr.mxu0 0.0
        %2383 = vmatpush1.msra.mxu0 0.0
        %2384 = vmatprep.subr.mxu0 0.0
        %2385 = vmatpush1.msra.mxu0 0.0
        %2386 = vmatprep.subr.mxu0 0.0
        %2387 = vmatpush1.msra.mxu0 0.0
        %2388 = vmatprep.subr.mxu0 0.0
        %2389 = vmatpush1.msra.mxu0 0.0
        %2390 = vmatprep.subr.mxu0 0.0
        %2391 = vmatpush1.msra.mxu0 0.0
        %2392 = vmatprep.mubr.f32.mxu0 0.0
        %2393 = vmatmul.mubr.f32.gmra.mrb[0].mxu0 %v2277
        %v2394 = vpop.f32.mrb[0].mxu0
        %v2395 = vadd.f32 0.0, %v2394
        %v2396 = vpop.f32.mrb[0].mxu0
        %v2397 = vadd.f32 0.0, %v2396
        %2398 = vmatprep.mubr.f32.mxu0 0.0
        %2399 = vmatmul.mubr.f32.gmra.mrb[0].mxu0 %v2278
        %v2400 = vpop.f32.mrb[0].mxu0
        %v2401 = vadd.f32 0.0, %v2400
        %v2402 = vpop.f32.mrb[0].mxu0
        %v2403 = vadd.f32 0.0, %v2402
        %2404 = vdwg.mxu0
        %2405 = vmatprep.subr.mxu0 0.0
        %2406 = vmatpush1.msra.mxu0 %v2281
        %2407 = vmatprep.subr.mxu0 0.0
        %2408 = vmatpush1.msra.mxu0 %v2284
        %2409 = vmatprep.subr.mxu0 0.0
        %2410 = vmatpush1.msra.mxu0 %v2287
        %2411 = vmatprep.subr.mxu0 0.0
        %2412 = vmatpush1.msra.mxu0 %v2290
        %2413 = vmatprep.subr.mxu0 0.0
        %2414 = vmatpush1.msra.mxu0 %v2293
        %2415 = vmatprep.subr.mxu0 0.0
        %2416 = vmatpush1.msra.mxu0 %v2296
        %2417 = vmatprep.subr.mxu0 0.0
        %2418 = vmatpush1.msra.mxu0 %v2299
        %2419 = vmatprep.subr.mxu0 0.0
        %2420 = vmatpush1.msra.mxu0 %v2302
        %2421 = vmatprep.subr.mxu0 0.0
        %2422 = vmatpush1.msra.mxu0 %v2305
        %2423 = vmatprep.subr.mxu0 0.0
        %2424 = vmatpush1.msra.mxu0 %v2308
        %2425 = vmatprep.subr.mxu0 0.0
        %2426 = vmatpush1.msra.mxu0 %v2311
        %2427 = vmatprep.subr.mxu0 0.0
        %2428 = vmatpush1.msra.mxu0 %v2314
        %2429 = vmatprep.subr.mxu0 0.0
        %2430 = vmatpush1.msra.mxu0 %v2317
        %2431 = vmatprep.subr.mxu0 0.0
        %2432 = vmatpush1.msra.mxu0 %v2320
        %2433 = vmatprep.subr.mxu0 0.0
        %2434 = vmatpush1.msra.mxu0 %v2323
        %2435 = vmatprep.subr.mxu0 0.0
        %2436 = vmatpush1.msra.mxu0 %v2326
        %2437 = vmatprep.subr.mxu0 0.0
        %2438 = vmatpush1.msra.mxu0 0.0
        %2439 = vmatprep.subr.mxu0 0.0
        %2440 = vmatpush1.msra.mxu0 0.0
        %2441 = vmatprep.subr.mxu0 0.0
        %2442 = vmatpush1.msra.mxu0 0.0
        %2443 = vmatprep.subr.mxu0 0.0
        %2444 = vmatpush1.msra.mxu0 0.0
        %2445 = vmatprep.subr.mxu0 0.0
        %2446 = vmatpush1.msra.mxu0 0.0
        %2447 = vmatprep.subr.mxu0 0.0
        %2448 = vmatpush1.msra.mxu0 0.0
        %2449 = vmatprep.subr.mxu0 0.0
        %2450 = vmatpush1.msra.mxu0 0.0
        %2451 = vmatprep.subr.mxu0 0.0
        %2452 = vmatpush1.msra.mxu0 0.0
        %2453 = vmatprep.subr.mxu0 0.0
        %2454 = vmatpush1.msra.mxu0 0.0
        %2455 = vmatprep.subr.mxu0 0.0
        %2456 = vmatpush1.msra.mxu0 0.0
        %2457 = vmatprep.subr.mxu0 0.0
        %2458 = vmatpush1.msra.mxu0 0.0
        %2459 = vmatprep.subr.mxu0 0.0
        %2460 = vmatpush1.msra.mxu0 0.0
        %2461 = vmatprep.subr.mxu0 0.0
        %2462 = vmatpush1.msra.mxu0 0.0
        %2463 = vmatprep.subr.mxu0 0.0
        %2464 = vmatpush1.msra.mxu0 0.0
        %2465 = vmatprep.subr.mxu0 0.0
        %2466 = vmatpush1.msra.mxu0 0.0
        %2467 = vmatprep.subr.mxu0 0.0
        %2468 = vmatpush1.msra.mxu0 0.0
        %2469 = vmatprep.mubr.f32.mxu0 0.0
        %2470 = vmatmul.mubr.f32.gmra.mrb[0].mxu0 %v2277
        %v2471 = vpop.f32.mrb[0].mxu0
        %v2472 = vadd.f32 0.0, %v2471
        %v2473 = vpop.f32.mrb[0].mxu0
        %2474 = vmatprep.mubr.f32.mxu0 0.0
        %2475 = vmatmul.mubr.f32.gmra.mrb[0].mxu0 %v2278
        %v2476 = vpop.f32.mrb[0].mxu0
        %v2477 = vadd.f32 0.0, %v2476
        %v2478 = vpop.f32.mrb[0].mxu0
        %2479 = vdwg.mxu0
        %v2480 = vrot.slane %v2395, 7
        %v2481 = vrot.slane %v2401, 7
        %v2482 = vsel %vm2233, %v2480, %v2481
        %v2483 = vsel %vm2233, %v2481, %v2480
        %v2484 = vmul.f32 %v2483, %v2239
        %v2485 = vmul.f32 %v2482, %v2244
        %v2486 = vrot.slane %v2472, 1
        %v2487 = vrot.slane %v2477, 1
        %v2488 = vsel %vm2250, %v2486, %v2487
        %v2489 = vsel %vm2250, %v2487, %v2486
        %v2490 = vmul.f32 %v2488, %v2256
        %v2491 = vmul.f32 %v2489, %v2261
        %v2492 = vadd.f32 %v2484, %v2397
        %v2493 = vadd.f32 %v2485, %v2403
        %v2494 = vadd.f32 %v2492, %v2490
        %v2495 = vadd.f32 %v2493, %v2491
        %v2497 = vlaneseq
        %v2498 = vshrl.u32 %v2497, 7
        %v2499 = vsub.s32 0, %v2498
        %v2500 = vrot.slane %v2327, %v2499
        %v2502 = vadd.f32 %v2494, %v2500
        %v2503 = vadd.f32 %v2495, %v2500
        %v2504 = vmax.f32 %v2502, 0.0
        %v2505 = vmax.f32 %v2503, 0.0
        %v2506 = vadd.f32 %v1968, %v2504
        %v2507 = vadd.f32 %v1969, %v2505
        %2508 = vst [vmem:[#allocation2] sm:$0xff] %v2506
        %2509 = vst [vmem:[#allocation2 + $0x8] sm:$0xff] %v2507
        %p2510 = scmp.eq.s32.totalorder %s42, 1
        // Predicated region
        $region133: #{tpu_custom_call.1} parent=99 // pred_check
          %p2511 = pneg %p2510
        $region134: #{tpu_custom_call.1} parent=99 // pred_check_branch
          %2513 = sbr.rel (%p2511) target = $region136
        $region135: #{tpu_custom_call.1} parent=99 // pred_region
          %v2514 = vld [vmem:[%s18] sm:$0x1]
          %v2515 = vld [vmem:[%s19] sm:$0x1]
          %2516 = vadd.xlane.f32.xlu0 %v2506
          %v2517 = vpop.xlane.xlu0 %2516
          %2518 = vadd.xlane.f32.xlu0 %v2507
          %v2519 = vpop.xlane.xlu0 %2518
          %v2520 = vmul.f32 %v2517, 0.03125
          %v2521 = vmul.f32 %v2519, 0.03125
          %v2522 = vsub.f32 %v2506, %v2520
          %v2523 = vsub.f32 %v2507, %v2521
          %v2524 = vmul.f32 %v2522, %v930
          %v2525 = vmul.f32 %v2523, %v930
          %v2526 = vmul.f32 %v2524, %v2524
          %v2527 = vmul.f32 %v2525, %v2525
          %2528 = vadd.xlane.f32.xlu0 %v2526
          %v2529 = vpop.xlane.xlu0 %2528
          %2530 = vadd.xlane.f32.xlu0 %v2527
          %v2531 = vpop.xlane.xlu0 %2530
          %v2532 = vmul.f32 %v2529, 0.032258064
          %v2533 = vmul.f32 %v2531, 0.032258064
          %v2534 = vrsqrt.pop %v2532
          %v2535 = vmul.f32 %v2532, %v2534
          %vm2536 = vcmp.eq.f32.partialorder %v2532, inf
          %v2537 = vsel %vm2536, %v2532, %v2535
          %vm2538 = vcmp.eq.f32.partialorder %v2532, 0.0
          %v2539 = vand.u32 %v2532, 2147483648
          %v2540 = vsel %vm2538, %v2539, %v2537
          %v2541 = vrsqrt.pop %v2533
          %v2542 = vmul.f32 %v2533, %v2541
          %vm2543 = vcmp.eq.f32.partialorder %v2533, inf
          %v2544 = vsel %vm2543, %v2533, %v2542
          %vm2545 = vcmp.eq.f32.partialorder %v2533, 0.0
          %v2546 = vand.u32 %v2533, 2147483648
          %v2547 = vsel %vm2545, %v2546, %v2544
          %v2548 = vadd.f32 %v2540, 1e-06
          %v2549 = vadd.f32 %v2547, 1e-06
          %v2550 = vrcp.pop %v2548
          %v2551 = vmul.f32 1.0, %v2550
          %v2552 = vrcp.pop %v2549
          %v2553 = vmul.f32 1.0, %v2552
          %v2555 = vlaneseq
          %v2556 = vshrl.u32 %v2555, 7
          %v2557 = vsub.s32 0, %v2556
          %v2558 = vrot.slane %v2514, %v2557
          %v2560 = vmul.f32 %v2558, %v2524
          %v2561 = vmul.f32 %v2558, %v2525
          %v2562 = vmul.f32 %v2560, %v2551
          %v2563 = vmul.f32 %v2561, %v2553
          %v2565 = vlaneseq
          %v2566 = vshrl.u32 %v2565, 7
          %v2567 = vsub.s32 0, %v2566
          %v2568 = vrot.slane %v2515, %v2567
          %v2570 = vadd.f32 %v2562, %v2568
          %v2571 = vadd.f32 %v2563, %v2568
          %2572 = vst [vmem:[#allocation15] sm:$0xff] %v2570
          %2573 = vst [vmem:[#allocation15 + $0x8] sm:$0xff] %v2571
        $region136: #{tpu_custom_call.1} parent=99 // pred_fallthru
          _
        // Predicated region
        $region137: #{tpu_custom_call.1} parent=99 // pred_check
          %p2574 = pneg %p535
        $region138: #{tpu_custom_call.1} parent=99 // pred_check_branch
          %2576 = sbr.rel (%p2574) target = $region140
        $region139: #{tpu_custom_call.1} parent=99 // pred_region
          %s2578 = ssub.s32 256, 256
          %2579 = vsyncadd [#allocation5], %s2578
          %s2580 = sshll.u32 [#allocation15], 4
          %s2581 = int_to_ptr.vmem [resolvable:$true] %s2580
          %2586 = dma.vmem_to_hbm [thread:$0]  %s2581, 256, %s20, [#allocation5], 128, 128, 8
        $region140: #{tpu_custom_call.1} parent=99 // pred_fallthru
          _
        // Predicated region
        $region141: #{tpu_custom_call.1} parent=99 // pred_check
          %p2587 = pneg %p535
        $region142: #{tpu_custom_call.1} parent=99 // pred_check_branch
          %2589 = sbr.rel (%p2587) target = $region144
        $region143: #{tpu_custom_call.1} parent=99 // pred_region
          %2590 = dma.done [#allocation5], 256
        $region144: #{tpu_custom_call.1} parent=99 // pred_fallthru
          _
      $region100: #{tpu_custom_call.1} parent=5 // pred_fallthru
        _
      %p2591 = scmp.le.s32.totalorder 2, %s37
      // Predicated region
      $region145: #{tpu_custom_call.1} parent=5 // pred_check
        %p2592 = pneg %p2591
      $region146: #{tpu_custom_call.1} parent=5 // pred_check_branch
        %2594 = sbr.rel (%p2592) target = $region148
      $region147: #{tpu_custom_call.1} parent=5 // pred_region
        %s2595 = ssub.s32 %s37, 2
      $region148: #{tpu_custom_call.1} parent=5 // pred_fallthru
        _
    $region6: #{tpu_custom_call.1} parent=1 // loop_footer
      %s41 = sadd.s32 1, %s37
    $region7: #{tpu_custom_call.1} parent=1 // loop_footer_branch
      %36 = sbr.rel target = $region3
    $region8: #{tpu_custom_call.1} parent=1 // loop_exit
      _
    %2596 = vsyncpa [#allocation4], 1
    %s2597 = scalar_lea.sflag [#allocation4], 1
    %2598 = vsyncpa %s2597, 1
    %2599 = vsyncpa [#allocation7], 1
    %s2600 = scalar_lea.sflag [#allocation7], 1
    %2601 = vsyncpa %s2600, 1
    %2602 = vsyncpa [#allocation10], 1
    %s2603 = scalar_lea.sflag [#allocation10], 1
    %2604 = vsyncpa %s2603, 1
    %2605 = vsyncpa [#allocation13], 1
    %s2606 = scalar_lea.sflag [#allocation13], 1
    %2607 = vsyncpa %s2606, 1
    %2608 = vsyncpa [#allocation5], 1
    %s2609 = scalar_lea.sflag [#allocation5], 1
    %2610 = vsyncpa %s2609, 1

</llo_original>
